<compile_context>
chip_gen: v7x
topology: tpu7x:2x2x1
jax: 0.10.0
libtpu: 0.0.40
codegen_flags: <defaults>
</compile_context>

<pallas_src>
import math

import jax
import jax.numpy as jnp
from jax.experimental import pallas as pl
from jax.experimental.pallas import tpu as pltpu


def _round_up(x, m):
    return (x + m - 1) // m * m


# ----------------------------- Pallas kernel ---------------------------------
# grid = (B, num_merged_cin_tiles): batch "parallel", C_in reduction "arbitrary" (last).

def _adapter_kernel(x_ref, w1_ref, b1_ref, w2_ref, b2_ref, w3_ref, b3_ref,
                    w4_ref, b4_ref, wm_ref, bm_ref, o_ref, acc1_ref):
    t = pl.program_id(1)
    l1 = acc1_ref.shape[0]
    l2 = (l1 - 4) // 2 + 1
    l3 = (l2 - 4) // 2 + 1
    l4 = o_ref.shape[1]

    @pl.when(t == 0)
    def _init():
        acc1_ref[...] = jnp.zeros_like(acc1_ref)

    # conv1 partial sums for this merged-channel tile (stride-free, 2 matmuls).
    xm = x_ref[...][0]                 # (l1+1, ct) bf16, rows already pair-merged
    w1 = w1_ref[...]                   # (2, ct, c1p) bf16: [W0;W1]-tile, [W2;W3]-tile
    acc1_ref[...] += (
        jnp.dot(xm[:l1], w1[0], preferred_element_type=jnp.float32)
        + jnp.dot(xm[1:l1 + 1], w1[1], preferred_element_type=jnp.float32))

    @pl.when(t == pl.num_programs(1) - 1)
    def _finalize():
        # conv1 bias + ReLU (bias added exactly once, after the full reduction).
        h1 = jnp.maximum(acc1_ref[...] + b1_ref[...], 0.0).astype(jnp.bfloat16)

        def conv_k4_s2(h, w, b, n_out):
            c = h.shape[-1]
            hm = h[:2 * n_out + 2].reshape(n_out + 1, 2 * c)   # pair-merge rows
            y = (jnp.dot(hm[:n_out], w[0], preferred_element_type=jnp.float32)
                 + jnp.dot(hm[1:n_out + 1], w[1], preferred_element_type=jnp.float32))
            return y + b

        h2 = jnp.maximum(conv_k4_s2(h1, w2_ref[...], b2_ref[...], l2),
                         0.0).astype(jnp.bfloat16)
        h3 = jnp.maximum(conv_k4_s2(h2, w3_ref[...], b3_ref[...], l3),
                         0.0).astype(jnp.bfloat16)
        y4 = conv_k4_s2(h3, w4_ref[...], b4_ref[...], l4)       # (l4, 512) f32, no ReLU

        # mask_conv (1x1 -> 1 channel) + sigmoid + elementwise multiply, fused.
        logit = jnp.sum(y4 * wm_ref[...], axis=-1, keepdims=True) + bm_ref[...]
        out = y4 * jax.nn.sigmoid(logit)
        o_ref[...] = out[None].astype(o_ref.dtype)


# ------------------------------ JAX glue --------------------------------------

def _to_kio(w):
    """PyTorch Conv1d weight (C_out, C_in, K) -> (K, C_in, C_out)."""
    return jnp.transpose(w, (2, 1, 0))


def _merge_taps(w_kio):
    """(4, C_in, C_out) -> (2, 2*C_in, C_out): stacked [W0;W1] and [W2;W3]."""
    wa = jnp.concatenate([w_kio[0], w_kio[1]], axis=0)
    wb = jnp.concatenate([w_kio[2], w_kio[3]], axis=0)
    return jnp.stack([wa, wb], axis=0)


def _prep_params(params, c_in_pad):
    """Re-layout + pad weights; bf16 matmul operands, f32 biases."""
    w1 = _to_kio(params["w1"])                  # (4, VOCAB, 64)
    _, c_in, c1 = w1.shape
    c1p = _round_up(c1, 128)                    # conv1 C_out 64 -> 128 (lane-dense)
    w1 = jnp.pad(w1, ((0, 0), (0, c_in_pad - c_in), (0, c1p - c1)))
    b1 = jnp.pad(params["b1"], (0, c1p - c1)).reshape(1, c1p)

    w2 = _to_kio(params["w2"])                  # (4, 64, 128)
    w2 = jnp.pad(w2, ((0, 0), (0, c1p - w2.shape[1]), (0, 0)))
    b2 = params["b2"].reshape(1, -1)
    w3 = _to_kio(params["w3"])                  # (4, 128, 256)
    b3 = params["b3"].reshape(1, -1)
    w4 = _to_kio(params["w4"])                  # (4, 256, 512)
    b4 = params["b4"].reshape(1, -1)
    wm = params["wm"].reshape(1, -1)            # (1, 512, 1) -> (1, 512)
    bm = params["bm"].reshape(1, 1)             # (1,) -> (1, 1)

    bf = lambda a: a.astype(jnp.bfloat16)
    f32 = lambda a: a.astype(jnp.float32)
    return dict(w1=bf(_merge_taps(w1)), b1=f32(b1),
                w2=bf(_merge_taps(w2)), b2=f32(b2),
                w3=bf(_merge_taps(w3)), b3=f32(b3),
                w4=bf(_merge_taps(w4)), b4=f32(b4),
                wm=f32(wm), bm=f32(bm), c1p=c1p)


def adapter_forward(logits, params, *, ct=256):
    """logits: (B, T, VOCAB) channels-last (what asr_model(...).logits would give).
    Returns (inputs_embeds, attention_mask) as handed to the translation model."""
    B, T, c_in = logits.shape
    assert ct % 128 == 0
    c_in_pad = _round_up(c_in, ct)              # => ct divides 2*c_in_pad
    x = logits.astype(jnp.bfloat16)
    if c_in_pad != c_in:
        x = jnp.pad(x, ((0, 0), (0, 0), (0, c_in_pad - c_in)))

    l1 = (T - 4) // 2 + 1
    l2 = (l1 - 4) // 2 + 1
    l3 = (l2 - 4) // 2 + 1
    l4 = (l3 - 4) // 2 + 1

    # Pair-merge the time rows (free, contiguous row-major reshape in HBM):
    # xm[b, l, :] = concat(x[b, 2l, :], x[b, 2l+1, :])
    xm = x[:, :2 * l1 + 2, :].reshape(B, l1 + 1, 2 * c_in_pad)

    p = _prep_params(params, c_in_pad)
    c1p = p["c1p"]
    c2 = p["b2"].shape[1]
    c3 = p["b3"].shape[1]
    c4 = p["b4"].shape[1]
    n_t = (2 * c_in_pad) // ct                  # merged-channel reduction tiles

    out = pl.pallas_call(
        _adapter_kernel,
        out_shape=jax.ShapeDtypeStruct((B, l4, c4), jnp.float32),
        grid=(B, n_t),
        in_specs=[
            pl.BlockSpec((1, l1 + 1, ct), lambda b, t: (b, 0, t)),      # xm tile
            pl.BlockSpec((2, ct, c1p), lambda b, t: (0, t, 0)),         # merged w1 tile
            pl.BlockSpec((1, c1p), lambda b, t: (0, 0)),                # b1
            pl.BlockSpec((2, 2 * c1p, c2), lambda b, t: (0, 0, 0)),     # merged w2
            pl.BlockSpec((1, c2), lambda b, t: (0, 0)),                 # b2
            pl.BlockSpec((2, 2 * c2, c3), lambda b, t: (0, 0, 0)),      # merged w3
            pl.BlockSpec((1, c3), lambda b, t: (0, 0)),                 # b3
            pl.BlockSpec((2, 2 * c3, c4), lambda b, t: (0, 0, 0)),      # merged w4
            pl.BlockSpec((1, c4), lambda b, t: (0, 0)),                 # b4
            pl.BlockSpec((1, c4), lambda b, t: (0, 0)),                 # wm (mask conv)
            pl.BlockSpec((1, 1), lambda b, t: (0, 0)),                  # bm
        ],
        out_specs=pl.BlockSpec((1, l4, c4), lambda b, t: (b, 0, 0)),
        scratch_shapes=[
            pltpu.VMEM((l1, c1p), jnp.float32),   # conv1 accumulator across C_in tiles
        ],
        compiler_params=pltpu.CompilerParams(
            dimension_semantics=("parallel", "arbitrary")),
    )(xm, p["w1"], p["b1"], p["w2"], p["b2"], p["w3"], p["b3"],
      p["w4"], p["b4"], p["wm"], p["bm"])

    attn = jnp.ones((B, l4), dtype=out.dtype)
    return out, attn


# ------------------------- pure-JAX reference (for checking) ------------------

def _ref_conv1d_ncl(x_ncl, w, b, stride):
    out = jax.lax.conv_general_dilated(
        x_ncl, w, window_strides=(stride,), padding="VALID",
        dimension_numbers=("NCH", "OIH", "NCH"))
    return out + b[None, :, None]


def adapter_reference(logits, params):
    x = jnp.transpose(logits, (0, 2, 1))   # (B, VOCAB, T): PyTorch NCL
    x = jax.nn.relu(_ref_conv1d_ncl(x, params["w1"], params["b1"], 2))
    x = jax.nn.relu(_ref_conv1d_ncl(x, params["w2"], params["b2"], 2))
    x = jax.nn.relu(_ref_conv1d_ncl(x, params["w3"], params["b3"], 2))
    x = _ref_conv1d_ncl(x, params["w4"], params["b4"], 2)
    m = jax.nn.sigmoid(_ref_conv1d_ncl(x, params["wm"], params["bm"], 1))
    x = x * m
    return jnp.transpose(x, (0, 2, 1))     # (B, L4, 512) == translation_input.transpose(1,2)


# ------------------------------ param init ------------------------------------

def _init_conv(key, c_out, c_in, k):
    """PyTorch Conv1d default init: U(-bound, bound), bound = 1/sqrt(C_in * K)."""
    kw, kb = jax.random.split(key)
    bound = 1.0 / math.sqrt(c_in * k)
    w = jax.random.uniform(kw, (c_out, c_in, k), jnp.float32, -bound, bound)
    b = jax.random.uniform(kb, (c_out,), jnp.float32, -bound, bound)
    return w, b


def make_params(key, vocab):
    ks = jax.random.split(key, 5)
    w1, b1 = _init_conv(ks[0], 64, vocab, 4)
    w2, b2 = _init_conv(ks[1], 128, 64, 4)
    w3, b3 = _init_conv(ks[2], 256, 128, 4)
    w4, b4 = _init_conv(ks[3], 512, 256, 4)
    wm, bm = _init_conv(ks[4], 1, 512, 1)
    return dict(w1=w1, b1=b1, w2=w2, b2=b2, w3=w3, b3=b3, w4=w4, b4=b4, wm=wm, bm=bm)


# --------------------------------- main ----------------------------------------

if __name__ == "__main__":
    # Real module uses VOCAB=21128 (wav2vec2 zh vocab); kept small here but big
    # enough (512 with ct=256 -> 4 reduction tiles) to exercise the tiled path.
    B, T, VOCAB = 2, 128, 512
    key = jax.random.PRNGKey(0)
    k_logits, k_params = jax.random.split(key)

    # Synthetic stand-in for asr_model(batch['audio_inputs'], ...).logits  (B, T, VOCAB)
    logits = jax.random.normal(k_logits, (B, T, VOCAB), jnp.float32)
    params = make_params(k_params, VOCAB)

    emb, attn = adapter_forward(logits, params, ct=256)
    emb = jax.block_until_ready(emb)
    attn = jax.block_until_ready(attn)

    # sanity: shapes match the PyTorch semantics (B, L4, 512), L4 = conv output length
    L = T
    for _ in range(4):
        L = (L - 4) // 2 + 1
    assert emb.shape == (B, L, 512), emb.shape
    assert attn.shape == (B, L), attn.shape

    ref = jax.block_until_ready(adapter_reference(logits, params))
    err = float(jnp.max(jnp.abs(emb - ref)))
    assert err < 5e-2, f"mismatch vs pure-JAX reference: {err}"

    print("KERNEL_OK")
</pallas_src>

<mosaic_0001>
module attributes {stable_mosaic.version = 11 : i64} {
  func.func @_adapter_kernel(%arg0: i32, %arg1: i32, %arg2: memref<1x64x256xbf16, #tpu.memory_space<vmem>>, %arg3: memref<2x256x128xbf16, #tpu.memory_space<vmem>>, %arg4: memref<1x128xf32, #tpu.memory_space<vmem>>, %arg5: memref<2x256x128xbf16, #tpu.memory_space<vmem>>, %arg6: memref<1x128xf32, #tpu.memory_space<vmem>>, %arg7: memref<2x256x256xbf16, #tpu.memory_space<vmem>>, %arg8: memref<1x256xf32, #tpu.memory_space<vmem>>, %arg9: memref<2x512x512xbf16, #tpu.memory_space<vmem>>, %arg10: memref<1x512xf32, #tpu.memory_space<vmem>>, %arg11: memref<1x512xf32, #tpu.memory_space<vmem>>, %arg12: memref<1x1xf32, #tpu.memory_space<vmem>>, %arg13: memref<1x6x512xf32, #tpu.memory_space<vmem>>, %arg14: memref<63x128xf32, #tpu.memory_space<vmem>>) attributes {dimension_semantics = [#tpu.dimension_semantics<parallel>, #tpu.dimension_semantics<arbitrary>], iteration_bounds = array<i64: 2, 4>, scalar_prefetch = 0 : i64, scratch_operands = 1 : i64, tpu.core_type = #tpu.core_type<tc>, window_params = [{transform_indices = @transform_0, window_bounds = array<i64: 1, 64, 256>}, {transform_indices = @transform_1, window_bounds = array<i64: 2, 256, 128>}, {pipeline_mode = #tpu.pipeline_mode<synchronous>, transform_indices = @transform_2, window_bounds = array<i64: 1, 128>}, {pipeline_mode = #tpu.pipeline_mode<synchronous>, transform_indices = @transform_3, window_bounds = array<i64: 2, 256, 128>}, {pipeline_mode = #tpu.pipeline_mode<synchronous>, transform_indices = @transform_4, window_bounds = array<i64: 1, 128>}, {pipeline_mode = #tpu.pipeline_mode<synchronous>, transform_indices = @transform_5, window_bounds = array<i64: 2, 256, 256>}, {pipeline_mode = #tpu.pipeline_mode<synchronous>, transform_indices = @transform_6, window_bounds = array<i64: 1, 256>}, {pipeline_mode = #tpu.pipeline_mode<synchronous>, transform_indices = @transform_7, window_bounds = array<i64: 2, 512, 512>}, {pipeline_mode = #tpu.pipeline_mode<synchronous>, transform_indices = @transform_8, window_bounds = array<i64: 1, 512>}, {pipeline_mode = #tpu.pipeline_mode<synchronous>, transform_indices = @transform_9, window_bounds = array<i64: 1, 512>}, {pipeline_mode = #tpu.pipeline_mode<synchronous>, transform_indices = @transform_10, window_bounds = array<i64: 1, 1>}, {transform_indices = @transform_11, window_bounds = array<i64: 1, 6, 512>}]} {
    %c0_i32 = arith.constant 0 : i32
    %0 = arith.cmpi eq, %arg1, %c0_i32 : i32
    %1 = arith.extui %0 : i1 to i32
    %c0_i32_0 = arith.constant 0 : i32
    %2 = arith.cmpi ne, %1, %c0_i32_0 : i32
    scf.if %2 {
      %cst_12 = arith.constant 0.000000e+00 : f32
      %21 = vector.broadcast %cst_12 : f32 to vector<63x128xf32>
      %c0_13 = arith.constant 0 : index
      %c0_14 = arith.constant 0 : index
      %22 = vector.load %arg14[%c0_13, %c0_14] : memref<63x128xf32, #tpu.memory_space<vmem>>, vector<63x128xf32>
      tpu.vector_store %arg14[%c0_13, %c0_14], %21 {strides = array<i32>} : memref<63x128xf32, #tpu.memory_space<vmem>>, vector<63x128xf32>,
    } else {
    }
    %c0 = arith.constant 0 : index
    %c0_1 = arith.constant 0 : index
    %c0_2 = arith.constant 0 : index
    %3 = vector.load %arg2[%c0, %c0_1, %c0_2] : memref<1x64x256xbf16, #tpu.memory_space<vmem>>, vector<1x64x256xbf16>
    %4 = vector.shape_cast %3 : vector<1x64x256xbf16> to vector<64x256xbf16>
    %c0_3 = arith.constant 0 : index
    %c0_4 = arith.constant 0 : index
    %c0_5 = arith.constant 0 : index
    %5 = vector.load %arg3[%c0_3, %c0_4, %c0_5] : memref<2x256x128xbf16, #tpu.memory_space<vmem>>, vector<2x256x128xbf16>
    %c0_6 = arith.constant 0 : index
    %c0_7 = arith.constant 0 : index
    %6 = vector.load %arg14[%c0_6, %c0_7] : memref<63x128xf32, #tpu.memory_space<vmem>>, vector<63x128xf32>
    %7 = vector.extract_strided_slice %4 {offsets = [0, 0], sizes = [63, 256], strides = [1, 1]} : vector<64x256xbf16> to vector<63x256xbf16>
    %8 = vector.extract_strided_slice %5 {offsets = [0, 0, 0], sizes = [1, 256, 128], strides = [1, 1, 1]} : vector<2x256x128xbf16> to vector<1x256x128xbf16>
    %9 = vector.shape_cast %8 : vector<1x256x128xbf16> to vector<256x128xbf16>
    %cst = arith.constant dense<0.000000e+00> : vector<63x128xf32>
    %10 = tpu.matmul %7, %9, %cst {dimension_numbers = #tpu.dot_dimension_numbers<[1], [0], [0], [1], [0, 0, 1, 1], [], []>} : vector<63x256xbf16>, vector<256x128xbf16>, vector<63x128xf32> -> vector<63x128xf32>
    %11 = vector.extract_strided_slice %4 {offsets = [1, 0], sizes = [63, 256], strides = [1, 1]} : vector<64x256xbf16> to vector<63x256xbf16>
    %12 = vector.extract_strided_slice %5 {offsets = [1, 0, 0], sizes = [1, 256, 128], strides = [1, 1, 1]} : vector<2x256x128xbf16> to vector<1x256x128xbf16>
    %13 = vector.shape_cast %12 : vector<1x256x128xbf16> to vector<256x128xbf16>
    %cst_8 = arith.constant dense<0.000000e+00> : vector<63x128xf32>
    %14 = tpu.matmul %11, %13, %cst_8 {dimension_numbers = #tpu.dot_dimension_numbers<[1], [0], [0], [1], [0, 0, 1, 1], [], []>} : vector<63x256xbf16>, vector<256x128xbf16>, vector<63x128xf32> -> vector<63x128xf32>
    %15 = arith.addf %10, %14 : vector<63x128xf32>
    %16 = arith.addf %6, %15 : vector<63x128xf32>
    %c0_9 = arith.constant 0 : index
    %c0_10 = arith.constant 0 : index
    %17 = vector.load %arg14[%c0_9, %c0_10] : memref<63x128xf32, #tpu.memory_space<vmem>>, vector<63x128xf32>
    tpu.vector_store %arg14[%c0_9, %c0_10], %16 {strides = array<i32>} : memref<63x128xf32, #tpu.memory_space<vmem>>, vector<63x128xf32>,
    %c3_i32 = arith.constant 3 : i32
    %18 = arith.cmpi eq, %arg1, %c3_i32 : i32
    %19 = arith.extui %18 : i1 to i32
    %c0_i32_11 = arith.constant 0 : i32
    %20 = arith.cmpi ne, %19, %c0_i32_11 : i32
    scf.if %20 {
      %c0_12 = arith.constant 0 : index
      %c0_13 = arith.constant 0 : index
      %21 = vector.load %arg14[%c0_12, %c0_13] : memref<63x128xf32, #tpu.memory_space<vmem>>, vector<63x128xf32>
      %c0_14 = arith.constant 0 : index
      %c0_15 = arith.constant 0 : index
      %22 = vector.load %arg4[%c0_14, %c0_15] : memref<1x128xf32, #tpu.memory_space<vmem>>, vector<1x128xf32>
      %23 = vector.broadcast %22 : vector<1x128xf32> to vector<63x128xf32>
      %24 = arith.addf %21, %23 : vector<63x128xf32>
      %cst_16 = arith.constant 0.000000e+00 : f32
      %25 = vector.broadcast %cst_16 : f32 to vector<63x128xf32>
      %26 = arith.maximumf %24, %25 : vector<63x128xf32>
      %27 = arith.truncf %26 : vector<63x128xf32> to vector<63x128xbf16>
      %c0_17 = arith.constant 0 : index
      %c0_18 = arith.constant 0 : index
      %c0_19 = arith.constant 0 : index
      %28 = vector.load %arg5[%c0_17, %c0_18, %c0_19] : memref<2x256x128xbf16, #tpu.memory_space<vmem>>, vector<2x256x128xbf16>
      %c0_20 = arith.constant 0 : index
      %c0_21 = arith.constant 0 : index
      %29 = vector.load %arg6[%c0_20, %c0_21] : memref<1x128xf32, #tpu.memory_space<vmem>>, vector<1x128xf32>
      %30 = vector.extract_strided_slice %27 {offsets = [0, 0], sizes = [62, 128], strides = [1, 1]} : vector<63x128xbf16> to vector<62x128xbf16>
      %31 = vector.shape_cast %30 : vector<62x128xbf16> to vector<31x256xbf16>
      %32 = vector.extract_strided_slice %31 {offsets = [0, 0], sizes = [30, 256], strides = [1, 1]} : vector<31x256xbf16> to vector<30x256xbf16>
      %33 = vector.extract_strided_slice %28 {offsets = [0, 0, 0], sizes = [1, 256, 128], strides = [1, 1, 1]} : vector<2x256x128xbf16> to vector<1x256x128xbf16>
      %34 = vector.shape_cast %33 : vector<1x256x128xbf16> to vector<256x128xbf16>
      %cst_22 = arith.constant dense<0.000000e+00> : vector<30x128xf32>
      %35 = tpu.matmul %32, %34, %cst_22 {dimension_numbers = #tpu.dot_dimension_numbers<[1], [0], [0], [1], [0, 0, 1, 1], [], []>} : vector<30x256xbf16>, vector<256x128xbf16>, vector<30x128xf32> -> vector<30x128xf32>
      %36 = vector.extract_strided_slice %31 {offsets = [1, 0], sizes = [30, 256], strides = [1, 1]} : vector<31x256xbf16> to vector<30x256xbf16>
      %37 = vector.extract_strided_slice %28 {offsets = [1, 0, 0], sizes = [1, 256, 128], strides = [1, 1, 1]} : vector<2x256x128xbf16> to vector<1x256x128xbf16>
      %38 = vector.shape_cast %37 : vector<1x256x128xbf16> to vector<256x128xbf16>
      %cst_23 = arith.constant dense<0.000000e+00> : vector<30x128xf32>
      %39 = tpu.matmul %36, %38, %cst_23 {dimension_numbers = #tpu.dot_dimension_numbers<[1], [0], [0], [1], [0, 0, 1, 1], [], []>} : vector<30x256xbf16>, vector<256x128xbf16>, vector<30x128xf32> -> vector<30x128xf32>
      %40 = arith.addf %35, %39 : vector<30x128xf32>
      %41 = vector.broadcast %29 : vector<1x128xf32> to vector<30x128xf32>
      %42 = arith.addf %40, %41 : vector<30x128xf32>
      %cst_24 = arith.constant 0.000000e+00 : f32
      %43 = vector.broadcast %cst_24 : f32 to vector<30x128xf32>
      %44 = arith.maximumf %42, %43 : vector<30x128xf32>
      %45 = arith.truncf %44 : vector<30x128xf32> to vector<30x128xbf16>
      %c0_25 = arith.constant 0 : index
      %c0_26 = arith.constant 0 : index
      %c0_27 = arith.constant 0 : index
      %46 = vector.load %arg7[%c0_25, %c0_26, %c0_27] : memref<2x256x256xbf16, #tpu.memory_space<vmem>>, vector<2x256x256xbf16>
      %c0_28 = arith.constant 0 : index
      %c0_29 = arith.constant 0 : index
      %47 = vector.load %arg8[%c0_28, %c0_29] : memref<1x256xf32, #tpu.memory_space<vmem>>, vector<1x256xf32>
      %48 = vector.shape_cast %45 : vector<30x128xbf16> to vector<15x256xbf16>
      %49 = vector.extract_strided_slice %48 {offsets = [0, 0], sizes = [14, 256], strides = [1, 1]} : vector<15x256xbf16> to vector<14x256xbf16>
      %50 = vector.extract_strided_slice %46 {offsets = [0, 0, 0], sizes = [1, 256, 256], strides = [1, 1, 1]} : vector<2x256x256xbf16> to vector<1x256x256xbf16>
      %51 = vector.shape_cast %50 : vector<1x256x256xbf16> to vector<256x256xbf16>
      %cst_30 = arith.constant dense<0.000000e+00> : vector<14x256xf32>
      %52 = tpu.matmul %49, %51, %cst_30 {dimension_numbers = #tpu.dot_dimension_numbers<[1], [0], [0], [1], [0, 0, 1, 1], [], []>} : vector<14x256xbf16>, vector<256x256xbf16>, vector<14x256xf32> -> vector<14x256xf32>
      %53 = vector.extract_strided_slice %48 {offsets = [1, 0], sizes = [14, 256], strides = [1, 1]} : vector<15x256xbf16> to vector<14x256xbf16>
      %54 = vector.extract_strided_slice %46 {offsets = [1, 0, 0], sizes = [1, 256, 256], strides = [1, 1, 1]} : vector<2x256x256xbf16> to vector<1x256x256xbf16>
      %55 = vector.shape_cast %54 : vector<1x256x256xbf16> to vector<256x256xbf16>
      %cst_31 = arith.constant dense<0.000000e+00> : vector<14x256xf32>
      %56 = tpu.matmul %53, %55, %cst_31 {dimension_numbers = #tpu.dot_dimension_numbers<[1], [0], [0], [1], [0, 0, 1, 1], [], []>} : vector<14x256xbf16>, vector<256x256xbf16>, vector<14x256xf32> -> vector<14x256xf32>
      %57 = arith.addf %52, %56 : vector<14x256xf32>
      %58 = vector.broadcast %47 : vector<1x256xf32> to vector<14x256xf32>
      %59 = arith.addf %57, %58 : vector<14x256xf32>
      %cst_32 = arith.constant 0.000000e+00 : f32
      %60 = vector.broadcast %cst_32 : f32 to vector<14x256xf32>
      %61 = arith.maximumf %59, %60 : vector<14x256xf32>
      %62 = arith.truncf %61 : vector<14x256xf32> to vector<14x256xbf16>
      %c0_33 = arith.constant 0 : index
      %c0_34 = arith.constant 0 : index
      %c0_35 = arith.constant 0 : index
      %63 = vector.load %arg9[%c0_33, %c0_34, %c0_35] : memref<2x512x512xbf16, #tpu.memory_space<vmem>>, vector<2x512x512xbf16>
      %c0_36 = arith.constant 0 : index
      %c0_37 = arith.constant 0 : index
      %64 = vector.load %arg10[%c0_36, %c0_37] : memref<1x512xf32, #tpu.memory_space<vmem>>, vector<1x512xf32>
      %65 = vector.shape_cast %62 : vector<14x256xbf16> to vector<7x512xbf16>
      %66 = vector.extract_strided_slice %65 {offsets = [0, 0], sizes = [6, 512], strides = [1, 1]} : vector<7x512xbf16> to vector<6x512xbf16>
      %67 = vector.extract_strided_slice %63 {offsets = [0, 0, 0], sizes = [1, 512, 512], strides = [1, 1, 1]} : vector<2x512x512xbf16> to vector<1x512x512xbf16>
      %68 = vector.shape_cast %67 : vector<1x512x512xbf16> to vector<512x512xbf16>
      %cst_38 = arith.constant dense<0.000000e+00> : vector<6x512xf32>
      %69 = tpu.matmul %66, %68, %cst_38 {dimension_numbers = #tpu.dot_dimension_numbers<[1], [0], [0], [1], [0, 0, 1, 1], [], []>} : vector<6x512xbf16>, vector<512x512xbf16>, vector<6x512xf32> -> vector<6x512xf32>
      %70 = vector.extract_strided_slice %65 {offsets = [1, 0], sizes = [6, 512], strides = [1, 1]} : vector<7x512xbf16> to vector<6x512xbf16>
      %71 = vector.extract_strided_slice %63 {offsets = [1, 0, 0], sizes = [1, 512, 512], strides = [1, 1, 1]} : vector<2x512x512xbf16> to vector<1x512x512xbf16>
      %72 = vector.shape_cast %71 : vector<1x512x512xbf16> to vector<512x512xbf16>
      %cst_39 = arith.constant dense<0.000000e+00> : vector<6x512xf32>
      %73 = tpu.matmul %70, %72, %cst_39 {dimension_numbers = #tpu.dot_dimension_numbers<[1], [0], [0], [1], [0, 0, 1, 1], [], []>} : vector<6x512xbf16>, vector<512x512xbf16>, vector<6x512xf32> -> vector<6x512xf32>
      %74 = arith.addf %69, %73 : vector<6x512xf32>
      %75 = vector.broadcast %64 : vector<1x512xf32> to vector<6x512xf32>
      %76 = arith.addf %74, %75 : vector<6x512xf32>
      %c0_40 = arith.constant 0 : index
      %c0_41 = arith.constant 0 : index
      %77 = vector.load %arg11[%c0_40, %c0_41] : memref<1x512xf32, #tpu.memory_space<vmem>>, vector<1x512xf32>
      %78 = vector.broadcast %77 : vector<1x512xf32> to vector<6x512xf32>
      %79 = arith.mulf %76, %78 : vector<6x512xf32>
      %cst_42 = arith.constant dense<0.000000e+00> : vector<6xf32>
      %80 = vector.multi_reduction <add>, %79, %cst_42 [1] : vector<6x512xf32> to vector<6xf32>
      %81 = vector.shape_cast %80 : vector<6xf32> to vector<6x1xf32>
      %c0_43 = arith.constant 0 : index
      %c0_44 = arith.constant 0 : index
      %82 = vector.load %arg12[%c0_43, %c0_44] : memref<1x1xf32, #tpu.memory_space<vmem>>, vector<1x1xf32>
      %83 = vector.broadcast %82 : vector<1x1xf32> to vector<6x1xf32>
      %84 = arith.addf %81, %83 : vector<6x1xf32>
      %85 = arith.negf %84 : vector<6x1xf32>
      %86 = math.exp %85 : vector<6x1xf32>
      %cst_45 = arith.constant 1.000000e+00 : f32
      %87 = vector.broadcast %cst_45 : f32 to vector<6x1xf32>
      %88 = arith.addf %87, %86 : vector<6x1xf32>
      %89 = arith.divf %87, %88 : vector<6x1xf32>
      %90 = vector.broadcast %89 : vector<6x1xf32> to vector<6x512xf32>
      %91 = arith.mulf %76, %90 : vector<6x512xf32>
      %92 = vector.shape_cast %91 : vector<6x512xf32> to vector<1x6x512xf32>
      %c0_46 = arith.constant 0 : index
      %c0_47 = arith.constant 0 : index
      %c0_48 = arith.constant 0 : index
      %93 = vector.load %arg13[%c0_46, %c0_47, %c0_48] : memref<1x6x512xf32, #tpu.memory_space<vmem>>, vector<1x6x512xf32>
      tpu.vector_store %arg13[%c0_46, %c0_47, %c0_48], %92 {strides = array<i32>} : memref<1x6x512xf32, #tpu.memory_space<vmem>>, vector<1x6x512xf32>,
    } else {
    }
    return
  }
  func.func @transform_0(%arg0: i32, %arg1: i32) -> (i32, i32, i32) {
    %c0_i32 = arith.constant 0 : i32
    %c0_i32_0 = arith.constant 0 : i32
    return %arg0, %c0_i32, %arg1 : i32, i32, i32
  }
  func.func @transform_1(%arg0: i32, %arg1: i32) -> (i32, i32, i32) {
    %c0_i32 = arith.constant 0 : i32
    %c0_i32_0 = arith.constant 0 : i32
    %c0_i32_1 = arith.constant 0 : i32
    return %c0_i32, %arg1, %c0_i32_0 : i32, i32, i32
  }
  func.func @transform_2(%arg0: i32, %arg1: i32) -> (i32, i32) {
    %c0_i32 = arith.constant 0 : i32
    %c0_i32_0 = arith.constant 0 : i32
    %c0_i32_1 = arith.constant 0 : i32
    return %c0_i32, %c0_i32_0 : i32, i32
  }
  func.func @transform_3(%arg0: i32, %arg1: i32) -> (i32, i32, i32) {
    %c0_i32 = arith.constant 0 : i32
    %c0_i32_0 = arith.constant 0 : i32
    %c0_i32_1 = arith.constant 0 : i32
    %c0_i32_2 = arith.constant 0 : i32
    return %c0_i32, %c0_i32_0, %c0_i32_1 : i32, i32, i32
  }
  func.func @transform_4(%arg0: i32, %arg1: i32) -> (i32, i32) {
    %c0_i32 = arith.constant 0 : i32
    %c0_i32_0 = arith.constant 0 : i32
    %c0_i32_1 = arith.constant 0 : i32
    return %c0_i32, %c0_i32_0 : i32, i32
  }
  func.func @transform_5(%arg0: i32, %arg1: i32) -> (i32, i32, i32) {
    %c0_i32 = arith.constant 0 : i32
    %c0_i32_0 = arith.constant 0 : i32
    %c0_i32_1 = arith.constant 0 : i32
    %c0_i32_2 = arith.constant 0 : i32
    return %c0_i32, %c0_i32_0, %c0_i32_1 : i32, i32, i32
  }
  func.func @transform_6(%arg0: i32, %arg1: i32) -> (i32, i32) {
    %c0_i32 = arith.constant 0 : i32
    %c0_i32_0 = arith.constant 0 : i32
    %c0_i32_1 = arith.constant 0 : i32
    return %c0_i32, %c0_i32_0 : i32, i32
  }
  func.func @transform_7(%arg0: i32, %arg1: i32) -> (i32, i32, i32) {
    %c0_i32 = arith.constant 0 : i32
    %c0_i32_0 = arith.constant 0 : i32
    %c0_i32_1 = arith.constant 0 : i32
    %c0_i32_2 = arith.constant 0 : i32
    return %c0_i32, %c0_i32_0, %c0_i32_1 : i32, i32, i32
  }
  func.func @transform_8(%arg0: i32, %arg1: i32) -> (i32, i32) {
    %c0_i32 = arith.constant 0 : i32
    %c0_i32_0 = arith.constant 0 : i32
    %c0_i32_1 = arith.constant 0 : i32
    return %c0_i32, %c0_i32_0 : i32, i32
  }
  func.func @transform_9(%arg0: i32, %arg1: i32) -> (i32, i32) {
    %c0_i32 = arith.constant 0 : i32
    %c0_i32_0 = arith.constant 0 : i32
    %c0_i32_1 = arith.constant 0 : i32
    return %c0_i32, %c0_i32_0 : i32, i32
  }
  func.func @transform_10(%arg0: i32, %arg1: i32) -> (i32, i32) {
    %c0_i32 = arith.constant 0 : i32
    %c0_i32_0 = arith.constant 0 : i32
    %c0_i32_1 = arith.constant 0 : i32
    return %c0_i32, %c0_i32_0 : i32, i32
  }
  func.func @transform_11(%arg0: i32, %arg1: i32) -> (i32, i32, i32) {
    %c0_i32 = arith.constant 0 : i32
    %c0_i32_0 = arith.constant 0 : i32
    %c0_i32_1 = arith.constant 0 : i32
    return %arg0, %c0_i32, %c0_i32_0 : i32, i32, i32
  }
}

</mosaic_0001>

<llo_original>
// kernel: tpu_custom_call.1
$region0: #{tpu_custom_call.1}
  #allocation0 [shape = 'u32[]', space=smem, size = 0x4, offset = 0x4, fixed_abs, tag = 'smem constant byte address 0x4 - core index']
  #allocation1 [shape = 'u32[144,128]{1,0:T(1,128)}', space=vmem, size = 0x12000, scoped, tag = 'internal scratch']
  #allocation2 [shape = 'f32[63,128]{1,0:T(8,128)}', space=vmem, size = 0x8000, scoped, tag = 'scratch operand']
  #allocation3 [shape = 'f32[1,1]{1,0:T(1,128)S(1)}', space=vmem, size = 0x200, scoped, tag = 'scoped memory for tpu_custom_call.1']
  #allocation12 [shape = 's32[]', space=sflag, size = 0x4, offset = 0, fixed_abs, tag = 'sflag constant byte address 0x0 - dummy sync flag']
  %s0 = inlined_call_operand.hbm [shape: bf16[2,64,1024], index: 0, kind: input, shape index: {}]
  %s1 = inlined_call_operand.hbm [shape: bf16[2,1024,128], index: 1, kind: input, shape index: {}]
  %s2 = inlined_call_operand.vmem [shape: f32[1,128], index: 2, kind: input, shape index: {}]
  %s3 = inlined_call_operand.hbm [shape: bf16[2,256,128], index: 3, kind: input, shape index: {}]
  %s4 = inlined_call_operand.vmem [shape: f32[1,128], index: 4, kind: input, shape index: {}]
  %s5 = inlined_call_operand.hbm [shape: bf16[2,256,256], index: 5, kind: input, shape index: {}]
  %s6 = inlined_call_operand.vmem [shape: f32[1,256], index: 6, kind: input, shape index: {}]
  %s7 = inlined_call_operand.hbm [shape: bf16[2,512,512], index: 7, kind: input, shape index: {}]
  %s8 = inlined_call_operand.vmem [shape: f32[1,512], index: 8, kind: input, shape index: {}]
  %s9 = inlined_call_operand.vmem [shape: f32[1,512], index: 9, kind: input, shape index: {}]
  %s10 = inlined_call_operand.<no memory space> [shape: f32[1,1], index: 10, kind: input, shape index: {}]
  %s11 = inlined_call_operand.vmem [shape: f32[2,6,512], index: 11, kind: output, shape index: {}]
  %s12 = sld [smem:[#allocation0]]
  $region105: #{tpu_custom_call.1} parent=0
    _
  %s14 = ssub.s32 1, %s12
  %s15 = scalar_select 0, %s14, %s12
  %v16 = vstv %s10
  %17 = vst [vmem:[#allocation3] sm:$0x1] %v16
  $region1: #{tpu_custom_call.1} parent=0
    #allocation4 [shape = 'u8[65536]{0}', space=vmem, size = 0x10000, scoped, tag = 'input window, operand 0']
    #allocation5 [shape = 's32[2]{0}', space=sflag, size = 0x8, scoped, tag = 'scoped memory for tpu_custom_call.1']
    #allocation6 [shape = 'u8[262144]{0}', space=vmem, size = 0x40000, scoped, tag = 'input window, operand 1']
    #allocation7 [shape = 's32[2]{0}', space=sflag, size = 0x8, scoped, tag = 'scoped memory for tpu_custom_call.1']
    #allocation8 [shape = 'u8[131072]{0}', space=vmem, size = 0x20000, scoped, tag = 'input window, operand 3, single buffered']
    #allocation9 [shape = 'u8[262144]{0}', space=vmem, size = 0x40000, scoped, tag = 'input window, operand 5, single buffered']
    #allocation10 [shape = 's32[1]{0}', space=sflag, size = 0x4, scoped, tag = 'scoped memory for tpu_custom_call.1']
    #allocation11 [shape = 'u8[1048576]{0}', space=vmem, size = 0x100000, scoped, tag = 'input window, operand 7, single buffered']
    %18 = vsyncpa [#allocation5], 0
    %s19 = scalar_lea.sflag [#allocation5], 1
    %20 = vsyncpa %s19, 0
    %21 = vsyncpa [#allocation7], 0
    %s22 = scalar_lea.sflag [#allocation7], 1
    %23 = vsyncpa %s22, 0
    %24 = vsyncpa [#allocation10], 0
    loop: start=0, step=1, limit=10
    $region2: #{tpu_custom_call.1} parent=1 // loop_pre_header
      _
    $region3: #{tpu_custom_call.1} parent=1 // loop_header
      %s26 = sphi 0, %s30
      %p27 = scmp.ge.s32.totalorder %s26, 10
      %s33 = sphi 0, %s45
      %s34 = sphi 0, %s41
      %s35 = sphi 0, %s33
      %s36 = sphi 0, %s34
      %s37 = sphi 0, %s35
      %s38 = sphi 0, %s36
      %s50 = sphi 0, %s52
      %s53 = sphi 0, %s50
      %s54 = sphi 0, %s53
      %s70 = sphi 0, %s54
      %s76 = sphi 0, %s78
      %s79 = sphi 0, %s76
      %s80 = sphi 0, %s79
      %s96 = sphi 0, %s80
      %s100 = sphi 0, %s100
      %s102 = sphi 0, %s100
      %s103 = sphi 0, %s102
      %s117 = sphi 0, %s103
      %s121 = sphi 0, %s121
      %s123 = sphi 0, %s121
      %s124 = sphi 0, %s123
      %s138 = sphi 0, %s124
      %s142 = sphi 0, %s142
      %s144 = sphi 0, %s142
      %s145 = sphi 0, %s144
      %s159 = sphi 0, %s145
      %s163 = sphi 0, %s163
      %s165 = sphi 0, %s163
      %s166 = sphi 0, %s165
      %s180 = sphi 0, %s166
      %s184 = sphi 0, %s184
      %s186 = sphi 0, %s184
      %s187 = sphi 0, %s186
      %s201 = sphi 0, %s187
      %s205 = sphi 0, %s205
      %s207 = sphi 0, %s205
      %s208 = sphi 0, %s207
      %s222 = sphi 0, %s208
      %s226 = sphi 0, %s226
      %s228 = sphi 0, %s226
      %s229 = sphi 0, %s228
      %s243 = sphi 0, %s229
      %s247 = sphi 0, %s247
      %s249 = sphi 0, %s247
      %s250 = sphi 0, %s249
      %s264 = sphi 0, %s250
      %s268 = sphi 0, %s268
      %s270 = sphi 0, %s268
      %s271 = sphi 0, %s270
      %s285 = sphi 0, %s271
      %s291 = sphi 0, %s293
      %s294 = sphi 0, %s291
      %s295 = sphi 0, %s294
      %s311 = sphi 0, %s295
    $region4: #{tpu_custom_call.1} parent=1 // loop_header_branch
      %29 = sbr.rel (%p27) target = $region8
    $region5: #{tpu_custom_call.1} parent=1 // loop_body
      %s31 = ssub.s32 %s26, 1
      %s32 = ssub.s32 %s26, 2
      %s39 = sadd.s32 1, %s34
      %p40 = scmp.ge.s32.totalorder %s39, 4
      %s41 = scalar_select %p40, 0, %s39
      %s42 = sadd.s32 1, %s33
      %s43 = scalar_select %p40, %s42, %s33
      %p44 = scmp.ge.s32.totalorder %s43, 2
      %s45 = scalar_select %p44, 0, %s43
      %s46 = ssub.s32 %s33, %s45
      %s47 = ssub.s32 %s34, %s41
      %s48 = sor.u32 %s46, %s47
      %p49 = scmp.eq.s32.totalorder %s48, 0
      %s51 = sadd.s32 %s50, 1
      %s52 = scalar_select %p49, %s50, %s51
      %p55 = pneg %p49
      %p56 = scmp.eq.s32.totalorder %s26, 7
      %p57 = por %p55, %p56
      %p58 = scmp.ne.s32.totalorder %s50, %s53
      %p59 = scmp.eq.s32.totalorder %s26, 0
      %p60 = por %p58, %p59
      %p61 = scmp.ne.s32.totalorder %s50, %s53
      %p62 = scmp.eq.s32.totalorder %s31, 7
      %p63 = por %p61, %p62
      %p64 = scmp.ne.s32.totalorder %s53, %s54
      %p65 = scmp.eq.s32.totalorder %s31, 0
      %p66 = por %p64, %p65
      %p67 = scmp.ne.s32.totalorder %s53, %s54
      %p68 = scmp.eq.s32.totalorder %s32, 7
      %p69 = por %p67, %p68
      %p71 = scmp.ne.s32.totalorder %s54, %s70
      %p72 = scmp.eq.s32.totalorder %s32, 0
      %p73 = por %p71, %p72
      %s74 = ssub.s32 %s34, %s41
      %p75 = scmp.eq.s32.totalorder %s74, 0
      %s77 = sadd.s32 %s76, 1
      %s78 = scalar_select %p75, %s76, %s77
      %p81 = pneg %p75
      %p82 = scmp.eq.s32.totalorder %s26, 7
      %p83 = por %p81, %p82
      %p84 = scmp.ne.s32.totalorder %s76, %s79
      %p85 = scmp.eq.s32.totalorder %s26, 0
      %p86 = por %p84, %p85
      %p87 = scmp.ne.s32.totalorder %s76, %s79
      %p88 = scmp.eq.s32.totalorder %s31, 7
      %p89 = por %p87, %p88
      %p90 = scmp.ne.s32.totalorder %s79, %s80
      %p91 = scmp.eq.s32.totalorder %s31, 0
      %p92 = por %p90, %p91
      %p93 = scmp.ne.s32.totalorder %s79, %s80
      %p94 = scmp.eq.s32.totalorder %s32, 7
      %p95 = por %p93, %p94
      %p97 = scmp.ne.s32.totalorder %s80, %s96
      %p98 = scmp.eq.s32.totalorder %s32, 0
      %p99 = por %p97, %p98
      %s101 = sadd.s32 %s100, 1
      %p104 = scmp.eq.s32.totalorder %s26, 7
      %p105 = scmp.ne.s32.totalorder %s100, %s102
      %p106 = scmp.eq.s32.totalorder %s26, 0
      %p107 = por %p105, %p106
      %p108 = scmp.ne.s32.totalorder %s100, %s102
      %p109 = scmp.eq.s32.totalorder %s31, 7
      %p110 = por %p108, %p109
      %p111 = scmp.ne.s32.totalorder %s102, %s103
      %p112 = scmp.eq.s32.totalorder %s31, 0
      %p113 = por %p111, %p112
      %p114 = scmp.ne.s32.totalorder %s102, %s103
      %p115 = scmp.eq.s32.totalorder %s32, 7
      %p116 = por %p114, %p115
      %p118 = scmp.ne.s32.totalorder %s103, %s117
      %p119 = scmp.eq.s32.totalorder %s32, 0
      %p120 = por %p118, %p119
      %s122 = sadd.s32 %s121, 1
      %p125 = scmp.eq.s32.totalorder %s26, 7
      %p126 = scmp.ne.s32.totalorder %s121, %s123
      %p127 = scmp.eq.s32.totalorder %s26, 0
      %p128 = por %p126, %p127
      %p129 = scmp.ne.s32.totalorder %s121, %s123
      %p130 = scmp.eq.s32.totalorder %s31, 7
      %p131 = por %p129, %p130
      %p132 = scmp.ne.s32.totalorder %s123, %s124
      %p133 = scmp.eq.s32.totalorder %s31, 0
      %p134 = por %p132, %p133
      %p135 = scmp.ne.s32.totalorder %s123, %s124
      %p136 = scmp.eq.s32.totalorder %s32, 7
      %p137 = por %p135, %p136
      %p139 = scmp.ne.s32.totalorder %s124, %s138
      %p140 = scmp.eq.s32.totalorder %s32, 0
      %p141 = por %p139, %p140
      %s143 = sadd.s32 %s142, 1
      %p146 = scmp.eq.s32.totalorder %s26, 7
      %p147 = scmp.ne.s32.totalorder %s142, %s144
      %p148 = scmp.eq.s32.totalorder %s26, 0
      %p149 = por %p147, %p148
      %p150 = scmp.ne.s32.totalorder %s142, %s144
      %p151 = scmp.eq.s32.totalorder %s31, 7
      %p152 = por %p150, %p151
      %p153 = scmp.ne.s32.totalorder %s144, %s145
      %p154 = scmp.eq.s32.totalorder %s31, 0
      %p155 = por %p153, %p154
      %p156 = scmp.ne.s32.totalorder %s144, %s145
      %p157 = scmp.eq.s32.totalorder %s32, 7
      %p158 = por %p156, %p157
      %p160 = scmp.ne.s32.totalorder %s145, %s159
      %p161 = scmp.eq.s32.totalorder %s32, 0
      %p162 = por %p160, %p161
      %s164 = sadd.s32 %s163, 1
      %p167 = scmp.eq.s32.totalorder %s26, 7
      %p168 = scmp.ne.s32.totalorder %s163, %s165
      %p169 = scmp.eq.s32.totalorder %s26, 0
      %p170 = por %p168, %p169
      %p171 = scmp.ne.s32.totalorder %s163, %s165
      %p172 = scmp.eq.s32.totalorder %s31, 7
      %p173 = por %p171, %p172
      %p174 = scmp.ne.s32.totalorder %s165, %s166
      %p175 = scmp.eq.s32.totalorder %s31, 0
      %p176 = por %p174, %p175
      %p177 = scmp.ne.s32.totalorder %s165, %s166
      %p178 = scmp.eq.s32.totalorder %s32, 7
      %p179 = por %p177, %p178
      %p181 = scmp.ne.s32.totalorder %s166, %s180
      %p182 = scmp.eq.s32.totalorder %s32, 0
      %p183 = por %p181, %p182
      %s185 = sadd.s32 %s184, 1
      %p188 = scmp.eq.s32.totalorder %s26, 7
      %p189 = scmp.ne.s32.totalorder %s184, %s186
      %p190 = scmp.eq.s32.totalorder %s26, 0
      %p191 = por %p189, %p190
      %p192 = scmp.ne.s32.totalorder %s184, %s186
      %p193 = scmp.eq.s32.totalorder %s31, 7
      %p194 = por %p192, %p193
      %p195 = scmp.ne.s32.totalorder %s186, %s187
      %p196 = scmp.eq.s32.totalorder %s31, 0
      %p197 = por %p195, %p196
      %p198 = scmp.ne.s32.totalorder %s186, %s187
      %p199 = scmp.eq.s32.totalorder %s32, 7
      %p200 = por %p198, %p199
      %p202 = scmp.ne.s32.totalorder %s187, %s201
      %p203 = scmp.eq.s32.totalorder %s32, 0
      %p204 = por %p202, %p203
      %s206 = sadd.s32 %s205, 1
      %p209 = scmp.eq.s32.totalorder %s26, 7
      %p210 = scmp.ne.s32.totalorder %s205, %s207
      %p211 = scmp.eq.s32.totalorder %s26, 0
      %p212 = por %p210, %p211
      %p213 = scmp.ne.s32.totalorder %s205, %s207
      %p214 = scmp.eq.s32.totalorder %s31, 7
      %p215 = por %p213, %p214
      %p216 = scmp.ne.s32.totalorder %s207, %s208
      %p217 = scmp.eq.s32.totalorder %s31, 0
      %p218 = por %p216, %p217
      %p219 = scmp.ne.s32.totalorder %s207, %s208
      %p220 = scmp.eq.s32.totalorder %s32, 7
      %p221 = por %p219, %p220
      %p223 = scmp.ne.s32.totalorder %s208, %s222
      %p224 = scmp.eq.s32.totalorder %s32, 0
      %p225 = por %p223, %p224
      %s227 = sadd.s32 %s226, 1
      %p230 = scmp.eq.s32.totalorder %s26, 7
      %p231 = scmp.ne.s32.totalorder %s226, %s228
      %p232 = scmp.eq.s32.totalorder %s26, 0
      %p233 = por %p231, %p232
      %p234 = scmp.ne.s32.totalorder %s226, %s228
      %p235 = scmp.eq.s32.totalorder %s31, 7
      %p236 = por %p234, %p235
      %p237 = scmp.ne.s32.totalorder %s228, %s229
      %p238 = scmp.eq.s32.totalorder %s31, 0
      %p239 = por %p237, %p238
      %p240 = scmp.ne.s32.totalorder %s228, %s229
      %p241 = scmp.eq.s32.totalorder %s32, 7
      %p242 = por %p240, %p241
      %p244 = scmp.ne.s32.totalorder %s229, %s243
      %p245 = scmp.eq.s32.totalorder %s32, 0
      %p246 = por %p244, %p245
      %s248 = sadd.s32 %s247, 1
      %p251 = scmp.eq.s32.totalorder %s26, 7
      %p252 = scmp.ne.s32.totalorder %s247, %s249
      %p253 = scmp.eq.s32.totalorder %s26, 0
      %p254 = por %p252, %p253
      %p255 = scmp.ne.s32.totalorder %s247, %s249
      %p256 = scmp.eq.s32.totalorder %s31, 7
      %p257 = por %p255, %p256
      %p258 = scmp.ne.s32.totalorder %s249, %s250
      %p259 = scmp.eq.s32.totalorder %s31, 0
      %p260 = por %p258, %p259
      %p261 = scmp.ne.s32.totalorder %s249, %s250
      %p262 = scmp.eq.s32.totalorder %s32, 7
      %p263 = por %p261, %p262
      %p265 = scmp.ne.s32.totalorder %s250, %s264
      %p266 = scmp.eq.s32.totalorder %s32, 0
      %p267 = por %p265, %p266
      %s269 = sadd.s32 %s268, 1
      %p272 = scmp.eq.s32.totalorder %s26, 7
      %p273 = scmp.ne.s32.totalorder %s268, %s270
      %p274 = scmp.eq.s32.totalorder %s26, 0
      %p275 = por %p273, %p274
      %p276 = scmp.ne.s32.totalorder %s268, %s270
      %p277 = scmp.eq.s32.totalorder %s31, 7
      %p278 = por %p276, %p277
      %p279 = scmp.ne.s32.totalorder %s270, %s271
      %p280 = scmp.eq.s32.totalorder %s31, 0
      %p281 = por %p279, %p280
      %p282 = scmp.ne.s32.totalorder %s270, %s271
      %p283 = scmp.eq.s32.totalorder %s32, 7
      %p284 = por %p282, %p283
      %p286 = scmp.ne.s32.totalorder %s271, %s285
      %p287 = scmp.eq.s32.totalorder %s32, 0
      %p288 = por %p286, %p287
      %s289 = ssub.s32 %s33, %s45
      %p290 = scmp.eq.s32.totalorder %s289, 0
      %s292 = sadd.s32 %s291, 1
      %s293 = scalar_select %p290, %s291, %s292
      %p296 = pneg %p290
      %p297 = scmp.eq.s32.totalorder %s26, 7
      %p298 = por %p296, %p297
      %p299 = scmp.ne.s32.totalorder %s291, %s294
      %p300 = scmp.eq.s32.totalorder %s26, 0
      %p301 = por %p299, %p300
      %p302 = scmp.ne.s32.totalorder %s291, %s294
      %p303 = scmp.eq.s32.totalorder %s31, 7
      %p304 = por %p302, %p303
      %p305 = scmp.ne.s32.totalorder %s294, %s295
      %p306 = scmp.eq.s32.totalorder %s31, 0
      %p307 = por %p305, %p306
      %p308 = scmp.ne.s32.totalorder %s294, %s295
      %p309 = scmp.eq.s32.totalorder %s32, 7
      %p310 = por %p308, %p309
      %p312 = scmp.ne.s32.totalorder %s295, %s311
      %p313 = scmp.eq.s32.totalorder %s32, 0
      %p314 = por %p312, %p313
      %p315 = scmp.le.s32.totalorder 1, %s26
      %p316 = scmp.lt.s32.totalorder %s26, 9
      %p317 = pnand %p315, %p316
      %p318 = pneg %p317
      // Predicated region
      $region9: #{tpu_custom_call.1} parent=5 // pred_check
        _
      $region10: #{tpu_custom_call.1} parent=5 // pred_check_branch
        %320 = sbr.rel (%p317) target = $region12
      $region11: #{tpu_custom_call.1} parent=5 // pred_region
        %s321 = ssub.s32 %s26, 1
        // Predicated region
        $region13: #{tpu_custom_call.1} parent=11 // pred_check
          %p322 = pneg %p113
        $region14: #{tpu_custom_call.1} parent=11 // pred_check_branch
          %324 = sbr.rel (%p322) target = $region16
        $region15: #{tpu_custom_call.1} parent=11 // pred_region
          _
        $region16: #{tpu_custom_call.1} parent=11 // pred_fallthru
          _
        // Predicated region
        $region17: #{tpu_custom_call.1} parent=11 // pred_check
          %p325 = pneg %p134
        $region18: #{tpu_custom_call.1} parent=11 // pred_check_branch
          %327 = sbr.rel (%p325) target = $region20
        $region19: #{tpu_custom_call.1} parent=11 // pred_region
          %s329 = ssub.s32 4096, 4096
          %330 = vsyncadd [#allocation7], %s329
          %s331 = sshll.u32 [#allocation8], 4
          %s332 = int_to_ptr.vmem [resolvable:$true] %s331
          %337 = dma.hbm_to_vmem [thread:$0]  %s3, 4096, %s332, [#allocation7], 64, 64, 4
        $region20: #{tpu_custom_call.1} parent=11 // pred_fallthru
          _
        // Predicated region
        $region21: #{tpu_custom_call.1} parent=11 // pred_check
          %p338 = pneg %p155
        $region22: #{tpu_custom_call.1} parent=11 // pred_check_branch
          %340 = sbr.rel (%p338) target = $region24
        $region23: #{tpu_custom_call.1} parent=11 // pred_region
          _
        $region24: #{tpu_custom_call.1} parent=11 // pred_fallthru
          _
        // Predicated region
        $region25: #{tpu_custom_call.1} parent=11 // pred_check
          %p341 = pneg %p176
        $region26: #{tpu_custom_call.1} parent=11 // pred_check_branch
          %343 = sbr.rel (%p341) target = $region28
        $region27: #{tpu_custom_call.1} parent=11 // pred_region
          %s345 = ssub.s32 8192, 8192
          %346 = vsyncadd [#allocation10], %s345
          %s347 = sshll.u32 [#allocation9], 4
          %s348 = int_to_ptr.vmem [resolvable:$true] %s347
          %353 = dma.hbm_to_vmem [thread:$0]  %s5, 8192, %s348, [#allocation10], 128, 128, 8
        $region28: #{tpu_custom_call.1} parent=11 // pred_fallthru
          _
        // Predicated region
        $region29: #{tpu_custom_call.1} parent=11 // pred_check
          %p354 = pneg %p197
        $region30: #{tpu_custom_call.1} parent=11 // pred_check_branch
          %356 = sbr.rel (%p354) target = $region32
        $region31: #{tpu_custom_call.1} parent=11 // pred_region
          _
        $region32: #{tpu_custom_call.1} parent=11 // pred_fallthru
          _
        // Predicated region
        $region33: #{tpu_custom_call.1} parent=11 // pred_check
          %p357 = pneg %p218
        $region34: #{tpu_custom_call.1} parent=11 // pred_check_branch
          %359 = sbr.rel (%p357) target = $region36
        $region35: #{tpu_custom_call.1} parent=11 // pred_region
          %s361 = ssub.s32 32768, 32768
          %362 = vsyncadd [#allocation10], %s361
          %s363 = sshll.u32 [#allocation11], 4
          %s364 = int_to_ptr.vmem [resolvable:$true] %s363
          %369 = dma.hbm_to_vmem [thread:$0]  %s7, 32768, %s364, [#allocation10], 256, 256, 16
        $region36: #{tpu_custom_call.1} parent=11 // pred_fallthru
          _
        // Predicated region
        $region37: #{tpu_custom_call.1} parent=11 // pred_check
          %p370 = pneg %p239
        $region38: #{tpu_custom_call.1} parent=11 // pred_check_branch
          %372 = sbr.rel (%p370) target = $region40
        $region39: #{tpu_custom_call.1} parent=11 // pred_region
          _
        $region40: #{tpu_custom_call.1} parent=11 // pred_fallthru
          _
        // Predicated region
        $region41: #{tpu_custom_call.1} parent=11 // pred_check
          %p373 = pneg %p260
        $region42: #{tpu_custom_call.1} parent=11 // pred_check_branch
          %375 = sbr.rel (%p373) target = $region44
        $region43: #{tpu_custom_call.1} parent=11 // pred_region
          _
        $region44: #{tpu_custom_call.1} parent=11 // pred_fallthru
          _
        // Predicated region
        $region45: #{tpu_custom_call.1} parent=11 // pred_check
          %p376 = pneg %p281
        $region46: #{tpu_custom_call.1} parent=11 // pred_check_branch
          %378 = sbr.rel (%p376) target = $region48
        $region47: #{tpu_custom_call.1} parent=11 // pred_region
          _
        $region48: #{tpu_custom_call.1} parent=11 // pred_fallthru
          _
      $region12: #{tpu_custom_call.1} parent=5 // pred_fallthru
        _
      %p379 = scmp.lt.s32.totalorder %s26, 8
      // Predicated region
      $region49: #{tpu_custom_call.1} parent=5 // pred_check
        %p380 = pneg %p379
      $region50: #{tpu_custom_call.1} parent=5 // pred_check_branch
        %382 = sbr.rel (%p380) target = $region52
      $region51: #{tpu_custom_call.1} parent=5 // pred_region
        // Predicated region
        $region53: #{tpu_custom_call.1} parent=51 // pred_check
          %p383 = pneg %p60
        $region54: #{tpu_custom_call.1} parent=51 // pred_check_branch
          %385 = sbr.rel (%p383) target = $region56
        $region55: #{tpu_custom_call.1} parent=51 // pred_region
          %s386 = sand.u32 %s50, 1
          %s387 = scalar_lea.sflag [#allocation5], %s386
          %s388 = sand.u32 %s50, 1
          %s389 = smul.addr %s388, 64
          %s390 = scalar_lea.vmem [#allocation4], %s389
          %s391 = smul.u32 2, %s34
          %s393 = ssub.s32 1024, 1024
          %394 = vsyncadd %s387, %s393
          %s395 = smul.addr %s33, 64
          %s396 = sadd.s32 %s391, %s395
          %s397 = smul.addr %s396, 64
          %s398 = scalar_lea.hbm %s0, %s397
          %s399 = sshll.u32 %s390, 4
          %s400 = int_to_ptr.vmem [resolvable:$true] %s399
          %405 = dma.hbm_to_vmem [thread:$0]  %s398, 1024, %s400, %s387, 512, 128, 8
        $region56: #{tpu_custom_call.1} parent=51 // pred_fallthru
          _
        // Predicated region
        $region57: #{tpu_custom_call.1} parent=51 // pred_check
          %p406 = pneg %p86
        $region58: #{tpu_custom_call.1} parent=51 // pred_check_branch
          %408 = sbr.rel (%p406) target = $region60
        $region59: #{tpu_custom_call.1} parent=51 // pred_region
          #allocation13 [shape = 'u32[6]{0}', space=smem, size = 0x18, scoped, tag = 'DMA stride descriptor']
          %s409 = sand.u32 %s26, 1
          %s410 = scalar_lea.sflag [#allocation7], %s409
          %s411 = sand.u32 %s76, 1
          %s412 = smul.addr %s411, 256
          %s413 = scalar_lea.vmem [#allocation6], %s412
          %s414 = smul.u32 32, %s34
          %s416 = ssub.s32 4096, 4096
          %417 = vsyncadd %s410, %s416
          %s418 = smul.addr %s414, 64
          %s419 = scalar_lea.hbm %s1, %s418
          %s421 = sshll.u32 1, 14
          %s422 = sxor.u32 4294967295, %s421
          %s424 = sld [smem:[#allocation0]]
          %s425 = sadd.s32 2, %s424
          %s427 = sshll.u32 7, 26
          %s428 = sxor.u32 4294967295, %s427
          %s429 = sand.u32 0, %s428
          %s430 = sshll.u32 %s425, 26
          %s431 = sor.u32 %s429, %s430
          %s432 = sshll.u32 %s413, 4
          %s433 = int_to_ptr.vmem [resolvable:$true] %s432
          %439 = sst [smem:[#allocation13]] 8192
          %s440 = scalar_lea.smem [#allocation13], 1
          %441 = sst [smem:[%s440]] 2048
          %s442 = scalar_lea.smem [#allocation13], 2
          %443 = sst [smem:[%s442]] 32
          %s444 = scalar_lea.smem [#allocation13], 3
          %445 = sst [smem:[%s444]] 64
          %s446 = scalar_lea.smem [#allocation13], 4
          %447 = sst [smem:[%s446]] 64
          %s448 = scalar_lea.smem [#allocation13], 5
          %449 = sst [smem:[%s448]] 4
          %451 = dma.general %s419, 4096, %s433, %s410, [#allocation12], [#allocation13], %s431, 0
        $region60: #{tpu_custom_call.1} parent=51 // pred_fallthru
          _
      $region52: #{tpu_custom_call.1} parent=5 // pred_fallthru
        _
      %p452 = scmp.le.s32.totalorder 1, %s26
      %p453 = scmp.lt.s32.totalorder %s26, 9
      %p454 = pnand %p452, %p453
      %p455 = pneg %p454
      // Predicated region
      $region61: #{tpu_custom_call.1} parent=5 // pred_check
        _
      $region62: #{tpu_custom_call.1} parent=5 // pred_check_branch
        %457 = sbr.rel (%p454) target = $region64
      $region63: #{tpu_custom_call.1} parent=5 // pred_region
        %s458 = ssub.s32 %s26, 1
        %s459 = sand.u32 %s53, 1
        %s460 = scalar_lea.sflag [#allocation5], %s459
        %s461 = sand.u32 %s53, 1
        %s462 = smul.addr %s461, 64
        %s463 = scalar_lea.vmem [#allocation4], %s462
        // Predicated region
        $region65: #{tpu_custom_call.1} parent=63 // pred_check
          %p464 = pneg %p66
        $region66: #{tpu_custom_call.1} parent=63 // pred_check_branch
          %466 = sbr.rel (%p464) target = $region68
        $region67: #{tpu_custom_call.1} parent=63 // pred_region
          %467 = dma.done %s460, 1024
        $region68: #{tpu_custom_call.1} parent=63 // pred_fallthru
          _
        %s468 = sand.u32 %s31, 1
        %s469 = scalar_lea.sflag [#allocation7], %s468
        %s470 = sand.u32 %s79, 1
        %s471 = smul.addr %s470, 256
        %s472 = scalar_lea.vmem [#allocation6], %s471
        // Predicated region
        $region69: #{tpu_custom_call.1} parent=63 // pred_check
          %p473 = pneg %p92
        $region70: #{tpu_custom_call.1} parent=63 // pred_check_branch
          %475 = sbr.rel (%p473) target = $region72
        $region71: #{tpu_custom_call.1} parent=63 // pred_region
          %476 = dma.done %s469, 4096
        $region72: #{tpu_custom_call.1} parent=63 // pred_fallthru
          _
        // Predicated region
        $region73: #{tpu_custom_call.1} parent=63 // pred_check
          %p477 = pneg %p134
        $region74: #{tpu_custom_call.1} parent=63 // pred_check_branch
          %479 = sbr.rel (%p477) target = $region76
        $region75: #{tpu_custom_call.1} parent=63 // pred_region
          %480 = dma.done [#allocation7], 4096
        $region76: #{tpu_custom_call.1} parent=63 // pred_fallthru
          _
        // Predicated region
        $region77: #{tpu_custom_call.1} parent=63 // pred_check
          %p481 = pneg %p176
        $region78: #{tpu_custom_call.1} parent=63 // pred_check_branch
          %483 = sbr.rel (%p481) target = $region80
        $region79: #{tpu_custom_call.1} parent=63 // pred_region
          %484 = dma.done [#allocation10], 8192
        $region80: #{tpu_custom_call.1} parent=63 // pred_fallthru
          _
        // Predicated region
        $region81: #{tpu_custom_call.1} parent=63 // pred_check
          %p485 = pneg %p218
        $region82: #{tpu_custom_call.1} parent=63 // pred_check_branch
          %487 = sbr.rel (%p485) target = $region84
        $region83: #{tpu_custom_call.1} parent=63 // pred_region
          %488 = dma.done [#allocation10], 32768
        $region84: #{tpu_custom_call.1} parent=63 // pred_fallthru
          _
        %s489 = sand.u32 %s53, 1
        %s490 = scalar_lea.sflag [#allocation5], %s489
        %s491 = sand.u32 %s53, 1
        %s492 = smul.addr %s491, 64
        %s493 = scalar_lea.vmem [#allocation4], %s492
        %p494 = pneg %p66
        %p495 = pneg %p63
        %s496 = sand.u32 %s31, 1
        %s497 = scalar_lea.sflag [#allocation7], %s496
        %s498 = sand.u32 %s79, 1
        %s499 = smul.addr %s498, 256
        %s500 = scalar_lea.vmem [#allocation6], %s499
        %p501 = pneg %p92
        %p502 = pneg %p89
        %p503 = pneg %p113
        %p504 = pneg %p110
        %p505 = pneg %p134
        %p506 = pneg %p131
        %p507 = pneg %p155
        %p508 = pneg %p152
        %p509 = pneg %p176
        %p510 = pneg %p173
        %p511 = pneg %p197
        %p512 = pneg %p194
        %p513 = pneg %p218
        %p514 = pneg %p215
        %p515 = pneg %p239
        %p516 = pneg %p236
        %p517 = pneg %p260
        %p518 = pneg %p257
        %p519 = pneg %p281
        %p520 = pneg %p278
        %p521 = pneg %p307
        %p522 = pneg %p304
        %p523 = scmp.lt.s32.totalorder %s35, 1
        %s524 = scalar_select %p523, %s35, 1
        %s525 = smul.addr %s524, 4
        %s526 = smul.addr %s525, 8
        %s527 = scalar_lea.vmem %s11, %s526
        %s528 = smul.u32 2, %s36
        %s529 = smul.u32 32, %s36
        %p530 = scmp.lt.s32.totalorder %s35, 1
        %s531 = scalar_select %p530, %s35, 1
        %s532 = smul.addr %s531, 4
        %s533 = smul.addr %s532, 8
        %s534 = scalar_lea.vmem %s11, %s533
        %p536 = scmp.eq.s32.totalorder %s36, 0
        // Predicated region
        $region85: #{tpu_custom_call.1} parent=63 // pred_check
          %p537 = pneg %p536
        $region86: #{tpu_custom_call.1} parent=63 // pred_check_branch
          %539 = sbr.rel (%p537) target = $region88
        $region87: #{tpu_custom_call.1} parent=63 // pred_region
          %540 = vst [vmem:[#allocation2] sm:$0xff] 0.0
          %541 = vst [vmem:[#allocation2 + $0x8] sm:$0xff] 0.0
          %542 = vst [vmem:[#allocation2 + $0x10] sm:$0xff] 0.0
          %543 = vst [vmem:[#allocation2 + $0x18] sm:$0xff] 0.0
          %544 = vst [vmem:[#allocation2 + $0x20] sm:$0xff] 0.0
          %545 = vst [vmem:[#allocation2 + $0x28] sm:$0xff] 0.0
          %546 = vst [vmem:[#allocation2 + $0x30] sm:$0xff] 0.0
          %547 = vst [vmem:[#allocation2 + $0x38] sm:$0x7f] 0.0
        $region88: #{tpu_custom_call.1} parent=63 // pred_fallthru
          _
        %v548 = vld [vmem:[%s463] sm:$0xff]
        %v549 = vld [vmem:[%s463 + $0x8] sm:$0xff]
        %v550 = vld [vmem:[%s463 + $0x10] sm:$0xff]
        %v551 = vld [vmem:[%s463 + $0x18] sm:$0xff]
        %v552 = vld [vmem:[%s463 + $0x20] sm:$0xff]
        %v553 = vld [vmem:[%s463 + $0x28] sm:$0xff]
        %v554 = vld [vmem:[%s463 + $0x30] sm:$0xff]
        %v555 = vld [vmem:[%s463 + $0x38] sm:$0xff]
        %v556 = vld [vmem:[%s472] sm:$0xf]
        %v557 = vld [vmem:[%s472 + $0x4] sm:$0xf]
        %v558 = vld [vmem:[%s472 + $0x8] sm:$0xf]
        %v559 = vld [vmem:[%s472 + $0xc] sm:$0xf]
        %v560 = vld [vmem:[%s472 + $0x10] sm:$0xf]
        %v561 = vld [vmem:[%s472 + $0x14] sm:$0xf]
        %v562 = vld [vmem:[%s472 + $0x18] sm:$0xf]
        %v563 = vld [vmem:[%s472 + $0x1c] sm:$0xf]
        %v564 = vld [vmem:[%s472 + $0x20] sm:$0xf]
        %v565 = vld [vmem:[%s472 + $0x24] sm:$0xf]
        %v566 = vld [vmem:[%s472 + $0x28] sm:$0xf]
        %v567 = vld [vmem:[%s472 + $0x2c] sm:$0xf]
        %v568 = vld [vmem:[%s472 + $0x30] sm:$0xf]
        %v569 = vld [vmem:[%s472 + $0x34] sm:$0xf]
        %v570 = vld [vmem:[%s472 + $0x38] sm:$0xf]
        %v571 = vld [vmem:[%s472 + $0x3c] sm:$0xf]
        %v572 = vld [vmem:[%s472 + $0x40] sm:$0xf]
        %v573 = vld [vmem:[%s472 + $0x44] sm:$0xf]
        %v574 = vld [vmem:[%s472 + $0x48] sm:$0xf]
        %v575 = vld [vmem:[%s472 + $0x4c] sm:$0xf]
        %v576 = vld [vmem:[%s472 + $0x50] sm:$0xf]
        %v577 = vld [vmem:[%s472 + $0x54] sm:$0xf]
        %v578 = vld [vmem:[%s472 + $0x58] sm:$0xf]
        %v579 = vld [vmem:[%s472 + $0x5c] sm:$0xf]
        %v580 = vld [vmem:[%s472 + $0x60] sm:$0xf]
        %v581 = vld [vmem:[%s472 + $0x64] sm:$0xf]
        %v582 = vld [vmem:[%s472 + $0x68] sm:$0xf]
        %v583 = vld [vmem:[%s472 + $0x6c] sm:$0xf]
        %v584 = vld [vmem:[%s472 + $0x70] sm:$0xf]
        %v585 = vld [vmem:[%s472 + $0x74] sm:$0xf]
        %v586 = vld [vmem:[%s472 + $0x78] sm:$0xf]
        %v587 = vld [vmem:[%s472 + $0x7c] sm:$0xf]
        %v588 = vld [vmem:[%s472 + $0x80] sm:$0xf]
        %v589 = vld [vmem:[%s472 + $0x84] sm:$0xf]
        %v590 = vld [vmem:[%s472 + $0x88] sm:$0xf]
        %v591 = vld [vmem:[%s472 + $0x8c] sm:$0xf]
        %v592 = vld [vmem:[%s472 + $0x90] sm:$0xf]
        %v593 = vld [vmem:[%s472 + $0x94] sm:$0xf]
        %v594 = vld [vmem:[%s472 + $0x98] sm:$0xf]
        %v595 = vld [vmem:[%s472 + $0x9c] sm:$0xf]
        %v596 = vld [vmem:[%s472 + $0xa0] sm:$0xf]
        %v597 = vld [vmem:[%s472 + $0xa4] sm:$0xf]
        %v598 = vld [vmem:[%s472 + $0xa8] sm:$0xf]
        %v599 = vld [vmem:[%s472 + $0xac] sm:$0xf]
        %v600 = vld [vmem:[%s472 + $0xb0] sm:$0xf]
        %v601 = vld [vmem:[%s472 + $0xb4] sm:$0xf]
        %v602 = vld [vmem:[%s472 + $0xb8] sm:$0xf]
        %v603 = vld [vmem:[%s472 + $0xbc] sm:$0xf]
        %v604 = vld [vmem:[%s472 + $0xc0] sm:$0xf]
        %v605 = vld [vmem:[%s472 + $0xc4] sm:$0xf]
        %v606 = vld [vmem:[%s472 + $0xc8] sm:$0xf]
        %v607 = vld [vmem:[%s472 + $0xcc] sm:$0xf]
        %v608 = vld [vmem:[%s472 + $0xd0] sm:$0xf]
        %v609 = vld [vmem:[%s472 + $0xd4] sm:$0xf]
        %v610 = vld [vmem:[%s472 + $0xd8] sm:$0xf]
        %v611 = vld [vmem:[%s472 + $0xdc] sm:$0xf]
        %v612 = vld [vmem:[%s472 + $0xe0] sm:$0xf]
        %v613 = vld [vmem:[%s472 + $0xe4] sm:$0xf]
        %v614 = vld [vmem:[%s472 + $0xe8] sm:$0xf]
        %v615 = vld [vmem:[%s472 + $0xec] sm:$0xf]
        %v616 = vld [vmem:[%s472 + $0xf0] sm:$0xf]
        %v617 = vld [vmem:[%s472 + $0xf4] sm:$0xf]
        %v618 = vld [vmem:[%s472 + $0xf8] sm:$0xf]
        %v619 = vld [vmem:[%s472 + $0xfc] sm:$0xf]
        %v620 = vld [vmem:[#allocation2] sm:$0xff]
        %v621 = vld [vmem:[#allocation2 + $0x8] sm:$0xff]
        %v622 = vld [vmem:[#allocation2 + $0x10] sm:$0xff]
        %v623 = vld [vmem:[#allocation2 + $0x18] sm:$0xff]
        %v624 = vld [vmem:[#allocation2 + $0x20] sm:$0xff]
        %v625 = vld [vmem:[#allocation2 + $0x28] sm:$0xff]
        %v626 = vld [vmem:[#allocation2 + $0x30] sm:$0xff]
        %v627 = vld [vmem:[#allocation2 + $0x38] sm:$0x7f]
        %v636 = vunpack.c.l.b16 %v548
        %v637 = vunpack.c.h.b16 %v548
        %v638 = vunpack.c.l.b16 %v549
        %v639 = vunpack.c.h.b16 %v549
        %v640 = vunpack.c.l.b16 %v550
        %v641 = vunpack.c.h.b16 %v550
        %v642 = vunpack.c.l.b16 %v551
        %v643 = vunpack.c.h.b16 %v551
        %v644 = vunpack.c.l.b16 %v552
        %v645 = vunpack.c.h.b16 %v552
        %v646 = vunpack.c.l.b16 %v553
        %v647 = vunpack.c.h.b16 %v553
        %v648 = vunpack.c.l.b16 %v554
        %v649 = vunpack.c.h.b16 %v554
        %v650 = vunpack.c.l.b16 %v555
        %v651 = vunpack.c.h.b16 %v555
        %v652 = vpack.c.b16 %v638, %v636
        %v653 = vpack.c.b16 %v639, %v637
        %v654 = vpack.c.b16 %v642, %v640
        %v655 = vpack.c.b16 %v643, %v641
        %v656 = vpack.c.b16 %v646, %v644
        %v657 = vpack.c.b16 %v647, %v645
        %v658 = vpack.c.b16 %v650, %v648
        %v659 = vpack.c.b16 %v651, %v649
        %vm660 = vsmask.f32 7424
        %v662 = vshrl.u32 %v652, 16
        %v664 = vshll.u32 %v652, 16
        %v666 = vrot.slane %v664, 1
        %v667 = vor.u32 %v662, %v666
        %v669 = vshll.u32 %v654, 16
        %v671 = vrot.slane %v669, 1
        %v672 = vsel %vm660, %v667, %v671
        %v674 = vshrl.u32 %v653, 16
        %v676 = vshll.u32 %v653, 16
        %v678 = vrot.slane %v676, 1
        %v679 = vor.u32 %v674, %v678
        %v681 = vshll.u32 %v655, 16
        %v683 = vrot.slane %v681, 1
        %v684 = vsel %vm660, %v679, %v683
        %v685 = vshrl.u32 %v654, 16
        %v687 = vor.u32 %v685, %v671
        %v689 = vshll.u32 %v656, 16
        %v691 = vrot.slane %v689, 1
        %v692 = vsel %vm660, %v687, %v691
        %v693 = vshrl.u32 %v655, 16
        %v695 = vor.u32 %v693, %v683
        %v697 = vshll.u32 %v657, 16
        %v699 = vrot.slane %v697, 1
        %v700 = vsel %vm660, %v695, %v699
        %v701 = vshrl.u32 %v656, 16
        %v703 = vor.u32 %v701, %v691
        %v705 = vshll.u32 %v658, 16
        %v707 = vrot.slane %v705, 1
        %v708 = vsel %vm660, %v703, %v707
        %v709 = vshrl.u32 %v657, 16
        %v711 = vor.u32 %v709, %v699
        %v713 = vshll.u32 %v659, 16
        %v715 = vrot.slane %v713, 1
        %v716 = vsel %vm660, %v711, %v715
        %v717 = vshrl.u32 %v658, 16
        %v719 = vor.u32 %v717, %v707
        %v720 = vshrl.u32 %v659, 16
        %v722 = vor.u32 %v720, %v715
        %v763 = vunpack.c.l.b16 %v588
        %v764 = vunpack.c.l.b16 %v589
        %v765 = vunpack.c.l.b16 %v590
        %v766 = vunpack.c.l.b16 %v591
        %v767 = vunpack.c.l.b16 %v592
        %v768 = vunpack.c.l.b16 %v593
        %v769 = vunpack.c.l.b16 %v594
        %v770 = vunpack.c.l.b16 %v595
        %v771 = vunpack.c.l.b16 %v596
        %v772 = vunpack.c.l.b16 %v597
        %v773 = vunpack.c.l.b16 %v598
        %v774 = vunpack.c.l.b16 %v599
        %v775 = vunpack.c.l.b16 %v600
        %v776 = vunpack.c.l.b16 %v601
        %v777 = vunpack.c.l.b16 %v602
        %v778 = vunpack.c.l.b16 %v603
        %v779 = vunpack.c.l.b16 %v604
        %v780 = vunpack.c.l.b16 %v605
        %v781 = vunpack.c.l.b16 %v606
        %v782 = vunpack.c.l.b16 %v607
        %v783 = vunpack.c.l.b16 %v608
        %v784 = vunpack.c.l.b16 %v609
        %v785 = vunpack.c.l.b16 %v610
        %v786 = vunpack.c.l.b16 %v611
        %v787 = vunpack.c.l.b16 %v612
        %v788 = vunpack.c.l.b16 %v613
        %v789 = vunpack.c.l.b16 %v614
        %v790 = vunpack.c.l.b16 %v615
        %v791 = vunpack.c.l.b16 %v616
        %v792 = vunpack.c.l.b16 %v617
        %v793 = vunpack.c.l.b16 %v618
        %v794 = vunpack.c.l.b16 %v619
        %v795 = vpack.c.b16 %v764, %v763
        %v796 = vpack.c.b16 %v766, %v765
        %v797 = vpack.c.b16 %v768, %v767
        %v798 = vpack.c.b16 %v770, %v769
        %v799 = vpack.c.b16 %v772, %v771
        %v800 = vpack.c.b16 %v774, %v773
        %v801 = vpack.c.b16 %v776, %v775
        %v802 = vpack.c.b16 %v778, %v777
        %v803 = vpack.c.b16 %v780, %v779
        %v804 = vpack.c.b16 %v782, %v781
        %v805 = vpack.c.b16 %v784, %v783
        %v806 = vpack.c.b16 %v786, %v785
        %v807 = vpack.c.b16 %v788, %v787
        %v808 = vpack.c.b16 %v790, %v789
        %v809 = vpack.c.b16 %v792, %v791
        %v810 = vpack.c.b16 %v794, %v793
        %827 = vmatprep.subr.bf16.mxu0 0
        %828 = vmatpush1.bf16.msra.mxu0 %v795
        %829 = vmatprep.subr.bf16.mxu0 0
        %830 = vmatpush1.bf16.msra.mxu0 %v796
        %831 = vmatprep.subr.bf16.mxu0 0
        %832 = vmatpush1.bf16.msra.mxu0 %v797
        %833 = vmatprep.subr.bf16.mxu0 0
        %834 = vmatpush1.bf16.msra.mxu0 %v798
        %835 = vmatprep.subr.bf16.mxu0 0
        %836 = vmatpush1.bf16.msra.mxu0 %v799
        %837 = vmatprep.subr.bf16.mxu0 0
        %838 = vmatpush1.bf16.msra.mxu0 %v800
        %839 = vmatprep.subr.bf16.mxu0 0
        %840 = vmatpush1.bf16.msra.mxu0 %v801
        %841 = vmatprep.subr.bf16.mxu0 0
        %842 = vmatpush1.bf16.msra.mxu0 %v802
        %843 = vmatprep.subr.bf16.mxu0 0
        %844 = vmatpush1.bf16.msra.mxu0 %v803
        %845 = vmatprep.subr.bf16.mxu0 0
        %846 = vmatpush1.bf16.msra.mxu0 %v804
        %847 = vmatprep.subr.bf16.mxu0 0
        %848 = vmatpush1.bf16.msra.mxu0 %v805
        %849 = vmatprep.subr.bf16.mxu0 0
        %850 = vmatpush1.bf16.msra.mxu0 %v806
        %851 = vmatprep.subr.bf16.mxu0 0
        %852 = vmatpush1.bf16.msra.mxu0 %v807
        %853 = vmatprep.subr.bf16.mxu0 0
        %854 = vmatpush1.bf16.msra.mxu0 %v808
        %855 = vmatprep.subr.bf16.mxu0 0
        %856 = vmatpush1.bf16.msra.mxu0 %v809
        %857 = vmatprep.subr.bf16.mxu0 0
        %858 = vmatpush1.bf16.msra.mxu0 %v810
        %859 = vmatprep.mubr.bf16.mxu0 %v684
        %860 = vmatmul.mubr.bf16.gmra.mrb[0].mxu0 %v672
        %v861 = vpop.f32.mrb[0].mxu0
        %v862 = vadd.f32 0.0, %v861
        %v863 = vpop.f32.mrb[0].mxu0
        %v864 = vpop.f32.mrb[0].mxu0
        %v865 = vadd.f32 0.0, %v864
        %v866 = vpop.f32.mrb[0].mxu0
        %867 = vmatprep.mubr.bf16.mxu0 %v700
        %868 = vmatmul.mubr.bf16.gmra.mrb[0].mxu0 %v692
        %v869 = vpop.f32.mrb[0].mxu0
        %v870 = vadd.f32 0.0, %v869
        %v871 = vpop.f32.mrb[0].mxu0
        %v872 = vpop.f32.mrb[0].mxu0
        %v873 = vadd.f32 0.0, %v872
        %v874 = vpop.f32.mrb[0].mxu0
        %875 = vmatprep.mubr.bf16.mxu0 %v716
        %876 = vmatmul.mubr.bf16.gmra.mrb[0].mxu0 %v708
        %v877 = vpop.f32.mrb[0].mxu0
        %v878 = vadd.f32 0.0, %v877
        %v879 = vpop.f32.mrb[0].mxu0
        %v880 = vpop.f32.mrb[0].mxu0
        %v881 = vadd.f32 0.0, %v880
        %v882 = vpop.f32.mrb[0].mxu0
        %883 = vmatprep.mubr.bf16.mxu0 %v722
        %884 = vmatmul.mubr.bf16.gmra.mrb[0].mxu0 %v719
        %v885 = vpop.f32.mrb[0].mxu0
        %v886 = vadd.f32 0.0, %v885
        %v887 = vpop.f32.mrb[0].mxu0
        %v888 = vpop.f32.mrb[0].mxu0
        %v889 = vadd.f32 0.0, %v888
        %v890 = vpop.f32.mrb[0].mxu0
        %891 = vdwg.mxu0
        %v932 = vunpack.c.l.b16 %v556
        %v933 = vunpack.c.l.b16 %v557
        %v934 = vunpack.c.l.b16 %v558
        %v935 = vunpack.c.l.b16 %v559
        %v936 = vunpack.c.l.b16 %v560
        %v937 = vunpack.c.l.b16 %v561
        %v938 = vunpack.c.l.b16 %v562
        %v939 = vunpack.c.l.b16 %v563
        %v940 = vunpack.c.l.b16 %v564
        %v941 = vunpack.c.l.b16 %v565
        %v942 = vunpack.c.l.b16 %v566
        %v943 = vunpack.c.l.b16 %v567
        %v944 = vunpack.c.l.b16 %v568
        %v945 = vunpack.c.l.b16 %v569
        %v946 = vunpack.c.l.b16 %v570
        %v947 = vunpack.c.l.b16 %v571
        %v948 = vunpack.c.l.b16 %v572
        %v949 = vunpack.c.l.b16 %v573
        %v950 = vunpack.c.l.b16 %v574
        %v951 = vunpack.c.l.b16 %v575
        %v952 = vunpack.c.l.b16 %v576
        %v953 = vunpack.c.l.b16 %v577
        %v954 = vunpack.c.l.b16 %v578
        %v955 = vunpack.c.l.b16 %v579
        %v956 = vunpack.c.l.b16 %v580
        %v957 = vunpack.c.l.b16 %v581
        %v958 = vunpack.c.l.b16 %v582
        %v959 = vunpack.c.l.b16 %v583
        %v960 = vunpack.c.l.b16 %v584
        %v961 = vunpack.c.l.b16 %v585
        %v962 = vunpack.c.l.b16 %v586
        %v963 = vunpack.c.l.b16 %v587
        %v964 = vpack.c.b16 %v933, %v932
        %v965 = vpack.c.b16 %v935, %v934
        %v966 = vpack.c.b16 %v937, %v936
        %v967 = vpack.c.b16 %v939, %v938
        %v968 = vpack.c.b16 %v941, %v940
        %v969 = vpack.c.b16 %v943, %v942
        %v970 = vpack.c.b16 %v945, %v944
        %v971 = vpack.c.b16 %v947, %v946
        %v972 = vpack.c.b16 %v949, %v948
        %v973 = vpack.c.b16 %v951, %v950
        %v974 = vpack.c.b16 %v953, %v952
        %v975 = vpack.c.b16 %v955, %v954
        %v976 = vpack.c.b16 %v957, %v956
        %v977 = vpack.c.b16 %v959, %v958
        %v978 = vpack.c.b16 %v961, %v960
        %v979 = vpack.c.b16 %v963, %v962
        %996 = vmatprep.subr.bf16.mxu0 0
        %997 = vmatpush1.bf16.msra.mxu0 %v964
        %998 = vmatprep.subr.bf16.mxu0 0
        %999 = vmatpush1.bf16.msra.mxu0 %v965
        %1000 = vmatprep.subr.bf16.mxu0 0
        %1001 = vmatpush1.bf16.msra.mxu0 %v966
        %1002 = vmatprep.subr.bf16.mxu0 0
        %1003 = vmatpush1.bf16.msra.mxu0 %v967
        %1004 = vmatprep.subr.bf16.mxu0 0
        %1005 = vmatpush1.bf16.msra.mxu0 %v968
        %1006 = vmatprep.subr.bf16.mxu0 0
        %1007 = vmatpush1.bf16.msra.mxu0 %v969
        %1008 = vmatprep.subr.bf16.mxu0 0
        %1009 = vmatpush1.bf16.msra.mxu0 %v970
        %1010 = vmatprep.subr.bf16.mxu0 0
        %1011 = vmatpush1.bf16.msra.mxu0 %v971
        %1012 = vmatprep.subr.bf16.mxu0 0
        %1013 = vmatpush1.bf16.msra.mxu0 %v972
        %1014 = vmatprep.subr.bf16.mxu0 0
        %1015 = vmatpush1.bf16.msra.mxu0 %v973
        %1016 = vmatprep.subr.bf16.mxu0 0
        %1017 = vmatpush1.bf16.msra.mxu0 %v974
        %1018 = vmatprep.subr.bf16.mxu0 0
        %1019 = vmatpush1.bf16.msra.mxu0 %v975
        %1020 = vmatprep.subr.bf16.mxu0 0
        %1021 = vmatpush1.bf16.msra.mxu0 %v976
        %1022 = vmatprep.subr.bf16.mxu0 0
        %1023 = vmatpush1.bf16.msra.mxu0 %v977
        %1024 = vmatprep.subr.bf16.mxu0 0
        %1025 = vmatpush1.bf16.msra.mxu0 %v978
        %1026 = vmatprep.subr.bf16.mxu0 0
        %1027 = vmatpush1.bf16.msra.mxu0 %v979
        %1028 = vmatprep.mubr.bf16.mxu0 %v653
        %1029 = vmatmul.mubr.bf16.gmra.mrb[0].mxu0 %v652
        %v1030 = vpop.f32.mrb[0].mxu0
        %v1031 = vadd.f32 %v862, %v1030
        %v1032 = vpop.f32.mrb[0].mxu0
        %v1033 = vpop.f32.mrb[0].mxu0
        %v1034 = vadd.f32 %v865, %v1033
        %v1035 = vpop.f32.mrb[0].mxu0
        %1036 = vmatprep.mubr.bf16.mxu0 %v655
        %1037 = vmatmul.mubr.bf16.gmra.mrb[0].mxu0 %v654
        %v1038 = vpop.f32.mrb[0].mxu0
        %v1039 = vadd.f32 %v870, %v1038
        %v1040 = vpop.f32.mrb[0].mxu0
        %v1041 = vpop.f32.mrb[0].mxu0
        %v1042 = vadd.f32 %v873, %v1041
        %v1043 = vpop.f32.mrb[0].mxu0
        %1044 = vmatprep.mubr.bf16.mxu0 %v657
        %1045 = vmatmul.mubr.bf16.gmra.mrb[0].mxu0 %v656
        %v1046 = vpop.f32.mrb[0].mxu0
        %v1047 = vadd.f32 %v878, %v1046
        %v1048 = vpop.f32.mrb[0].mxu0
        %v1049 = vpop.f32.mrb[0].mxu0
        %v1050 = vadd.f32 %v881, %v1049
        %v1051 = vpop.f32.mrb[0].mxu0
        %1052 = vmatprep.mubr.bf16.mxu0 %v659
        %1053 = vmatmul.mubr.bf16.gmra.mrb[0].mxu0 %v658
        %v1054 = vpop.f32.mrb[0].mxu0
        %v1055 = vadd.f32 %v886, %v1054
        %v1056 = vpop.f32.mrb[0].mxu0
        %v1057 = vpop.f32.mrb[0].mxu0
        %v1058 = vadd.f32 %v889, %v1057
        %v1059 = vpop.f32.mrb[0].mxu0
        %1060 = vdwg.mxu0
        %v1061 = vadd.f32 %v620, %v1031
        %v1062 = vadd.f32 %v621, %v1034
        %v1063 = vadd.f32 %v622, %v1039
        %v1064 = vadd.f32 %v623, %v1042
        %v1065 = vadd.f32 %v624, %v1047
        %v1066 = vadd.f32 %v625, %v1050
        %v1067 = vadd.f32 %v626, %v1055
        %v1068 = vadd.f32 %v627, %v1058
        %1069 = vst [vmem:[#allocation2] sm:$0xff] %v1061
        %1070 = vst [vmem:[#allocation2 + $0x8] sm:$0xff] %v1062
        %1071 = vst [vmem:[#allocation2 + $0x10] sm:$0xff] %v1063
        %1072 = vst [vmem:[#allocation2 + $0x18] sm:$0xff] %v1064
        %1073 = vst [vmem:[#allocation2 + $0x20] sm:$0xff] %v1065
        %1074 = vst [vmem:[#allocation2 + $0x28] sm:$0xff] %v1066
        %1075 = vst [vmem:[#allocation2 + $0x30] sm:$0xff] %v1067
        %1076 = vst [vmem:[#allocation2 + $0x38] sm:$0x7f] %v1068
        %p1077 = scmp.eq.s32.totalorder %s36, 3
        // Predicated region
        $region89: #{tpu_custom_call.1} parent=63 // pred_check
          %p1078 = pneg %p1077
        $region90: #{tpu_custom_call.1} parent=63 // pred_check_branch
          %1080 = sbr.rel (%p1078) target = $region92
        $region91: #{tpu_custom_call.1} parent=63 // pred_region
          %v1081 = vld [vmem:[#allocation2] sm:$0xff]
          %v1082 = vld [vmem:[#allocation2 + $0x8] sm:$0xff]
          %v1083 = vld [vmem:[#allocation2 + $0x10] sm:$0xff]
          %v1084 = vld [vmem:[#allocation2 + $0x18] sm:$0xff]
          %v1085 = vld [vmem:[#allocation2 + $0x20] sm:$0xff]
          %v1086 = vld [vmem:[#allocation2 + $0x28] sm:$0xff]
          %v1087 = vld [vmem:[#allocation2 + $0x30] sm:$0xff]
          %v1088 = vld [vmem:[#allocation2 + $0x38] sm:$0x7f]
          %v1089 = vld [vmem:[%s2] sm:$0x1]
          %v1091 = vlaneseq
          %v1092 = vshrl.u32 %v1091, 7
          %v1093 = vsub.s32 0, %v1092
          %v1094 = vrot.slane %v1089, %v1093
          %v1096 = vadd.f32 %v1081, %v1094
          %v1097 = vadd.f32 %v1082, %v1094
          %v1098 = vadd.f32 %v1083, %v1094
          %v1099 = vadd.f32 %v1084, %v1094
          %v1100 = vadd.f32 %v1085, %v1094
          %v1101 = vadd.f32 %v1086, %v1094
          %v1102 = vadd.f32 %v1087, %v1094
          %v1103 = vadd.f32 %v1088, %v1094
          %v1104 = vmax.f32 %v1096, 0.0
          %v1105 = vmax.f32 %v1097, 0.0
          %v1106 = vmax.f32 %v1098, 0.0
          %v1107 = vmax.f32 %v1099, 0.0
          %v1108 = vmax.f32 %v1100, 0.0
          %v1109 = vmax.f32 %v1101, 0.0
          %v1110 = vmax.f32 %v1102, 0.0
          %v1111 = vmax.f32 %v1103, 0.0
          %v1112 = vpack.c.bf16 %v1105, %v1104
          %v1113 = vpack.c.bf16 %v1107, %v1106
          %v1114 = vpack.c.bf16 %v1109, %v1108
          %v1115 = vpack.c.bf16 %v1111, %v1110
          %v1116 = vld [vmem:[#allocation8] sm:$0xf]
          %v1117 = vld [vmem:[#allocation8 + $0x4] sm:$0xf]
          %v1118 = vld [vmem:[#allocation8 + $0x8] sm:$0xf]
          %v1119 = vld [vmem:[#allocation8 + $0xc] sm:$0xf]
          %v1120 = vld [vmem:[#allocation8 + $0x10] sm:$0xf]
          %v1121 = vld [vmem:[#allocation8 + $0x14] sm:$0xf]
          %v1122 = vld [vmem:[#allocation8 + $0x18] sm:$0xf]
          %v1123 = vld [vmem:[#allocation8 + $0x1c] sm:$0xf]
          %v1124 = vld [vmem:[#allocation8 + $0x20] sm:$0xf]
          %v1125 = vld [vmem:[#allocation8 + $0x24] sm:$0xf]
          %v1126 = vld [vmem:[#allocation8 + $0x28] sm:$0xf]
          %v1127 = vld [vmem:[#allocation8 + $0x2c] sm:$0xf]
          %v1128 = vld [vmem:[#allocation8 + $0x30] sm:$0xf]
          %v1129 = vld [vmem:[#allocation8 + $0x34] sm:$0xf]
          %v1130 = vld [vmem:[#allocation8 + $0x38] sm:$0xf]
          %v1131 = vld [vmem:[#allocation8 + $0x3c] sm:$0xf]
          %v1132 = vld [vmem:[#allocation8 + $0x40] sm:$0xf]
          %v1133 = vld [vmem:[#allocation8 + $0x44] sm:$0xf]
          %v1134 = vld [vmem:[#allocation8 + $0x48] sm:$0xf]
          %v1135 = vld [vmem:[#allocation8 + $0x4c] sm:$0xf]
          %v1136 = vld [vmem:[#allocation8 + $0x50] sm:$0xf]
          %v1137 = vld [vmem:[#allocation8 + $0x54] sm:$0xf]
          %v1138 = vld [vmem:[#allocation8 + $0x58] sm:$0xf]
          %v1139 = vld [vmem:[#allocation8 + $0x5c] sm:$0xf]
          %v1140 = vld [vmem:[#allocation8 + $0x60] sm:$0xf]
          %v1141 = vld [vmem:[#allocation8 + $0x64] sm:$0xf]
          %v1142 = vld [vmem:[#allocation8 + $0x68] sm:$0xf]
          %v1143 = vld [vmem:[#allocation8 + $0x6c] sm:$0xf]
          %v1144 = vld [vmem:[#allocation8 + $0x70] sm:$0xf]
          %v1145 = vld [vmem:[#allocation8 + $0x74] sm:$0xf]
          %v1146 = vld [vmem:[#allocation8 + $0x78] sm:$0xf]
          %v1147 = vld [vmem:[#allocation8 + $0x7c] sm:$0xf]
          %v1148 = vld [vmem:[#allocation8 + $0x80] sm:$0xf]
          %v1149 = vld [vmem:[#allocation8 + $0x84] sm:$0xf]
          %v1150 = vld [vmem:[#allocation8 + $0x88] sm:$0xf]
          %v1151 = vld [vmem:[#allocation8 + $0x8c] sm:$0xf]
          %v1152 = vld [vmem:[#allocation8 + $0x90] sm:$0xf]
          %v1153 = vld [vmem:[#allocation8 + $0x94] sm:$0xf]
          %v1154 = vld [vmem:[#allocation8 + $0x98] sm:$0xf]
          %v1155 = vld [vmem:[#allocation8 + $0x9c] sm:$0xf]
          %v1156 = vld [vmem:[#allocation8 + $0xa0] sm:$0xf]
          %v1157 = vld [vmem:[#allocation8 + $0xa4] sm:$0xf]
          %v1158 = vld [vmem:[#allocation8 + $0xa8] sm:$0xf]
          %v1159 = vld [vmem:[#allocation8 + $0xac] sm:$0xf]
          %v1160 = vld [vmem:[#allocation8 + $0xb0] sm:$0xf]
          %v1161 = vld [vmem:[#allocation8 + $0xb4] sm:$0xf]
          %v1162 = vld [vmem:[#allocation8 + $0xb8] sm:$0xf]
          %v1163 = vld [vmem:[#allocation8 + $0xbc] sm:$0xf]
          %v1164 = vld [vmem:[#allocation8 + $0xc0] sm:$0xf]
          %v1165 = vld [vmem:[#allocation8 + $0xc4] sm:$0xf]
          %v1166 = vld [vmem:[#allocation8 + $0xc8] sm:$0xf]
          %v1167 = vld [vmem:[#allocation8 + $0xcc] sm:$0xf]
          %v1168 = vld [vmem:[#allocation8 + $0xd0] sm:$0xf]
          %v1169 = vld [vmem:[#allocation8 + $0xd4] sm:$0xf]
          %v1170 = vld [vmem:[#allocation8 + $0xd8] sm:$0xf]
          %v1171 = vld [vmem:[#allocation8 + $0xdc] sm:$0xf]
          %v1172 = vld [vmem:[#allocation8 + $0xe0] sm:$0xf]
          %v1173 = vld [vmem:[#allocation8 + $0xe4] sm:$0xf]
          %v1174 = vld [vmem:[#allocation8 + $0xe8] sm:$0xf]
          %v1175 = vld [vmem:[#allocation8 + $0xec] sm:$0xf]
          %v1176 = vld [vmem:[#allocation8 + $0xf0] sm:$0xf]
          %v1177 = vld [vmem:[#allocation8 + $0xf4] sm:$0xf]
          %v1178 = vld [vmem:[#allocation8 + $0xf8] sm:$0xf]
          %v1179 = vld [vmem:[#allocation8 + $0xfc] sm:$0xf]
          %v1180 = vld [vmem:[%s4] sm:$0x1]
          %v1182 = vunpack.i.l.s16 %v1112
          %v1183 = vunpack.i.h.s16 %v1112
          %v1185 = vunpack.i.l.s16 %v1113
          %v1186 = vunpack.i.h.s16 %v1113
          %v1188 = vunpack.i.l.s16 %v1114
          %v1189 = vunpack.i.h.s16 %v1114
          %v1191 = vunpack.i.l.s16 %v1115
          %v1192 = vunpack.i.h.s16 %v1115
          %v1193 = vpack.c.b16 %v1185, %v1182
          %v1194 = vpack.c.b16 %v1186, %v1183
          %v1195 = vpack.c.b16 %v1191, %v1188
          %v1196 = vpack.c.b16 %v1192, %v1189
          %v1198 = vshrl.u32 %v1193, 16
          %v1200 = vshll.u32 %v1193, 16
          %v1202 = vrot.slane %v1200, 1
          %v1203 = vor.u32 %v1198, %v1202
          %v1205 = vshll.u32 %v1195, 16
          %v1207 = vrot.slane %v1205, 1
          %v1208 = vsel %vm660, %v1203, %v1207
          %v1210 = vshrl.u32 %v1194, 16
          %v1212 = vshll.u32 %v1194, 16
          %v1214 = vrot.slane %v1212, 1
          %v1215 = vor.u32 %v1210, %v1214
          %v1217 = vshll.u32 %v1196, 16
          %v1219 = vrot.slane %v1217, 1
          %v1220 = vsel %vm660, %v1215, %v1219
          %v1221 = vshrl.u32 %v1195, 16
          %v1223 = vor.u32 %v1221, %v1207
          %v1224 = vshrl.u32 %v1196, 16
          %v1226 = vor.u32 %v1224, %v1219
          %v1263 = vunpack.c.l.b16 %v1148
          %v1264 = vunpack.c.l.b16 %v1149
          %v1265 = vunpack.c.l.b16 %v1150
          %v1266 = vunpack.c.l.b16 %v1151
          %v1267 = vunpack.c.l.b16 %v1152
          %v1268 = vunpack.c.l.b16 %v1153
          %v1269 = vunpack.c.l.b16 %v1154
          %v1270 = vunpack.c.l.b16 %v1155
          %v1271 = vunpack.c.l.b16 %v1156
          %v1272 = vunpack.c.l.b16 %v1157
          %v1273 = vunpack.c.l.b16 %v1158
          %v1274 = vunpack.c.l.b16 %v1159
          %v1275 = vunpack.c.l.b16 %v1160
          %v1276 = vunpack.c.l.b16 %v1161
          %v1277 = vunpack.c.l.b16 %v1162
          %v1278 = vunpack.c.l.b16 %v1163
          %v1279 = vunpack.c.l.b16 %v1164
          %v1280 = vunpack.c.l.b16 %v1165
          %v1281 = vunpack.c.l.b16 %v1166
          %v1282 = vunpack.c.l.b16 %v1167
          %v1283 = vunpack.c.l.b16 %v1168
          %v1284 = vunpack.c.l.b16 %v1169
          %v1285 = vunpack.c.l.b16 %v1170
          %v1286 = vunpack.c.l.b16 %v1171
          %v1287 = vunpack.c.l.b16 %v1172
          %v1288 = vunpack.c.l.b16 %v1173
          %v1289 = vunpack.c.l.b16 %v1174
          %v1290 = vunpack.c.l.b16 %v1175
          %v1291 = vunpack.c.l.b16 %v1176
          %v1292 = vunpack.c.l.b16 %v1177
          %v1293 = vunpack.c.l.b16 %v1178
          %v1294 = vunpack.c.l.b16 %v1179
          %v1295 = vpack.c.b16 %v1264, %v1263
          %v1296 = vpack.c.b16 %v1266, %v1265
          %v1297 = vpack.c.b16 %v1268, %v1267
          %v1298 = vpack.c.b16 %v1270, %v1269
          %v1299 = vpack.c.b16 %v1272, %v1271
          %v1300 = vpack.c.b16 %v1274, %v1273
          %v1301 = vpack.c.b16 %v1276, %v1275
          %v1302 = vpack.c.b16 %v1278, %v1277
          %v1303 = vpack.c.b16 %v1280, %v1279
          %v1304 = vpack.c.b16 %v1282, %v1281
          %v1305 = vpack.c.b16 %v1284, %v1283
          %v1306 = vpack.c.b16 %v1286, %v1285
          %v1307 = vpack.c.b16 %v1288, %v1287
          %v1308 = vpack.c.b16 %v1290, %v1289
          %v1309 = vpack.c.b16 %v1292, %v1291
          %v1310 = vpack.c.b16 %v1294, %v1293
          %1327 = vmatprep.subr.bf16.mxu0 0
          %1328 = vmatpush1.bf16.msra.mxu0 %v1295
          %1329 = vmatprep.subr.bf16.mxu0 0
          %1330 = vmatpush1.bf16.msra.mxu0 %v1296
          %1331 = vmatprep.subr.bf16.mxu0 0
          %1332 = vmatpush1.bf16.msra.mxu0 %v1297
          %1333 = vmatprep.subr.bf16.mxu0 0
          %1334 = vmatpush1.bf16.msra.mxu0 %v1298
          %1335 = vmatprep.subr.bf16.mxu0 0
          %1336 = vmatpush1.bf16.msra.mxu0 %v1299
          %1337 = vmatprep.subr.bf16.mxu0 0
          %1338 = vmatpush1.bf16.msra.mxu0 %v1300
          %1339 = vmatprep.subr.bf16.mxu0 0
          %1340 = vmatpush1.bf16.msra.mxu0 %v1301
          %1341 = vmatprep.subr.bf16.mxu0 0
          %1342 = vmatpush1.bf16.msra.mxu0 %v1302
          %1343 = vmatprep.subr.bf16.mxu0 0
          %1344 = vmatpush1.bf16.msra.mxu0 %v1303
          %1345 = vmatprep.subr.bf16.mxu0 0
          %1346 = vmatpush1.bf16.msra.mxu0 %v1304
          %1347 = vmatprep.subr.bf16.mxu0 0
          %1348 = vmatpush1.bf16.msra.mxu0 %v1305
          %1349 = vmatprep.subr.bf16.mxu0 0
          %1350 = vmatpush1.bf16.msra.mxu0 %v1306
          %1351 = vmatprep.subr.bf16.mxu0 0
          %1352 = vmatpush1.bf16.msra.mxu0 %v1307
          %1353 = vmatprep.subr.bf16.mxu0 0
          %1354 = vmatpush1.bf16.msra.mxu0 %v1308
          %1355 = vmatprep.subr.bf16.mxu0 0
          %1356 = vmatpush1.bf16.msra.mxu0 %v1309
          %1357 = vmatprep.subr.bf16.mxu0 0
          %1358 = vmatpush1.bf16.msra.mxu0 %v1310
          %1359 = vmatprep.mubr.bf16.mxu0 %v1220
          %1360 = vmatmul.mubr.bf16.gmra.mrb[0].mxu0 %v1208
          %v1361 = vpop.f32.mrb[0].mxu0
          %v1362 = vadd.f32 0.0, %v1361
          %v1363 = vpop.f32.mrb[0].mxu0
          %v1364 = vpop.f32.mrb[0].mxu0
          %v1365 = vadd.f32 0.0, %v1364
          %v1366 = vpop.f32.mrb[0].mxu0
          %1367 = vmatprep.mubr.bf16.mxu0 %v1226
          %1368 = vmatmul.mubr.bf16.gmra.mrb[0].mxu0 %v1223
          %v1369 = vpop.f32.mrb[0].mxu0
          %v1370 = vadd.f32 0.0, %v1369
          %v1371 = vpop.f32.mrb[0].mxu0
          %v1372 = vpop.f32.mrb[0].mxu0
          %v1373 = vadd.f32 0.0, %v1372
          %v1374 = vpop.f32.mrb[0].mxu0
          %1375 = vdwg.mxu0
          %v1412 = vunpack.c.l.b16 %v1116
          %v1413 = vunpack.c.l.b16 %v1117
          %v1414 = vunpack.c.l.b16 %v1118
          %v1415 = vunpack.c.l.b16 %v1119
          %v1416 = vunpack.c.l.b16 %v1120
          %v1417 = vunpack.c.l.b16 %v1121
          %v1418 = vunpack.c.l.b16 %v1122
          %v1419 = vunpack.c.l.b16 %v1123
          %v1420 = vunpack.c.l.b16 %v1124
          %v1421 = vunpack.c.l.b16 %v1125
          %v1422 = vunpack.c.l.b16 %v1126
          %v1423 = vunpack.c.l.b16 %v1127
          %v1424 = vunpack.c.l.b16 %v1128
          %v1425 = vunpack.c.l.b16 %v1129
          %v1426 = vunpack.c.l.b16 %v1130
          %v1427 = vunpack.c.l.b16 %v1131
          %v1428 = vunpack.c.l.b16 %v1132
          %v1429 = vunpack.c.l.b16 %v1133
          %v1430 = vunpack.c.l.b16 %v1134
          %v1431 = vunpack.c.l.b16 %v1135
          %v1432 = vunpack.c.l.b16 %v1136
          %v1433 = vunpack.c.l.b16 %v1137
          %v1434 = vunpack.c.l.b16 %v1138
          %v1435 = vunpack.c.l.b16 %v1139
          %v1436 = vunpack.c.l.b16 %v1140
          %v1437 = vunpack.c.l.b16 %v1141
          %v1438 = vunpack.c.l.b16 %v1142
          %v1439 = vunpack.c.l.b16 %v1143
          %v1440 = vunpack.c.l.b16 %v1144
          %v1441 = vunpack.c.l.b16 %v1145
          %v1442 = vunpack.c.l.b16 %v1146
          %v1443 = vunpack.c.l.b16 %v1147
          %v1444 = vpack.c.b16 %v1413, %v1412
          %v1445 = vpack.c.b16 %v1415, %v1414
          %v1446 = vpack.c.b16 %v1417, %v1416
          %v1447 = vpack.c.b16 %v1419, %v1418
          %v1448 = vpack.c.b16 %v1421, %v1420
          %v1449 = vpack.c.b16 %v1423, %v1422
          %v1450 = vpack.c.b16 %v1425, %v1424
          %v1451 = vpack.c.b16 %v1427, %v1426
          %v1452 = vpack.c.b16 %v1429, %v1428
          %v1453 = vpack.c.b16 %v1431, %v1430
          %v1454 = vpack.c.b16 %v1433, %v1432
          %v1455 = vpack.c.b16 %v1435, %v1434
          %v1456 = vpack.c.b16 %v1437, %v1436
          %v1457 = vpack.c.b16 %v1439, %v1438
          %v1458 = vpack.c.b16 %v1441, %v1440
          %v1459 = vpack.c.b16 %v1443, %v1442
          %1476 = vmatprep.subr.bf16.mxu0 0
          %1477 = vmatpush1.bf16.msra.mxu0 %v1444
          %1478 = vmatprep.subr.bf16.mxu0 0
          %1479 = vmatpush1.bf16.msra.mxu0 %v1445
          %1480 = vmatprep.subr.bf16.mxu0 0
          %1481 = vmatpush1.bf16.msra.mxu0 %v1446
          %1482 = vmatprep.subr.bf16.mxu0 0
          %1483 = vmatpush1.bf16.msra.mxu0 %v1447
          %1484 = vmatprep.subr.bf16.mxu0 0
          %1485 = vmatpush1.bf16.msra.mxu0 %v1448
          %1486 = vmatprep.subr.bf16.mxu0 0
          %1487 = vmatpush1.bf16.msra.mxu0 %v1449
          %1488 = vmatprep.subr.bf16.mxu0 0
          %1489 = vmatpush1.bf16.msra.mxu0 %v1450
          %1490 = vmatprep.subr.bf16.mxu0 0
          %1491 = vmatpush1.bf16.msra.mxu0 %v1451
          %1492 = vmatprep.subr.bf16.mxu0 0
          %1493 = vmatpush1.bf16.msra.mxu0 %v1452
          %1494 = vmatprep.subr.bf16.mxu0 0
          %1495 = vmatpush1.bf16.msra.mxu0 %v1453
          %1496 = vmatprep.subr.bf16.mxu0 0
          %1497 = vmatpush1.bf16.msra.mxu0 %v1454
          %1498 = vmatprep.subr.bf16.mxu0 0
          %1499 = vmatpush1.bf16.msra.mxu0 %v1455
          %1500 = vmatprep.subr.bf16.mxu0 0
          %1501 = vmatpush1.bf16.msra.mxu0 %v1456
          %1502 = vmatprep.subr.bf16.mxu0 0
          %1503 = vmatpush1.bf16.msra.mxu0 %v1457
          %1504 = vmatprep.subr.bf16.mxu0 0
          %1505 = vmatpush1.bf16.msra.mxu0 %v1458
          %1506 = vmatprep.subr.bf16.mxu0 0
          %1507 = vmatpush1.bf16.msra.mxu0 %v1459
          %1508 = vmatprep.mubr.bf16.mxu0 %v1194
          %1509 = vmatmul.mubr.bf16.gmra.mrb[0].mxu0 %v1193
          %v1510 = vpop.f32.mrb[0].mxu0
          %v1511 = vadd.f32 %v1362, %v1510
          %v1512 = vpop.f32.mrb[0].mxu0
          %v1513 = vpop.f32.mrb[0].mxu0
          %v1514 = vadd.f32 %v1365, %v1513
          %v1515 = vpop.f32.mrb[0].mxu0
          %1516 = vmatprep.mubr.bf16.mxu0 %v1196
          %1517 = vmatmul.mubr.bf16.gmra.mrb[0].mxu0 %v1195
          %v1518 = vpop.f32.mrb[0].mxu0
          %v1519 = vadd.f32 %v1370, %v1518
          %v1520 = vpop.f32.mrb[0].mxu0
          %v1521 = vpop.f32.mrb[0].mxu0
          %v1522 = vadd.f32 %v1373, %v1521
          %v1523 = vpop.f32.mrb[0].mxu0
          %1524 = vdwg.mxu0
          %v1526 = vlaneseq
          %v1527 = vshrl.u32 %v1526, 7
          %v1528 = vsub.s32 0, %v1527
          %v1529 = vrot.slane %v1180, %v1528
          %v1531 = vadd.f32 %v1511, %v1529
          %v1532 = vadd.f32 %v1514, %v1529
          %v1533 = vadd.f32 %v1519, %v1529
          %v1534 = vadd.f32 %v1522, %v1529
          %v1535 = vmax.f32 %v1531, 0.0
          %v1536 = vmax.f32 %v1532, 0.0
          %v1537 = vmax.f32 %v1533, 0.0
          %v1538 = vmax.f32 %v1534, 0.0
          %v1539 = vpack.c.bf16 %v1536, %v1535
          %v1540 = vpack.c.bf16 %v1538, %v1537
          %v1541 = vld [vmem:[#allocation9] sm:$0xff]
          %v1542 = vld [vmem:[#allocation9 + $0x8] sm:$0xff]
          %v1543 = vld [vmem:[#allocation9 + $0x10] sm:$0xff]
          %v1544 = vld [vmem:[#allocation9 + $0x18] sm:$0xff]
          %v1545 = vld [vmem:[#allocation9 + $0x20] sm:$0xff]
          %v1546 = vld [vmem:[#allocation9 + $0x28] sm:$0xff]
          %v1547 = vld [vmem:[#allocation9 + $0x30] sm:$0xff]
          %v1548 = vld [vmem:[#allocation9 + $0x38] sm:$0xff]
          %v1549 = vld [vmem:[#allocation9 + $0x40] sm:$0xff]
          %v1550 = vld [vmem:[#allocation9 + $0x48] sm:$0xff]
          %v1551 = vld [vmem:[#allocation9 + $0x50] sm:$0xff]
          %v1552 = vld [vmem:[#allocation9 + $0x58] sm:$0xff]
          %v1553 = vld [vmem:[#allocation9 + $0x60] sm:$0xff]
          %v1554 = vld [vmem:[#allocation9 + $0x68] sm:$0xff]
          %v1555 = vld [vmem:[#allocation9 + $0x70] sm:$0xff]
          %v1556 = vld [vmem:[#allocation9 + $0x78] sm:$0xff]
          %v1557 = vld [vmem:[#allocation9 + $0x80] sm:$0xff]
          %v1558 = vld [vmem:[#allocation9 + $0x88] sm:$0xff]
          %v1559 = vld [vmem:[#allocation9 + $0x90] sm:$0xff]
          %v1560 = vld [vmem:[#allocation9 + $0x98] sm:$0xff]
          %v1561 = vld [vmem:[#allocation9 + $0xa0] sm:$0xff]
          %v1562 = vld [vmem:[#allocation9 + $0xa8] sm:$0xff]
          %v1563 = vld [vmem:[#allocation9 + $0xb0] sm:$0xff]
          %v1564 = vld [vmem:[#allocation9 + $0xb8] sm:$0xff]
          %v1565 = vld [vmem:[#allocation9 + $0xc0] sm:$0xff]
          %v1566 = vld [vmem:[#allocation9 + $0xc8] sm:$0xff]
          %v1567 = vld [vmem:[#allocation9 + $0xd0] sm:$0xff]
          %v1568 = vld [vmem:[#allocation9 + $0xd8] sm:$0xff]
          %v1569 = vld [vmem:[#allocation9 + $0xe0] sm:$0xff]
          %v1570 = vld [vmem:[#allocation9 + $0xe8] sm:$0xff]
          %v1571 = vld [vmem:[#allocation9 + $0xf0] sm:$0xff]
          %v1572 = vld [vmem:[#allocation9 + $0xf8] sm:$0xff]
          %v1573 = vld [vmem:[#allocation9 + $0x100] sm:$0xff]
          %v1574 = vld [vmem:[#allocation9 + $0x108] sm:$0xff]
          %v1575 = vld [vmem:[#allocation9 + $0x110] sm:$0xff]
          %v1576 = vld [vmem:[#allocation9 + $0x118] sm:$0xff]
          %v1577 = vld [vmem:[#allocation9 + $0x120] sm:$0xff]
          %v1578 = vld [vmem:[#allocation9 + $0x128] sm:$0xff]
          %v1579 = vld [vmem:[#allocation9 + $0x130] sm:$0xff]
          %v1580 = vld [vmem:[#allocation9 + $0x138] sm:$0xff]
          %v1581 = vld [vmem:[#allocation9 + $0x140] sm:$0xff]
          %v1582 = vld [vmem:[#allocation9 + $0x148] sm:$0xff]
          %v1583 = vld [vmem:[#allocation9 + $0x150] sm:$0xff]
          %v1584 = vld [vmem:[#allocation9 + $0x158] sm:$0xff]
          %v1585 = vld [vmem:[#allocation9 + $0x160] sm:$0xff]
          %v1586 = vld [vmem:[#allocation9 + $0x168] sm:$0xff]
          %v1587 = vld [vmem:[#allocation9 + $0x170] sm:$0xff]
          %v1588 = vld [vmem:[#allocation9 + $0x178] sm:$0xff]
          %v1589 = vld [vmem:[#allocation9 + $0x180] sm:$0xff]
          %v1590 = vld [vmem:[#allocation9 + $0x188] sm:$0xff]
          %v1591 = vld [vmem:[#allocation9 + $0x190] sm:$0xff]
          %v1592 = vld [vmem:[#allocation9 + $0x198] sm:$0xff]
          %v1593 = vld [vmem:[#allocation9 + $0x1a0] sm:$0xff]
          %v1594 = vld [vmem:[#allocation9 + $0x1a8] sm:$0xff]
          %v1595 = vld [vmem:[#allocation9 + $0x1b0] sm:$0xff]
          %v1596 = vld [vmem:[#allocation9 + $0x1b8] sm:$0xff]
          %v1597 = vld [vmem:[#allocation9 + $0x1c0] sm:$0xff]
          %v1598 = vld [vmem:[#allocation9 + $0x1c8] sm:$0xff]
          %v1599 = vld [vmem:[#allocation9 + $0x1d0] sm:$0xff]
          %v1600 = vld [vmem:[#allocation9 + $0x1d8] sm:$0xff]
          %v1601 = vld [vmem:[#allocation9 + $0x1e0] sm:$0xff]
          %v1602 = vld [vmem:[#allocation9 + $0x1e8] sm:$0xff]
          %v1603 = vld [vmem:[#allocation9 + $0x1f0] sm:$0xff]
          %v1604 = vld [vmem:[#allocation9 + $0x1f8] sm:$0xff]
          %v1605 = vld [vmem:[%s6] sm:$0x3]
          %v1607 = vunpack.i.l.s16 %v1539
          %v1608 = vunpack.i.h.s16 %v1539
          %v1610 = vunpack.i.l.s16 %v1540
          %v1611 = vunpack.i.h.s16 %v1540
          %v1612 = vpack.c.b16 %v1610, %v1607
          %v1613 = vpack.c.b16 %v1611, %v1608
          %v1615 = vshrl.u32 %v1612, 16
          %v1617 = vshll.u32 %v1612, 16
          %v1619 = vrot.slane %v1617, 1
          %v1620 = vor.u32 %v1615, %v1619
          %v1622 = vshrl.u32 %v1613, 16
          %v1624 = vshll.u32 %v1613, 16
          %v1626 = vrot.slane %v1624, 1
          %v1627 = vor.u32 %v1622, %v1626
          %v1662 = vunpack.c.l.b16 %v1573
          %v1663 = vunpack.c.h.b16 %v1573
          %v1664 = vunpack.c.l.b16 %v1574
          %v1665 = vunpack.c.h.b16 %v1574
          %v1666 = vunpack.c.l.b16 %v1575
          %v1667 = vunpack.c.h.b16 %v1575
          %v1668 = vunpack.c.l.b16 %v1576
          %v1669 = vunpack.c.h.b16 %v1576
          %v1670 = vunpack.c.l.b16 %v1577
          %v1671 = vunpack.c.h.b16 %v1577
          %v1672 = vunpack.c.l.b16 %v1578
          %v1673 = vunpack.c.h.b16 %v1578
          %v1674 = vunpack.c.l.b16 %v1579
          %v1675 = vunpack.c.h.b16 %v1579
          %v1676 = vunpack.c.l.b16 %v1580
          %v1677 = vunpack.c.h.b16 %v1580
          %v1678 = vunpack.c.l.b16 %v1581
          %v1679 = vunpack.c.h.b16 %v1581
          %v1680 = vunpack.c.l.b16 %v1582
          %v1681 = vunpack.c.h.b16 %v1582
          %v1682 = vunpack.c.l.b16 %v1583
          %v1683 = vunpack.c.h.b16 %v1583
          %v1684 = vunpack.c.l.b16 %v1584
          %v1685 = vunpack.c.h.b16 %v1584
          %v1686 = vunpack.c.l.b16 %v1585
          %v1687 = vunpack.c.h.b16 %v1585
          %v1688 = vunpack.c.l.b16 %v1586
          %v1689 = vunpack.c.h.b16 %v1586
          %v1690 = vunpack.c.l.b16 %v1587
          %v1691 = vunpack.c.h.b16 %v1587
          %v1692 = vunpack.c.l.b16 %v1588
          %v1693 = vunpack.c.h.b16 %v1588
          %v1694 = vunpack.c.l.b16 %v1589
          %v1695 = vunpack.c.h.b16 %v1589
          %v1696 = vunpack.c.l.b16 %v1590
          %v1697 = vunpack.c.h.b16 %v1590
          %v1698 = vunpack.c.l.b16 %v1591
          %v1699 = vunpack.c.h.b16 %v1591
          %v1700 = vunpack.c.l.b16 %v1592
          %v1701 = vunpack.c.h.b16 %v1592
          %v1702 = vunpack.c.l.b16 %v1593
          %v1703 = vunpack.c.h.b16 %v1593
          %v1704 = vunpack.c.l.b16 %v1594
          %v1705 = vunpack.c.h.b16 %v1594
          %v1706 = vunpack.c.l.b16 %v1595
          %v1707 = vunpack.c.h.b16 %v1595
          %v1708 = vunpack.c.l.b16 %v1596
          %v1709 = vunpack.c.h.b16 %v1596
          %v1710 = vunpack.c.l.b16 %v1597
          %v1711 = vunpack.c.h.b16 %v1597
          %v1712 = vunpack.c.l.b16 %v1598
          %v1713 = vunpack.c.h.b16 %v1598
          %v1714 = vunpack.c.l.b16 %v1599
          %v1715 = vunpack.c.h.b16 %v1599
          %v1716 = vunpack.c.l.b16 %v1600
          %v1717 = vunpack.c.h.b16 %v1600
          %v1718 = vunpack.c.l.b16 %v1601
          %v1719 = vunpack.c.h.b16 %v1601
          %v1720 = vunpack.c.l.b16 %v1602
          %v1721 = vunpack.c.h.b16 %v1602
          %v1722 = vunpack.c.l.b16 %v1603
          %v1723 = vunpack.c.h.b16 %v1603
          %v1724 = vunpack.c.l.b16 %v1604
          %v1725 = vunpack.c.h.b16 %v1604
          %v1726 = vpack.c.b16 %v1664, %v1662
          %v1727 = vpack.c.b16 %v1665, %v1663
          %v1728 = vpack.c.b16 %v1668, %v1666
          %v1729 = vpack.c.b16 %v1669, %v1667
          %v1730 = vpack.c.b16 %v1672, %v1670
          %v1731 = vpack.c.b16 %v1673, %v1671
          %v1732 = vpack.c.b16 %v1676, %v1674
          %v1733 = vpack.c.b16 %v1677, %v1675
          %v1734 = vpack.c.b16 %v1680, %v1678
          %v1735 = vpack.c.b16 %v1681, %v1679
          %v1736 = vpack.c.b16 %v1684, %v1682
          %v1737 = vpack.c.b16 %v1685, %v1683
          %v1738 = vpack.c.b16 %v1688, %v1686
          %v1739 = vpack.c.b16 %v1689, %v1687
          %v1740 = vpack.c.b16 %v1692, %v1690
          %v1741 = vpack.c.b16 %v1693, %v1691
          %v1742 = vpack.c.b16 %v1696, %v1694
          %v1743 = vpack.c.b16 %v1697, %v1695
          %v1744 = vpack.c.b16 %v1700, %v1698
          %v1745 = vpack.c.b16 %v1701, %v1699
          %v1746 = vpack.c.b16 %v1704, %v1702
          %v1747 = vpack.c.b16 %v1705, %v1703
          %v1748 = vpack.c.b16 %v1708, %v1706
          %v1749 = vpack.c.b16 %v1709, %v1707
          %v1750 = vpack.c.b16 %v1712, %v1710
          %v1751 = vpack.c.b16 %v1713, %v1711
          %v1752 = vpack.c.b16 %v1716, %v1714
          %v1753 = vpack.c.b16 %v1717, %v1715
          %v1754 = vpack.c.b16 %v1720, %v1718
          %v1755 = vpack.c.b16 %v1721, %v1719
          %v1756 = vpack.c.b16 %v1724, %v1722
          %v1757 = vpack.c.b16 %v1725, %v1723
          %1790 = vmatprep.subr.bf16.mxu0 %v1727
          %1791 = vmatpush1.bf16.msra.mxu0 %v1726
          %1792 = vmatprep.subr.bf16.mxu0 %v1729
          %1793 = vmatpush1.bf16.msra.mxu0 %v1728
          %1794 = vmatprep.subr.bf16.mxu0 %v1731
          %1795 = vmatpush1.bf16.msra.mxu0 %v1730
          %1796 = vmatprep.subr.bf16.mxu0 %v1733
          %1797 = vmatpush1.bf16.msra.mxu0 %v1732
          %1798 = vmatprep.subr.bf16.mxu0 %v1735
          %1799 = vmatpush1.bf16.msra.mxu0 %v1734
          %1800 = vmatprep.subr.bf16.mxu0 %v1737
          %1801 = vmatpush1.bf16.msra.mxu0 %v1736
          %1802 = vmatprep.subr.bf16.mxu0 %v1739
          %1803 = vmatpush1.bf16.msra.mxu0 %v1738
          %1804 = vmatprep.subr.bf16.mxu0 %v1741
          %1805 = vmatpush1.bf16.msra.mxu0 %v1740
          %1806 = vmatprep.subr.bf16.mxu0 %v1743
          %1807 = vmatpush1.bf16.msra.mxu0 %v1742
          %1808 = vmatprep.subr.bf16.mxu0 %v1745
          %1809 = vmatpush1.bf16.msra.mxu0 %v1744
          %1810 = vmatprep.subr.bf16.mxu0 %v1747
          %1811 = vmatpush1.bf16.msra.mxu0 %v1746
          %1812 = vmatprep.subr.bf16.mxu0 %v1749
          %1813 = vmatpush1.bf16.msra.mxu0 %v1748
          %1814 = vmatprep.subr.bf16.mxu0 %v1751
          %1815 = vmatpush1.bf16.msra.mxu0 %v1750
          %1816 = vmatprep.subr.bf16.mxu0 %v1753
          %1817 = vmatpush1.bf16.msra.mxu0 %v1752
          %1818 = vmatprep.subr.bf16.mxu0 %v1755
          %1819 = vmatpush1.bf16.msra.mxu0 %v1754
          %1820 = vmatprep.subr.bf16.mxu0 %v1757
          %1821 = vmatpush1.bf16.msra.mxu0 %v1756
          %1822 = vmatprep.mubr.bf16.mxu0 %v1627
          %1823 = vmatmul.mubr.bf16.gmra.mrb[0].mxu0 %v1620
          %v1824 = vpop.f32.mrb[0].mxu0
          %v1825 = vadd.f32 0.0, %v1824
          %v1826 = vpop.f32.mrb[0].mxu0
          %v1827 = vadd.f32 0.0, %v1826
          %v1828 = vpop.f32.mrb[0].mxu0
          %v1829 = vadd.f32 0.0, %v1828
          %v1830 = vpop.f32.mrb[0].mxu0
          %v1831 = vadd.f32 0.0, %v1830
          %1832 = vdwg.mxu0
          %v1867 = vunpack.c.l.b16 %v1541
          %v1868 = vunpack.c.h.b16 %v1541
          %v1869 = vunpack.c.l.b16 %v1542
          %v1870 = vunpack.c.h.b16 %v1542
          %v1871 = vunpack.c.l.b16 %v1543
          %v1872 = vunpack.c.h.b16 %v1543
          %v1873 = vunpack.c.l.b16 %v1544
          %v1874 = vunpack.c.h.b16 %v1544
          %v1875 = vunpack.c.l.b16 %v1545
          %v1876 = vunpack.c.h.b16 %v1545
          %v1877 = vunpack.c.l.b16 %v1546
          %v1878 = vunpack.c.h.b16 %v1546
          %v1879 = vunpack.c.l.b16 %v1547
          %v1880 = vunpack.c.h.b16 %v1547
          %v1881 = vunpack.c.l.b16 %v1548
          %v1882 = vunpack.c.h.b16 %v1548
          %v1883 = vunpack.c.l.b16 %v1549
          %v1884 = vunpack.c.h.b16 %v1549
          %v1885 = vunpack.c.l.b16 %v1550
          %v1886 = vunpack.c.h.b16 %v1550
          %v1887 = vunpack.c.l.b16 %v1551
          %v1888 = vunpack.c.h.b16 %v1551
          %v1889 = vunpack.c.l.b16 %v1552
          %v1890 = vunpack.c.h.b16 %v1552
          %v1891 = vunpack.c.l.b16 %v1553
          %v1892 = vunpack.c.h.b16 %v1553
          %v1893 = vunpack.c.l.b16 %v1554
          %v1894 = vunpack.c.h.b16 %v1554
          %v1895 = vunpack.c.l.b16 %v1555
          %v1896 = vunpack.c.h.b16 %v1555
          %v1897 = vunpack.c.l.b16 %v1556
          %v1898 = vunpack.c.h.b16 %v1556
          %v1899 = vunpack.c.l.b16 %v1557
          %v1900 = vunpack.c.h.b16 %v1557
          %v1901 = vunpack.c.l.b16 %v1558
          %v1902 = vunpack.c.h.b16 %v1558
          %v1903 = vunpack.c.l.b16 %v1559
          %v1904 = vunpack.c.h.b16 %v1559
          %v1905 = vunpack.c.l.b16 %v1560
          %v1906 = vunpack.c.h.b16 %v1560
          %v1907 = vunpack.c.l.b16 %v1561
          %v1908 = vunpack.c.h.b16 %v1561
          %v1909 = vunpack.c.l.b16 %v1562
          %v1910 = vunpack.c.h.b16 %v1562
          %v1911 = vunpack.c.l.b16 %v1563
          %v1912 = vunpack.c.h.b16 %v1563
          %v1913 = vunpack.c.l.b16 %v1564
          %v1914 = vunpack.c.h.b16 %v1564
          %v1915 = vunpack.c.l.b16 %v1565
          %v1916 = vunpack.c.h.b16 %v1565
          %v1917 = vunpack.c.l.b16 %v1566
          %v1918 = vunpack.c.h.b16 %v1566
          %v1919 = vunpack.c.l.b16 %v1567
          %v1920 = vunpack.c.h.b16 %v1567
          %v1921 = vunpack.c.l.b16 %v1568
          %v1922 = vunpack.c.h.b16 %v1568
          %v1923 = vunpack.c.l.b16 %v1569
          %v1924 = vunpack.c.h.b16 %v1569
          %v1925 = vunpack.c.l.b16 %v1570
          %v1926 = vunpack.c.h.b16 %v1570
          %v1927 = vunpack.c.l.b16 %v1571
          %v1928 = vunpack.c.h.b16 %v1571
          %v1929 = vunpack.c.l.b16 %v1572
          %v1930 = vunpack.c.h.b16 %v1572
          %v1931 = vpack.c.b16 %v1869, %v1867
          %v1932 = vpack.c.b16 %v1870, %v1868
          %v1933 = vpack.c.b16 %v1873, %v1871
          %v1934 = vpack.c.b16 %v1874, %v1872
          %v1935 = vpack.c.b16 %v1877, %v1875
          %v1936 = vpack.c.b16 %v1878, %v1876
          %v1937 = vpack.c.b16 %v1881, %v1879
          %v1938 = vpack.c.b16 %v1882, %v1880
          %v1939 = vpack.c.b16 %v1885, %v1883
          %v1940 = vpack.c.b16 %v1886, %v1884
          %v1941 = vpack.c.b16 %v1889, %v1887
          %v1942 = vpack.c.b16 %v1890, %v1888
          %v1943 = vpack.c.b16 %v1893, %v1891
          %v1944 = vpack.c.b16 %v1894, %v1892
          %v1945 = vpack.c.b16 %v1897, %v1895
          %v1946 = vpack.c.b16 %v1898, %v1896
          %v1947 = vpack.c.b16 %v1901, %v1899
          %v1948 = vpack.c.b16 %v1902, %v1900
          %v1949 = vpack.c.b16 %v1905, %v1903
          %v1950 = vpack.c.b16 %v1906, %v1904
          %v1951 = vpack.c.b16 %v1909, %v1907
          %v1952 = vpack.c.b16 %v1910, %v1908
          %v1953 = vpack.c.b16 %v1913, %v1911
          %v1954 = vpack.c.b16 %v1914, %v1912
          %v1955 = vpack.c.b16 %v1917, %v1915
          %v1956 = vpack.c.b16 %v1918, %v1916
          %v1957 = vpack.c.b16 %v1921, %v1919
          %v1958 = vpack.c.b16 %v1922, %v1920
          %v1959 = vpack.c.b16 %v1925, %v1923
          %v1960 = vpack.c.b16 %v1926, %v1924
          %v1961 = vpack.c.b16 %v1929, %v1927
          %v1962 = vpack.c.b16 %v1930, %v1928
          %1995 = vmatprep.subr.bf16.mxu0 %v1932
          %1996 = vmatpush1.bf16.msra.mxu0 %v1931
          %1997 = vmatprep.subr.bf16.mxu0 %v1934
          %1998 = vmatpush1.bf16.msra.mxu0 %v1933
          %1999 = vmatprep.subr.bf16.mxu0 %v1936
          %2000 = vmatpush1.bf16.msra.mxu0 %v1935
          %2001 = vmatprep.subr.bf16.mxu0 %v1938
          %2002 = vmatpush1.bf16.msra.mxu0 %v1937
          %2003 = vmatprep.subr.bf16.mxu0 %v1940
          %2004 = vmatpush1.bf16.msra.mxu0 %v1939
          %2005 = vmatprep.subr.bf16.mxu0 %v1942
          %2006 = vmatpush1.bf16.msra.mxu0 %v1941
          %2007 = vmatprep.subr.bf16.mxu0 %v1944
          %2008 = vmatpush1.bf16.msra.mxu0 %v1943
          %2009 = vmatprep.subr.bf16.mxu0 %v1946
          %2010 = vmatpush1.bf16.msra.mxu0 %v1945
          %2011 = vmatprep.subr.bf16.mxu0 %v1948
          %2012 = vmatpush1.bf16.msra.mxu0 %v1947
          %2013 = vmatprep.subr.bf16.mxu0 %v1950
          %2014 = vmatpush1.bf16.msra.mxu0 %v1949
          %2015 = vmatprep.subr.bf16.mxu0 %v1952
          %2016 = vmatpush1.bf16.msra.mxu0 %v1951
          %2017 = vmatprep.subr.bf16.mxu0 %v1954
          %2018 = vmatpush1.bf16.msra.mxu0 %v1953
          %2019 = vmatprep.subr.bf16.mxu0 %v1956
          %2020 = vmatpush1.bf16.msra.mxu0 %v1955
          %2021 = vmatprep.subr.bf16.mxu0 %v1958
          %2022 = vmatpush1.bf16.msra.mxu0 %v1957
          %2023 = vmatprep.subr.bf16.mxu0 %v1960
          %2024 = vmatpush1.bf16.msra.mxu0 %v1959
          %2025 = vmatprep.subr.bf16.mxu0 %v1962
          %2026 = vmatpush1.bf16.msra.mxu0 %v1961
          %2027 = vmatprep.mubr.bf16.mxu0 %v1613
          %2028 = vmatmul.mubr.bf16.gmra.mrb[0].mxu0 %v1612
          %v2029 = vpop.f32.mrb[0].mxu0
          %v2030 = vadd.f32 %v1825, %v2029
          %v2031 = vpop.f32.mrb[0].mxu0
          %v2032 = vadd.f32 %v1827, %v2031
          %v2033 = vpop.f32.mrb[0].mxu0
          %v2034 = vadd.f32 %v1829, %v2033
          %v2035 = vpop.f32.mrb[0].mxu0
          %v2036 = vadd.f32 %v1831, %v2035
          %2037 = vdwg.mxu0
          %v2039 = vlaneseq
          %v2040 = vshrl.u32 %v2039, 7
          %v2041 = vsub.s32 0, %v2040
          %v2042 = vrot.slane %v1605, %v2041
          %v2043 = vlaneseq
          %v2044 = vshrl.u32 %v2043, 7
          %v2045 = vsub.s32 1, %v2044
          %v2046 = vrot.slane %v1605, %v2045
          %v2049 = vadd.f32 %v2030, %v2042
          %v2050 = vadd.f32 %v2032, %v2046
          %v2051 = vadd.f32 %v2034, %v2042
          %v2052 = vadd.f32 %v2036, %v2046
          %v2053 = vmax.f32 %v2049, 0.0
          %v2054 = vmax.f32 %v2050, 0.0
          %v2055 = vmax.f32 %v2051, 0.0
          %v2056 = vmax.f32 %v2052, 0.0
          %v2057 = vpack.c.bf16 %v2055, %v2053
          %v2058 = vpack.c.bf16 %v2056, %v2054
          %v2059 = vld [vmem:[#allocation11] sm:$0xff]
          %v2060 = vld [vmem:[#allocation11 + $0x8] sm:$0xff]
          %v2061 = vld [vmem:[#allocation11 + $0x10] sm:$0xff]
          %v2062 = vld [vmem:[#allocation11 + $0x18] sm:$0xff]
          %v2063 = vld [vmem:[#allocation11 + $0x20] sm:$0xff]
          %v2064 = vld [vmem:[#allocation11 + $0x28] sm:$0xff]
          %v2065 = vld [vmem:[#allocation11 + $0x30] sm:$0xff]
          %v2066 = vld [vmem:[#allocation11 + $0x38] sm:$0xff]
          %v2067 = vld [vmem:[#allocation11 + $0x40] sm:$0xff]
          %v2068 = vld [vmem:[#allocation11 + $0x48] sm:$0xff]
          %v2069 = vld [vmem:[#allocation11 + $0x50] sm:$0xff]
          %v2070 = vld [vmem:[#allocation11 + $0x58] sm:$0xff]
          %v2071 = vld [vmem:[#allocation11 + $0x60] sm:$0xff]
          %v2072 = vld [vmem:[#allocation11 + $0x68] sm:$0xff]
          %v2073 = vld [vmem:[#allocation11 + $0x70] sm:$0xff]
          %v2074 = vld [vmem:[#allocation11 + $0x78] sm:$0xff]
          %v2075 = vld [vmem:[#allocation11 + $0x80] sm:$0xff]
          %v2076 = vld [vmem:[#allocation11 + $0x88] sm:$0xff]
          %v2077 = vld [vmem:[#allocation11 + $0x90] sm:$0xff]
          %v2078 = vld [vmem:[#allocation11 + $0x98] sm:$0xff]
          %v2079 = vld [vmem:[#allocation11 + $0xa0] sm:$0xff]
          %v2080 = vld [vmem:[#allocation11 + $0xa8] sm:$0xff]
          %v2081 = vld [vmem:[#allocation11 + $0xb0] sm:$0xff]
          %v2082 = vld [vmem:[#allocation11 + $0xb8] sm:$0xff]
          %v2083 = vld [vmem:[#allocation11 + $0xc0] sm:$0xff]
          %v2084 = vld [vmem:[#allocation11 + $0xc8] sm:$0xff]
          %v2085 = vld [vmem:[#allocation11 + $0xd0] sm:$0xff]
          %v2086 = vld [vmem:[#allocation11 + $0xd8] sm:$0xff]
          %v2087 = vld [vmem:[#allocation11 + $0xe0] sm:$0xff]
          %v2088 = vld [vmem:[#allocation11 + $0xe8] sm:$0xff]
          %v2089 = vld [vmem:[#allocation11 + $0xf0] sm:$0xff]
          %v2090 = vld [vmem:[#allocation11 + $0xf8] sm:$0xff]
          %v2091 = vld [vmem:[#allocation11 + $0x100] sm:$0xff]
          %v2092 = vld [vmem:[#allocation11 + $0x108] sm:$0xff]
          %v2093 = vld [vmem:[#allocation11 + $0x110] sm:$0xff]
          %v2094 = vld [vmem:[#allocation11 + $0x118] sm:$0xff]
          %v2095 = vld [vmem:[#allocation11 + $0x120] sm:$0xff]
          %v2096 = vld [vmem:[#allocation11 + $0x128] sm:$0xff]
          %v2097 = vld [vmem:[#allocation11 + $0x130] sm:$0xff]
          %v2098 = vld [vmem:[#allocation11 + $0x138] sm:$0xff]
          %v2099 = vld [vmem:[#allocation11 + $0x140] sm:$0xff]
          %v2100 = vld [vmem:[#allocation11 + $0x148] sm:$0xff]
          %v2101 = vld [vmem:[#allocation11 + $0x150] sm:$0xff]
          %v2102 = vld [vmem:[#allocation11 + $0x158] sm:$0xff]
          %v2103 = vld [vmem:[#allocation11 + $0x160] sm:$0xff]
          %v2104 = vld [vmem:[#allocation11 + $0x168] sm:$0xff]
          %v2105 = vld [vmem:[#allocation11 + $0x170] sm:$0xff]
          %v2106 = vld [vmem:[#allocation11 + $0x178] sm:$0xff]
          %v2107 = vld [vmem:[#allocation11 + $0x180] sm:$0xff]
          %v2108 = vld [vmem:[#allocation11 + $0x188] sm:$0xff]
          %v2109 = vld [vmem:[#allocation11 + $0x190] sm:$0xff]
          %v2110 = vld [vmem:[#allocation11 + $0x198] sm:$0xff]
          %v2111 = vld [vmem:[#allocation11 + $0x1a0] sm:$0xff]
          %v2112 = vld [vmem:[#allocation11 + $0x1a8] sm:$0xff]
          %v2113 = vld [vmem:[#allocation11 + $0x1b0] sm:$0xff]
          %v2114 = vld [vmem:[#allocation11 + $0x1b8] sm:$0xff]
          %v2115 = vld [vmem:[#allocation11 + $0x1c0] sm:$0xff]
          %v2116 = vld [vmem:[#allocation11 + $0x1c8] sm:$0xff]
          %v2117 = vld [vmem:[#allocation11 + $0x1d0] sm:$0xff]
          %v2118 = vld [vmem:[#allocation11 + $0x1d8] sm:$0xff]
          %v2119 = vld [vmem:[#allocation11 + $0x1e0] sm:$0xff]
          %v2120 = vld [vmem:[#allocation11 + $0x1e8] sm:$0xff]
          %v2121 = vld [vmem:[#allocation11 + $0x1f0] sm:$0xff]
          %v2122 = vld [vmem:[#allocation11 + $0x1f8] sm:$0xff]
          %v2123 = vld [vmem:[#allocation11 + $0x200] sm:$0xff]
          %v2124 = vld [vmem:[#allocation11 + $0x208] sm:$0xff]
          %v2125 = vld [vmem:[#allocation11 + $0x210] sm:$0xff]
          %v2126 = vld [vmem:[#allocation11 + $0x218] sm:$0xff]
          %v2127 = vld [vmem:[#allocation11 + $0x220] sm:$0xff]
          %v2128 = vld [vmem:[#allocation11 + $0x228] sm:$0xff]
          %v2129 = vld [vmem:[#allocation11 + $0x230] sm:$0xff]
          %v2130 = vld [vmem:[#allocation11 + $0x238] sm:$0xff]
          %v2131 = vld [vmem:[#allocation11 + $0x240] sm:$0xff]
          %v2132 = vld [vmem:[#allocation11 + $0x248] sm:$0xff]
          %v2133 = vld [vmem:[#allocation11 + $0x250] sm:$0xff]
          %v2134 = vld [vmem:[#allocation11 + $0x258] sm:$0xff]
          %v2135 = vld [vmem:[#allocation11 + $0x260] sm:$0xff]
          %v2136 = vld [vmem:[#allocation11 + $0x268] sm:$0xff]
          %v2137 = vld [vmem:[#allocation11 + $0x270] sm:$0xff]
          %v2138 = vld [vmem:[#allocation11 + $0x278] sm:$0xff]
          %v2139 = vld [vmem:[#allocation11 + $0x280] sm:$0xff]
          %v2140 = vld [vmem:[#allocation11 + $0x288] sm:$0xff]
          %v2141 = vld [vmem:[#allocation11 + $0x290] sm:$0xff]
          %v2142 = vld [vmem:[#allocation11 + $0x298] sm:$0xff]
          %v2143 = vld [vmem:[#allocation11 + $0x2a0] sm:$0xff]
          %v2144 = vld [vmem:[#allocation11 + $0x2a8] sm:$0xff]
          %v2145 = vld [vmem:[#allocation11 + $0x2b0] sm:$0xff]
          %v2146 = vld [vmem:[#allocation11 + $0x2b8] sm:$0xff]
          %v2147 = vld [vmem:[#allocation11 + $0x2c0] sm:$0xff]
          %v2148 = vld [vmem:[#allocation11 + $0x2c8] sm:$0xff]
          %v2149 = vld [vmem:[#allocation11 + $0x2d0] sm:$0xff]
          %v2150 = vld [vmem:[#allocation11 + $0x2d8] sm:$0xff]
          %v2151 = vld [vmem:[#allocation11 + $0x2e0] sm:$0xff]
          %v2152 = vld [vmem:[#allocation11 + $0x2e8] sm:$0xff]
          %v2153 = vld [vmem:[#allocation11 + $0x2f0] sm:$0xff]
          %v2154 = vld [vmem:[#allocation11 + $0x2f8] sm:$0xff]
          %v2155 = vld [vmem:[#allocation11 + $0x300] sm:$0xff]
          %v2156 = vld [vmem:[#allocation11 + $0x308] sm:$0xff]
          %v2157 = vld [vmem:[#allocation11 + $0x310] sm:$0xff]
          %v2158 = vld [vmem:[#allocation11 + $0x318] sm:$0xff]
          %v2159 = vld [vmem:[#allocation11 + $0x320] sm:$0xff]
          %v2160 = vld [vmem:[#allocation11 + $0x328] sm:$0xff]
          %v2161 = vld [vmem:[#allocation11 + $0x330] sm:$0xff]
          %v2162 = vld [vmem:[#allocation11 + $0x338] sm:$0xff]
          %v2163 = vld [vmem:[#allocation11 + $0x340] sm:$0xff]
          %v2164 = vld [vmem:[#allocation11 + $0x348] sm:$0xff]
          %v2165 = vld [vmem:[#allocation11 + $0x350] sm:$0xff]
          %v2166 = vld [vmem:[#allocation11 + $0x358] sm:$0xff]
          %v2167 = vld [vmem:[#allocation11 + $0x360] sm:$0xff]
          %v2168 = vld [vmem:[#allocation11 + $0x368] sm:$0xff]
          %v2169 = vld [vmem:[#allocation11 + $0x370] sm:$0xff]
          %v2170 = vld [vmem:[#allocation11 + $0x378] sm:$0xff]
          %v2171 = vld [vmem:[#allocation11 + $0x380] sm:$0xff]
          %v2172 = vld [vmem:[#allocation11 + $0x388] sm:$0xff]
          %v2173 = vld [vmem:[#allocation11 + $0x390] sm:$0xff]
          %v2174 = vld [vmem:[#allocation11 + $0x398] sm:$0xff]
          %v2175 = vld [vmem:[#allocation11 + $0x3a0] sm:$0xff]
          %v2176 = vld [vmem:[#allocation11 + $0x3a8] sm:$0xff]
          %v2177 = vld [vmem:[#allocation11 + $0x3b0] sm:$0xff]
          %v2178 = vld [vmem:[#allocation11 + $0x3b8] sm:$0xff]
          %v2179 = vld [vmem:[#allocation11 + $0x3c0] sm:$0xff]
          %v2180 = vld [vmem:[#allocation11 + $0x3c8] sm:$0xff]
          %v2181 = vld [vmem:[#allocation11 + $0x3d0] sm:$0xff]
          %v2182 = vld [vmem:[#allocation11 + $0x3d8] sm:$0xff]
          %v2183 = vld [vmem:[#allocation11 + $0x3e0] sm:$0xff]
          %v2184 = vld [vmem:[#allocation11 + $0x3e8] sm:$0xff]
          %v2185 = vld [vmem:[#allocation11 + $0x3f0] sm:$0xff]
          %v2186 = vld [vmem:[#allocation11 + $0x3f8] sm:$0xff]
          %v2187 = vld [vmem:[#allocation11 + $0x400] sm:$0xff]
          %v2188 = vld [vmem:[#allocation11 + $0x408] sm:$0xff]
          %v2189 = vld [vmem:[#allocation11 + $0x410] sm:$0xff]
          %v2190 = vld [vmem:[#allocation11 + $0x418] sm:$0xff]
          %v2191 = vld [vmem:[#allocation11 + $0x420] sm:$0xff]
          %v2192 = vld [vmem:[#allocation11 + $0x428] sm:$0xff]
          %v2193 = vld [vmem:[#allocation11 + $0x430] sm:$0xff]
          %v2194 = vld [vmem:[#allocation11 + $0x438] sm:$0xff]
          %v2195 = vld [vmem:[#allocation11 + $0x440] sm:$0xff]
          %v2196 = vld [vmem:[#allocation11 + $0x448] sm:$0xff]
          %v2197 = vld [vmem:[#allocation11 + $0x450] sm:$0xff]
          %v2198 = vld [vmem:[#allocation11 + $0x458] sm:$0xff]
          %v2199 = vld [vmem:[#allocation11 + $0x460] sm:$0xff]
          %v2200 = vld [vmem:[#allocation11 + $0x468] sm:$0xff]
          %v2201 = vld [vmem:[#allocation11 + $0x470] sm:$0xff]
          %v2202 = vld [vmem:[#allocation11 + $0x478] sm:$0xff]
          %v2203 = vld [vmem:[#allocation11 + $0x480] sm:$0xff]
          %v2204 = vld [vmem:[#allocation11 + $0x488] sm:$0xff]
          %v2205 = vld [vmem:[#allocation11 + $0x490] sm:$0xff]
          %v2206 = vld [vmem:[#allocation11 + $0x498] sm:$0xff]
          %v2207 = vld [vmem:[#allocation11 + $0x4a0] sm:$0xff]
          %v2208 = vld [vmem:[#allocation11 + $0x4a8] sm:$0xff]
          %v2209 = vld [vmem:[#allocation11 + $0x4b0] sm:$0xff]
          %v2210 = vld [vmem:[#allocation11 + $0x4b8] sm:$0xff]
          %v2211 = vld [vmem:[#allocation11 + $0x4c0] sm:$0xff]
          %v2212 = vld [vmem:[#allocation11 + $0x4c8] sm:$0xff]
          %v2213 = vld [vmem:[#allocation11 + $0x4d0] sm:$0xff]
          %v2214 = vld [vmem:[#allocation11 + $0x4d8] sm:$0xff]
          %v2215 = vld [vmem:[#allocation11 + $0x4e0] sm:$0xff]
          %v2216 = vld [vmem:[#allocation11 + $0x4e8] sm:$0xff]
          %v2217 = vld [vmem:[#allocation11 + $0x4f0] sm:$0xff]
          %v2218 = vld [vmem:[#allocation11 + $0x4f8] sm:$0xff]
          %v2219 = vld [vmem:[#allocation11 + $0x500] sm:$0xff]
          %v2220 = vld [vmem:[#allocation11 + $0x508] sm:$0xff]
          %v2221 = vld [vmem:[#allocation11 + $0x510] sm:$0xff]
          %v2222 = vld [vmem:[#allocation11 + $0x518] sm:$0xff]
          %v2223 = vld [vmem:[#allocation11 + $0x520] sm:$0xff]
          %v2224 = vld [vmem:[#allocation11 + $0x528] sm:$0xff]
          %v2225 = vld [vmem:[#allocation11 + $0x530] sm:$0xff]
          %v2226 = vld [vmem:[#allocation11 + $0x538] sm:$0xff]
          %v2227 = vld [vmem:[#allocation11 + $0x540] sm:$0xff]
          %v2228 = vld [vmem:[#allocation11 + $0x548] sm:$0xff]
          %v2229 = vld [vmem:[#allocation11 + $0x550] sm:$0xff]
          %v2230 = vld [vmem:[#allocation11 + $0x558] sm:$0xff]
          %v2231 = vld [vmem:[#allocation11 + $0x560] sm:$0xff]
          %v2232 = vld [vmem:[#allocation11 + $0x568] sm:$0xff]
          %v2233 = vld [vmem:[#allocation11 + $0x570] sm:$0xff]
          %v2234 = vld [vmem:[#allocation11 + $0x578] sm:$0xff]
          %v2235 = vld [vmem:[#allocation11 + $0x580] sm:$0xff]
          %v2236 = vld [vmem:[#allocation11 + $0x588] sm:$0xff]
          %v2237 = vld [vmem:[#allocation11 + $0x590] sm:$0xff]
          %v2238 = vld [vmem:[#allocation11 + $0x598] sm:$0xff]
          %v2239 = vld [vmem:[#allocation11 + $0x5a0] sm:$0xff]
          %v2240 = vld [vmem:[#allocation11 + $0x5a8] sm:$0xff]
          %v2241 = vld [vmem:[#allocation11 + $0x5b0] sm:$0xff]
          %v2242 = vld [vmem:[#allocation11 + $0x5b8] sm:$0xff]
          %v2243 = vld [vmem:[#allocation11 + $0x5c0] sm:$0xff]
          %v2244 = vld [vmem:[#allocation11 + $0x5c8] sm:$0xff]
          %v2245 = vld [vmem:[#allocation11 + $0x5d0] sm:$0xff]
          %v2246 = vld [vmem:[#allocation11 + $0x5d8] sm:$0xff]
          %v2247 = vld [vmem:[#allocation11 + $0x5e0] sm:$0xff]
          %v2248 = vld [vmem:[#allocation11 + $0x5e8] sm:$0xff]
          %v2249 = vld [vmem:[#allocation11 + $0x5f0] sm:$0xff]
          %v2250 = vld [vmem:[#allocation11 + $0x5f8] sm:$0xff]
          %v2251 = vld [vmem:[#allocation11 + $0x600] sm:$0xff]
          %v2252 = vld [vmem:[#allocation11 + $0x608] sm:$0xff]
          %v2253 = vld [vmem:[#allocation11 + $0x610] sm:$0xff]
          %v2254 = vld [vmem:[#allocation11 + $0x618] sm:$0xff]
          %v2255 = vld [vmem:[#allocation11 + $0x620] sm:$0xff]
          %v2256 = vld [vmem:[#allocation11 + $0x628] sm:$0xff]
          %v2257 = vld [vmem:[#allocation11 + $0x630] sm:$0xff]
          %v2258 = vld [vmem:[#allocation11 + $0x638] sm:$0xff]
          %v2259 = vld [vmem:[#allocation11 + $0x640] sm:$0xff]
          %v2260 = vld [vmem:[#allocation11 + $0x648] sm:$0xff]
          %v2261 = vld [vmem:[#allocation11 + $0x650] sm:$0xff]
          %v2262 = vld [vmem:[#allocation11 + $0x658] sm:$0xff]
          %v2263 = vld [vmem:[#allocation11 + $0x660] sm:$0xff]
          %v2264 = vld [vmem:[#allocation11 + $0x668] sm:$0xff]
          %v2265 = vld [vmem:[#allocation11 + $0x670] sm:$0xff]
          %v2266 = vld [vmem:[#allocation11 + $0x678] sm:$0xff]
          %v2267 = vld [vmem:[#allocation11 + $0x680] sm:$0xff]
          %v2268 = vld [vmem:[#allocation11 + $0x688] sm:$0xff]
          %v2269 = vld [vmem:[#allocation11 + $0x690] sm:$0xff]
          %v2270 = vld [vmem:[#allocation11 + $0x698] sm:$0xff]
          %v2271 = vld [vmem:[#allocation11 + $0x6a0] sm:$0xff]
          %v2272 = vld [vmem:[#allocation11 + $0x6a8] sm:$0xff]
          %v2273 = vld [vmem:[#allocation11 + $0x6b0] sm:$0xff]
          %v2274 = vld [vmem:[#allocation11 + $0x6b8] sm:$0xff]
          %v2275 = vld [vmem:[#allocation11 + $0x6c0] sm:$0xff]
          %v2276 = vld [vmem:[#allocation11 + $0x6c8] sm:$0xff]
          %v2277 = vld [vmem:[#allocation11 + $0x6d0] sm:$0xff]
          %v2278 = vld [vmem:[#allocation11 + $0x6d8] sm:$0xff]
          %v2279 = vld [vmem:[#allocation11 + $0x6e0] sm:$0xff]
          %v2280 = vld [vmem:[#allocation11 + $0x6e8] sm:$0xff]
          %v2281 = vld [vmem:[#allocation11 + $0x6f0] sm:$0xff]
          %v2282 = vld [vmem:[#allocation11 + $0x6f8] sm:$0xff]
          %v2283 = vld [vmem:[#allocation11 + $0x700] sm:$0xff]
          %v2284 = vld [vmem:[#allocation11 + $0x708] sm:$0xff]
          %v2285 = vld [vmem:[#allocation11 + $0x710] sm:$0xff]
          %v2286 = vld [vmem:[#allocation11 + $0x718] sm:$0xff]
          %v2287 = vld [vmem:[#allocation11 + $0x720] sm:$0xff]
          %v2288 = vld [vmem:[#allocation11 + $0x728] sm:$0xff]
          %v2289 = vld [vmem:[#allocation11 + $0x730] sm:$0xff]
          %v2290 = vld [vmem:[#allocation11 + $0x738] sm:$0xff]
          %v2291 = vld [vmem:[#allocation11 + $0x740] sm:$0xff]
          %v2292 = vld [vmem:[#allocation11 + $0x748] sm:$0xff]
          %v2293 = vld [vmem:[#allocation11 + $0x750] sm:$0xff]
          %v2294 = vld [vmem:[#allocation11 + $0x758] sm:$0xff]
          %v2295 = vld [vmem:[#allocation11 + $0x760] sm:$0xff]
          %v2296 = vld [vmem:[#allocation11 + $0x768] sm:$0xff]
          %v2297 = vld [vmem:[#allocation11 + $0x770] sm:$0xff]
          %v2298 = vld [vmem:[#allocation11 + $0x778] sm:$0xff]
          %v2299 = vld [vmem:[#allocation11 + $0x780] sm:$0xff]
          %v2300 = vld [vmem:[#allocation11 + $0x788] sm:$0xff]
          %v2301 = vld [vmem:[#allocation11 + $0x790] sm:$0xff]
          %v2302 = vld [vmem:[#allocation11 + $0x798] sm:$0xff]
          %v2303 = vld [vmem:[#allocation11 + $0x7a0] sm:$0xff]
          %v2304 = vld [vmem:[#allocation11 + $0x7a8] sm:$0xff]
          %v2305 = vld [vmem:[#allocation11 + $0x7b0] sm:$0xff]
          %v2306 = vld [vmem:[#allocation11 + $0x7b8] sm:$0xff]
          %v2307 = vld [vmem:[#allocation11 + $0x7c0] sm:$0xff]
          %v2308 = vld [vmem:[#allocation11 + $0x7c8] sm:$0xff]
          %v2309 = vld [vmem:[#allocation11 + $0x7d0] sm:$0xff]
          %v2310 = vld [vmem:[#allocation11 + $0x7d8] sm:$0xff]
          %v2311 = vld [vmem:[#allocation11 + $0x7e0] sm:$0xff]
          %v2312 = vld [vmem:[#allocation11 + $0x7e8] sm:$0xff]
          %v2313 = vld [vmem:[#allocation11 + $0x7f0] sm:$0xff]
          %v2314 = vld [vmem:[#allocation11 + $0x7f8] sm:$0xff]
          %v2315 = vld [vmem:[%s8] sm:$0xf]
          %v2318 = vunpack.c.l.b16 %v2057
          %v2319 = vunpack.c.l.b16 %v2058
          %v2320 = vunpack.c.h.b16 %v2057
          %v2321 = vunpack.c.h.b16 %v2058
          %v2322 = vpack.c.b16 %v2319, %v2318
          %v2323 = vpack.c.b16 %v2321, %v2320
          %v2324 = vunpack.i.l.s16 %v2322
          %v2325 = vunpack.i.h.s16 %v2322
          %v2326 = vpack.c.b16 %v2325, %v2324
          %v2327 = vunpack.i.l.s16 %v2323
          %v2328 = vunpack.i.h.s16 %v2323
          %v2329 = vpack.c.b16 %v2328, %v2327
          %v2330 = vcombine.low %v2326, %v2329
          %v2331 = vcombine.high %v2326, %v2329
          %v2333 = vunpack.c.l.s4 1983009808
          %v2334 = vunpack.c.0.s8 %v2333
          %v2335 = vlaneseq
          %v2336 = vshrl.u32 %v2335, 7
          %v2337 = vsub.s32 %v2334, %v2336
          %v2338 = vrot.slane %v2330, %v2337
          %v2340 = vunpack.c.l.s4 1983009808
          %v2341 = vunpack.c.0.s8 %v2340
          %v2342 = vlaneseq
          %v2343 = vshrl.u32 %v2342, 7
          %v2344 = vsub.s32 %v2341, %v2343
          %v2345 = vrot.slane %v2331, %v2344
          %v2346 = vcombine.high %v2338, %v2338
          %v2347 = vcombine.high %v2345, %v2345
          %v2349 = vshrl.u32 %v2338, 16
          %v2351 = vshll.u32 %v2338, 16
          %v2353 = vrot.slane %v2351, 1
          %v2354 = vor.u32 %v2349, %v2353
          %v2356 = vshrl.u32 %v2346, 16
          %v2358 = vshll.u32 %v2346, 16
          %v2360 = vrot.slane %v2358, 1
          %v2361 = vor.u32 %v2356, %v2360
          %v2363 = vshrl.u32 %v2345, 16
          %v2365 = vshll.u32 %v2345, 16
          %v2367 = vrot.slane %v2365, 1
          %v2368 = vor.u32 %v2363, %v2367
          %v2370 = vshrl.u32 %v2347, 16
          %v2372 = vshll.u32 %v2347, 16
          %v2374 = vrot.slane %v2372, 1
          %v2375 = vor.u32 %v2370, %v2374
          %v2508 = vunpack.c.l.b16 %v2187
          %v2509 = vunpack.c.h.b16 %v2187
          %v2510 = vunpack.c.l.b16 %v2188
          %v2511 = vunpack.c.h.b16 %v2188
          %v2512 = vunpack.c.l.b16 %v2189
          %v2513 = vunpack.c.h.b16 %v2189
          %v2514 = vunpack.c.l.b16 %v2190
          %v2515 = vunpack.c.h.b16 %v2190
          %v2516 = vunpack.c.l.b16 %v2191
          %v2517 = vunpack.c.h.b16 %v2191
          %v2518 = vunpack.c.l.b16 %v2192
          %v2519 = vunpack.c.h.b16 %v2192
          %v2520 = vunpack.c.l.b16 %v2193
          %v2521 = vunpack.c.h.b16 %v2193
          %v2522 = vunpack.c.l.b16 %v2194
          %v2523 = vunpack.c.h.b16 %v2194
          %v2524 = vunpack.c.l.b16 %v2195
          %v2525 = vunpack.c.h.b16 %v2195
          %v2526 = vunpack.c.l.b16 %v2196
          %v2527 = vunpack.c.h.b16 %v2196
          %v2528 = vunpack.c.l.b16 %v2197
          %v2529 = vunpack.c.h.b16 %v2197
          %v2530 = vunpack.c.l.b16 %v2198
          %v2531 = vunpack.c.h.b16 %v2198
          %v2532 = vunpack.c.l.b16 %v2199
          %v2533 = vunpack.c.h.b16 %v2199
          %v2534 = vunpack.c.l.b16 %v2200
          %v2535 = vunpack.c.h.b16 %v2200
          %v2536 = vunpack.c.l.b16 %v2201
          %v2537 = vunpack.c.h.b16 %v2201
          %v2538 = vunpack.c.l.b16 %v2202
          %v2539 = vunpack.c.h.b16 %v2202
          %v2540 = vunpack.c.l.b16 %v2203
          %v2541 = vunpack.c.h.b16 %v2203
          %v2542 = vunpack.c.l.b16 %v2204
          %v2543 = vunpack.c.h.b16 %v2204
          %v2544 = vunpack.c.l.b16 %v2205
          %v2545 = vunpack.c.h.b16 %v2205
          %v2546 = vunpack.c.l.b16 %v2206
          %v2547 = vunpack.c.h.b16 %v2206
          %v2548 = vunpack.c.l.b16 %v2207
          %v2549 = vunpack.c.h.b16 %v2207
          %v2550 = vunpack.c.l.b16 %v2208
          %v2551 = vunpack.c.h.b16 %v2208
          %v2552 = vunpack.c.l.b16 %v2209
          %v2553 = vunpack.c.h.b16 %v2209
          %v2554 = vunpack.c.l.b16 %v2210
          %v2555 = vunpack.c.h.b16 %v2210
          %v2556 = vunpack.c.l.b16 %v2211
          %v2557 = vunpack.c.h.b16 %v2211
          %v2558 = vunpack.c.l.b16 %v2212
          %v2559 = vunpack.c.h.b16 %v2212
          %v2560 = vunpack.c.l.b16 %v2213
          %v2561 = vunpack.c.h.b16 %v2213
          %v2562 = vunpack.c.l.b16 %v2214
          %v2563 = vunpack.c.h.b16 %v2214
          %v2564 = vunpack.c.l.b16 %v2215
          %v2565 = vunpack.c.h.b16 %v2215
          %v2566 = vunpack.c.l.b16 %v2216
          %v2567 = vunpack.c.h.b16 %v2216
          %v2568 = vunpack.c.l.b16 %v2217
          %v2569 = vunpack.c.h.b16 %v2217
          %v2570 = vunpack.c.l.b16 %v2218
          %v2571 = vunpack.c.h.b16 %v2218
          %v2572 = vunpack.c.l.b16 %v2219
          %v2573 = vunpack.c.h.b16 %v2219
          %v2574 = vunpack.c.l.b16 %v2220
          %v2575 = vunpack.c.h.b16 %v2220
          %v2576 = vunpack.c.l.b16 %v2221
          %v2577 = vunpack.c.h.b16 %v2221
          %v2578 = vunpack.c.l.b16 %v2222
          %v2579 = vunpack.c.h.b16 %v2222
          %v2580 = vunpack.c.l.b16 %v2223
          %v2581 = vunpack.c.h.b16 %v2223
          %v2582 = vunpack.c.l.b16 %v2224
          %v2583 = vunpack.c.h.b16 %v2224
          %v2584 = vunpack.c.l.b16 %v2225
          %v2585 = vunpack.c.h.b16 %v2225
          %v2586 = vunpack.c.l.b16 %v2226
          %v2587 = vunpack.c.h.b16 %v2226
          %v2588 = vunpack.c.l.b16 %v2227
          %v2589 = vunpack.c.h.b16 %v2227
          %v2590 = vunpack.c.l.b16 %v2228
          %v2591 = vunpack.c.h.b16 %v2228
          %v2592 = vunpack.c.l.b16 %v2229
          %v2593 = vunpack.c.h.b16 %v2229
          %v2594 = vunpack.c.l.b16 %v2230
          %v2595 = vunpack.c.h.b16 %v2230
          %v2596 = vunpack.c.l.b16 %v2231
          %v2597 = vunpack.c.h.b16 %v2231
          %v2598 = vunpack.c.l.b16 %v2232
          %v2599 = vunpack.c.h.b16 %v2232
          %v2600 = vunpack.c.l.b16 %v2233
          %v2601 = vunpack.c.h.b16 %v2233
          %v2602 = vunpack.c.l.b16 %v2234
          %v2603 = vunpack.c.h.b16 %v2234
          %v2604 = vunpack.c.l.b16 %v2235
          %v2605 = vunpack.c.h.b16 %v2235
          %v2606 = vunpack.c.l.b16 %v2236
          %v2607 = vunpack.c.h.b16 %v2236
          %v2608 = vunpack.c.l.b16 %v2237
          %v2609 = vunpack.c.h.b16 %v2237
          %v2610 = vunpack.c.l.b16 %v2238
          %v2611 = vunpack.c.h.b16 %v2238
          %v2612 = vunpack.c.l.b16 %v2239
          %v2613 = vunpack.c.h.b16 %v2239
          %v2614 = vunpack.c.l.b16 %v2240
          %v2615 = vunpack.c.h.b16 %v2240
          %v2616 = vunpack.c.l.b16 %v2241
          %v2617 = vunpack.c.h.b16 %v2241
          %v2618 = vunpack.c.l.b16 %v2242
          %v2619 = vunpack.c.h.b16 %v2242
          %v2620 = vunpack.c.l.b16 %v2243
          %v2621 = vunpack.c.h.b16 %v2243
          %v2622 = vunpack.c.l.b16 %v2244
          %v2623 = vunpack.c.h.b16 %v2244
          %v2624 = vunpack.c.l.b16 %v2245
          %v2625 = vunpack.c.h.b16 %v2245
          %v2626 = vunpack.c.l.b16 %v2246
          %v2627 = vunpack.c.h.b16 %v2246
          %v2628 = vunpack.c.l.b16 %v2247
          %v2629 = vunpack.c.h.b16 %v2247
          %v2630 = vunpack.c.l.b16 %v2248
          %v2631 = vunpack.c.h.b16 %v2248
          %v2632 = vunpack.c.l.b16 %v2249
          %v2633 = vunpack.c.h.b16 %v2249
          %v2634 = vunpack.c.l.b16 %v2250
          %v2635 = vunpack.c.h.b16 %v2250
          %v2636 = vunpack.c.l.b16 %v2251
          %v2637 = vunpack.c.h.b16 %v2251
          %v2638 = vunpack.c.l.b16 %v2252
          %v2639 = vunpack.c.h.b16 %v2252
          %v2640 = vunpack.c.l.b16 %v2253
          %v2641 = vunpack.c.h.b16 %v2253
          %v2642 = vunpack.c.l.b16 %v2254
          %v2643 = vunpack.c.h.b16 %v2254
          %v2644 = vunpack.c.l.b16 %v2255
          %v2645 = vunpack.c.h.b16 %v2255
          %v2646 = vunpack.c.l.b16 %v2256
          %v2647 = vunpack.c.h.b16 %v2256
          %v2648 = vunpack.c.l.b16 %v2257
          %v2649 = vunpack.c.h.b16 %v2257
          %v2650 = vunpack.c.l.b16 %v2258
          %v2651 = vunpack.c.h.b16 %v2258
          %v2652 = vunpack.c.l.b16 %v2259
          %v2653 = vunpack.c.h.b16 %v2259
          %v2654 = vunpack.c.l.b16 %v2260
          %v2655 = vunpack.c.h.b16 %v2260
          %v2656 = vunpack.c.l.b16 %v2261
          %v2657 = vunpack.c.h.b16 %v2261
          %v2658 = vunpack.c.l.b16 %v2262
          %v2659 = vunpack.c.h.b16 %v2262
          %v2660 = vunpack.c.l.b16 %v2263
          %v2661 = vunpack.c.h.b16 %v2263
          %v2662 = vunpack.c.l.b16 %v2264
          %v2663 = vunpack.c.h.b16 %v2264
          %v2664 = vunpack.c.l.b16 %v2265
          %v2665 = vunpack.c.h.b16 %v2265
          %v2666 = vunpack.c.l.b16 %v2266
          %v2667 = vunpack.c.h.b16 %v2266
          %v2668 = vunpack.c.l.b16 %v2267
          %v2669 = vunpack.c.h.b16 %v2267
          %v2670 = vunpack.c.l.b16 %v2268
          %v2671 = vunpack.c.h.b16 %v2268
          %v2672 = vunpack.c.l.b16 %v2269
          %v2673 = vunpack.c.h.b16 %v2269
          %v2674 = vunpack.c.l.b16 %v2270
          %v2675 = vunpack.c.h.b16 %v2270
          %v2676 = vunpack.c.l.b16 %v2271
          %v2677 = vunpack.c.h.b16 %v2271
          %v2678 = vunpack.c.l.b16 %v2272
          %v2679 = vunpack.c.h.b16 %v2272
          %v2680 = vunpack.c.l.b16 %v2273
          %v2681 = vunpack.c.h.b16 %v2273
          %v2682 = vunpack.c.l.b16 %v2274
          %v2683 = vunpack.c.h.b16 %v2274
          %v2684 = vunpack.c.l.b16 %v2275
          %v2685 = vunpack.c.h.b16 %v2275
          %v2686 = vunpack.c.l.b16 %v2276
          %v2687 = vunpack.c.h.b16 %v2276
          %v2688 = vunpack.c.l.b16 %v2277
          %v2689 = vunpack.c.h.b16 %v2277
          %v2690 = vunpack.c.l.b16 %v2278
          %v2691 = vunpack.c.h.b16 %v2278
          %v2692 = vunpack.c.l.b16 %v2279
          %v2693 = vunpack.c.h.b16 %v2279
          %v2694 = vunpack.c.l.b16 %v2280
          %v2695 = vunpack.c.h.b16 %v2280
          %v2696 = vunpack.c.l.b16 %v2281
          %v2697 = vunpack.c.h.b16 %v2281
          %v2698 = vunpack.c.l.b16 %v2282
          %v2699 = vunpack.c.h.b16 %v2282
          %v2700 = vunpack.c.l.b16 %v2283
          %v2701 = vunpack.c.h.b16 %v2283
          %v2702 = vunpack.c.l.b16 %v2284
          %v2703 = vunpack.c.h.b16 %v2284
          %v2704 = vunpack.c.l.b16 %v2285
          %v2705 = vunpack.c.h.b16 %v2285
          %v2706 = vunpack.c.l.b16 %v2286
          %v2707 = vunpack.c.h.b16 %v2286
          %v2708 = vunpack.c.l.b16 %v2287
          %v2709 = vunpack.c.h.b16 %v2287
          %v2710 = vunpack.c.l.b16 %v2288
          %v2711 = vunpack.c.h.b16 %v2288
          %v2712 = vunpack.c.l.b16 %v2289
          %v2713 = vunpack.c.h.b16 %v2289
          %v2714 = vunpack.c.l.b16 %v2290
          %v2715 = vunpack.c.h.b16 %v2290
          %v2716 = vunpack.c.l.b16 %v2291
          %v2717 = vunpack.c.h.b16 %v2291
          %v2718 = vunpack.c.l.b16 %v2292
          %v2719 = vunpack.c.h.b16 %v2292
          %v2720 = vunpack.c.l.b16 %v2293
          %v2721 = vunpack.c.h.b16 %v2293
          %v2722 = vunpack.c.l.b16 %v2294
          %v2723 = vunpack.c.h.b16 %v2294
          %v2724 = vunpack.c.l.b16 %v2295
          %v2725 = vunpack.c.h.b16 %v2295
          %v2726 = vunpack.c.l.b16 %v2296
          %v2727 = vunpack.c.h.b16 %v2296
          %v2728 = vunpack.c.l.b16 %v2297
          %v2729 = vunpack.c.h.b16 %v2297
          %v2730 = vunpack.c.l.b16 %v2298
          %v2731 = vunpack.c.h.b16 %v2298
          %v2732 = vunpack.c.l.b16 %v2299
          %v2733 = vunpack.c.h.b16 %v2299
          %v2734 = vunpack.c.l.b16 %v2300
          %v2735 = vunpack.c.h.b16 %v2300
          %v2736 = vunpack.c.l.b16 %v2301
          %v2737 = vunpack.c.h.b16 %v2301
          %v2738 = vunpack.c.l.b16 %v2302
          %v2739 = vunpack.c.h.b16 %v2302
          %v2740 = vunpack.c.l.b16 %v2303
          %v2741 = vunpack.c.h.b16 %v2303
          %v2742 = vunpack.c.l.b16 %v2304
          %v2743 = vunpack.c.h.b16 %v2304
          %v2744 = vunpack.c.l.b16 %v2305
          %v2745 = vunpack.c.h.b16 %v2305
          %v2746 = vunpack.c.l.b16 %v2306
          %v2747 = vunpack.c.h.b16 %v2306
          %v2748 = vunpack.c.l.b16 %v2307
          %v2749 = vunpack.c.h.b16 %v2307
          %v2750 = vunpack.c.l.b16 %v2308
          %v2751 = vunpack.c.h.b16 %v2308
          %v2752 = vunpack.c.l.b16 %v2309
          %v2753 = vunpack.c.h.b16 %v2309
          %v2754 = vunpack.c.l.b16 %v2310
          %v2755 = vunpack.c.h.b16 %v2310
          %v2756 = vunpack.c.l.b16 %v2311
          %v2757 = vunpack.c.h.b16 %v2311
          %v2758 = vunpack.c.l.b16 %v2312
          %v2759 = vunpack.c.h.b16 %v2312
          %v2760 = vunpack.c.l.b16 %v2313
          %v2761 = vunpack.c.h.b16 %v2313
          %v2762 = vunpack.c.l.b16 %v2314
          %v2763 = vunpack.c.h.b16 %v2314
          %v2764 = vpack.c.b16 %v2512, %v2508
          %v2765 = vpack.c.b16 %v2513, %v2509
          %v2766 = vpack.c.b16 %v2514, %v2510
          %v2767 = vpack.c.b16 %v2515, %v2511
          %v2768 = vpack.c.b16 %v2520, %v2516
          %v2769 = vpack.c.b16 %v2521, %v2517
          %v2770 = vpack.c.b16 %v2522, %v2518
          %v2771 = vpack.c.b16 %v2523, %v2519
          %v2772 = vpack.c.b16 %v2528, %v2524
          %v2773 = vpack.c.b16 %v2529, %v2525
          %v2774 = vpack.c.b16 %v2530, %v2526
          %v2775 = vpack.c.b16 %v2531, %v2527
          %v2776 = vpack.c.b16 %v2536, %v2532
          %v2777 = vpack.c.b16 %v2537, %v2533
          %v2778 = vpack.c.b16 %v2538, %v2534
          %v2779 = vpack.c.b16 %v2539, %v2535
          %v2780 = vpack.c.b16 %v2544, %v2540
          %v2781 = vpack.c.b16 %v2545, %v2541
          %v2782 = vpack.c.b16 %v2546, %v2542
          %v2783 = vpack.c.b16 %v2547, %v2543
          %v2784 = vpack.c.b16 %v2552, %v2548
          %v2785 = vpack.c.b16 %v2553, %v2549
          %v2786 = vpack.c.b16 %v2554, %v2550
          %v2787 = vpack.c.b16 %v2555, %v2551
          %v2788 = vpack.c.b16 %v2560, %v2556
          %v2789 = vpack.c.b16 %v2561, %v2557
          %v2790 = vpack.c.b16 %v2562, %v2558
          %v2791 = vpack.c.b16 %v2563, %v2559
          %v2792 = vpack.c.b16 %v2568, %v2564
          %v2793 = vpack.c.b16 %v2569, %v2565
          %v2794 = vpack.c.b16 %v2570, %v2566
          %v2795 = vpack.c.b16 %v2571, %v2567
          %v2796 = vpack.c.b16 %v2576, %v2572
          %v2797 = vpack.c.b16 %v2577, %v2573
          %v2798 = vpack.c.b16 %v2578, %v2574
          %v2799 = vpack.c.b16 %v2579, %v2575
          %v2800 = vpack.c.b16 %v2584, %v2580
          %v2801 = vpack.c.b16 %v2585, %v2581
          %v2802 = vpack.c.b16 %v2586, %v2582
          %v2803 = vpack.c.b16 %v2587, %v2583
          %v2804 = vpack.c.b16 %v2592, %v2588
          %v2805 = vpack.c.b16 %v2593, %v2589
          %v2806 = vpack.c.b16 %v2594, %v2590
          %v2807 = vpack.c.b16 %v2595, %v2591
          %v2808 = vpack.c.b16 %v2600, %v2596
          %v2809 = vpack.c.b16 %v2601, %v2597
          %v2810 = vpack.c.b16 %v2602, %v2598
          %v2811 = vpack.c.b16 %v2603, %v2599
          %v2812 = vpack.c.b16 %v2608, %v2604
          %v2813 = vpack.c.b16 %v2609, %v2605
          %v2814 = vpack.c.b16 %v2610, %v2606
          %v2815 = vpack.c.b16 %v2611, %v2607
          %v2816 = vpack.c.b16 %v2616, %v2612
          %v2817 = vpack.c.b16 %v2617, %v2613
          %v2818 = vpack.c.b16 %v2618, %v2614
          %v2819 = vpack.c.b16 %v2619, %v2615
          %v2820 = vpack.c.b16 %v2624, %v2620
          %v2821 = vpack.c.b16 %v2625, %v2621
          %v2822 = vpack.c.b16 %v2626, %v2622
          %v2823 = vpack.c.b16 %v2627, %v2623
          %v2824 = vpack.c.b16 %v2632, %v2628
          %v2825 = vpack.c.b16 %v2633, %v2629
          %v2826 = vpack.c.b16 %v2634, %v2630
          %v2827 = vpack.c.b16 %v2635, %v2631
          %v2828 = vpack.c.b16 %v2640, %v2636
          %v2829 = vpack.c.b16 %v2641, %v2637
          %v2830 = vpack.c.b16 %v2642, %v2638
          %v2831 = vpack.c.b16 %v2643, %v2639
          %v2832 = vpack.c.b16 %v2648, %v2644
          %v2833 = vpack.c.b16 %v2649, %v2645
          %v2834 = vpack.c.b16 %v2650, %v2646
          %v2835 = vpack.c.b16 %v2651, %v2647
          %v2836 = vpack.c.b16 %v2656, %v2652
          %v2837 = vpack.c.b16 %v2657, %v2653
          %v2838 = vpack.c.b16 %v2658, %v2654
          %v2839 = vpack.c.b16 %v2659, %v2655
          %v2840 = vpack.c.b16 %v2664, %v2660
          %v2841 = vpack.c.b16 %v2665, %v2661
          %v2842 = vpack.c.b16 %v2666, %v2662
          %v2843 = vpack.c.b16 %v2667, %v2663
          %v2844 = vpack.c.b16 %v2672, %v2668
          %v2845 = vpack.c.b16 %v2673, %v2669
          %v2846 = vpack.c.b16 %v2674, %v2670
          %v2847 = vpack.c.b16 %v2675, %v2671
          %v2848 = vpack.c.b16 %v2680, %v2676
          %v2849 = vpack.c.b16 %v2681, %v2677
          %v2850 = vpack.c.b16 %v2682, %v2678
          %v2851 = vpack.c.b16 %v2683, %v2679
          %v2852 = vpack.c.b16 %v2688, %v2684
          %v2853 = vpack.c.b16 %v2689, %v2685
          %v2854 = vpack.c.b16 %v2690, %v2686
          %v2855 = vpack.c.b16 %v2691, %v2687
          %v2856 = vpack.c.b16 %v2696, %v2692
          %v2857 = vpack.c.b16 %v2697, %v2693
          %v2858 = vpack.c.b16 %v2698, %v2694
          %v2859 = vpack.c.b16 %v2699, %v2695
          %v2860 = vpack.c.b16 %v2704, %v2700
          %v2861 = vpack.c.b16 %v2705, %v2701
          %v2862 = vpack.c.b16 %v2706, %v2702
          %v2863 = vpack.c.b16 %v2707, %v2703
          %v2864 = vpack.c.b16 %v2712, %v2708
          %v2865 = vpack.c.b16 %v2713, %v2709
          %v2866 = vpack.c.b16 %v2714, %v2710
          %v2867 = vpack.c.b16 %v2715, %v2711
          %v2868 = vpack.c.b16 %v2720, %v2716
          %v2869 = vpack.c.b16 %v2721, %v2717
          %v2870 = vpack.c.b16 %v2722, %v2718
          %v2871 = vpack.c.b16 %v2723, %v2719
          %v2872 = vpack.c.b16 %v2728, %v2724
          %v2873 = vpack.c.b16 %v2729, %v2725
          %v2874 = vpack.c.b16 %v2730, %v2726
          %v2875 = vpack.c.b16 %v2731, %v2727
          %v2876 = vpack.c.b16 %v2736, %v2732
          %v2877 = vpack.c.b16 %v2737, %v2733
          %v2878 = vpack.c.b16 %v2738, %v2734
          %v2879 = vpack.c.b16 %v2739, %v2735
          %v2880 = vpack.c.b16 %v2744, %v2740
          %v2881 = vpack.c.b16 %v2745, %v2741
          %v2882 = vpack.c.b16 %v2746, %v2742
          %v2883 = vpack.c.b16 %v2747, %v2743
          %v2884 = vpack.c.b16 %v2752, %v2748
          %v2885 = vpack.c.b16 %v2753, %v2749
          %v2886 = vpack.c.b16 %v2754, %v2750
          %v2887 = vpack.c.b16 %v2755, %v2751
          %v2888 = vpack.c.b16 %v2760, %v2756
          %v2889 = vpack.c.b16 %v2761, %v2757
          %v2890 = vpack.c.b16 %v2762, %v2758
          %v2891 = vpack.c.b16 %v2763, %v2759
          %3020 = vmatprep.subr.bf16.mxu0 %v2765
          %3021 = vmatpush1.bf16.msra.mxu0 %v2764
          %3022 = vmatprep.subr.bf16.mxu0 %v2769
          %3023 = vmatpush1.bf16.msra.mxu0 %v2768
          %3024 = vmatprep.subr.bf16.mxu0 %v2773
          %3025 = vmatpush1.bf16.msra.mxu0 %v2772
          %3026 = vmatprep.subr.bf16.mxu0 %v2777
          %3027 = vmatpush1.bf16.msra.mxu0 %v2776
          %3028 = vmatprep.subr.bf16.mxu0 %v2781
          %3029 = vmatpush1.bf16.msra.mxu0 %v2780
          %3030 = vmatprep.subr.bf16.mxu0 %v2785
          %3031 = vmatpush1.bf16.msra.mxu0 %v2784
          %3032 = vmatprep.subr.bf16.mxu0 %v2789
          %3033 = vmatpush1.bf16.msra.mxu0 %v2788
          %3034 = vmatprep.subr.bf16.mxu0 %v2793
          %3035 = vmatpush1.bf16.msra.mxu0 %v2792
          %3036 = vmatprep.subr.bf16.mxu0 %v2797
          %3037 = vmatpush1.bf16.msra.mxu0 %v2796
          %3038 = vmatprep.subr.bf16.mxu0 %v2801
          %3039 = vmatpush1.bf16.msra.mxu0 %v2800
          %3040 = vmatprep.subr.bf16.mxu0 %v2805
          %3041 = vmatpush1.bf16.msra.mxu0 %v2804
          %3042 = vmatprep.subr.bf16.mxu0 %v2809
          %3043 = vmatpush1.bf16.msra.mxu0 %v2808
          %3044 = vmatprep.subr.bf16.mxu0 %v2813
          %3045 = vmatpush1.bf16.msra.mxu0 %v2812
          %3046 = vmatprep.subr.bf16.mxu0 %v2817
          %3047 = vmatpush1.bf16.msra.mxu0 %v2816
          %3048 = vmatprep.subr.bf16.mxu0 %v2821
          %3049 = vmatpush1.bf16.msra.mxu0 %v2820
          %3050 = vmatprep.subr.bf16.mxu0 %v2825
          %3051 = vmatpush1.bf16.msra.mxu0 %v2824
          %3052 = vmatprep.mubr.bf16.mxu0 %v2361
          %3053 = vmatmul.mubr.bf16.gmra.mrb[0].mxu0 %v2354
          %v3054 = vpop.f32.mrb[0].mxu0
          %v3055 = vadd.f32 0.0, %v3054
          %v3056 = vpop.f32.mrb[0].mxu0
          %v3057 = vadd.f32 0.0, %v3056
          %v3058 = vpop.f32.mrb[0].mxu0
          %v3059 = vpop.f32.mrb[0].mxu0
          %3060 = vdwg.mxu0
          %3061 = vmatprep.subr.bf16.mxu0 %v2829
          %3062 = vmatpush1.bf16.msra.mxu0 %v2828
          %3063 = vmatprep.subr.bf16.mxu0 %v2833
          %3064 = vmatpush1.bf16.msra.mxu0 %v2832
          %3065 = vmatprep.subr.bf16.mxu0 %v2837
          %3066 = vmatpush1.bf16.msra.mxu0 %v2836
          %3067 = vmatprep.subr.bf16.mxu0 %v2841
          %3068 = vmatpush1.bf16.msra.mxu0 %v2840
          %3069 = vmatprep.subr.bf16.mxu0 %v2845
          %3070 = vmatpush1.bf16.msra.mxu0 %v2844
          %3071 = vmatprep.subr.bf16.mxu0 %v2849
          %3072 = vmatpush1.bf16.msra.mxu0 %v2848
          %3073 = vmatprep.subr.bf16.mxu0 %v2853
          %3074 = vmatpush1.bf16.msra.mxu0 %v2852
          %3075 = vmatprep.subr.bf16.mxu0 %v2857
          %3076 = vmatpush1.bf16.msra.mxu0 %v2856
          %3077 = vmatprep.subr.bf16.mxu0 %v2861
          %3078 = vmatpush1.bf16.msra.mxu0 %v2860
          %3079 = vmatprep.subr.bf16.mxu0 %v2865
          %3080 = vmatpush1.bf16.msra.mxu0 %v2864
          %3081 = vmatprep.subr.bf16.mxu0 %v2869
          %3082 = vmatpush1.bf16.msra.mxu0 %v2868
          %3083 = vmatprep.subr.bf16.mxu0 %v2873
          %3084 = vmatpush1.bf16.msra.mxu0 %v2872
          %3085 = vmatprep.subr.bf16.mxu0 %v2877
          %3086 = vmatpush1.bf16.msra.mxu0 %v2876
          %3087 = vmatprep.subr.bf16.mxu0 %v2881
          %3088 = vmatpush1.bf16.msra.mxu0 %v2880
          %3089 = vmatprep.subr.bf16.mxu0 %v2885
          %3090 = vmatpush1.bf16.msra.mxu0 %v2884
          %3091 = vmatprep.subr.bf16.mxu0 %v2889
          %3092 = vmatpush1.bf16.msra.mxu0 %v2888
          %3093 = vmatprep.mubr.bf16.mxu0 %v2375
          %3094 = vmatmul.mubr.bf16.gmra.mrb[0].mxu0 %v2368
          %v3095 = vpop.f32.mrb[0].mxu0
          %v3096 = vadd.f32 %v3055, %v3095
          %v3097 = vpop.f32.mrb[0].mxu0
          %v3098 = vadd.f32 %v3057, %v3097
          %v3099 = vpop.f32.mrb[0].mxu0
          %v3100 = vpop.f32.mrb[0].mxu0
          %3101 = vdwg.mxu0
          %3102 = vmatprep.subr.bf16.mxu0 %v2767
          %3103 = vmatpush1.bf16.msra.mxu0 %v2766
          %3104 = vmatprep.subr.bf16.mxu0 %v2771
          %3105 = vmatpush1.bf16.msra.mxu0 %v2770
          %3106 = vmatprep.subr.bf16.mxu0 %v2775
          %3107 = vmatpush1.bf16.msra.mxu0 %v2774
          %3108 = vmatprep.subr.bf16.mxu0 %v2779
          %3109 = vmatpush1.bf16.msra.mxu0 %v2778
          %3110 = vmatprep.subr.bf16.mxu0 %v2783
          %3111 = vmatpush1.bf16.msra.mxu0 %v2782
          %3112 = vmatprep.subr.bf16.mxu0 %v2787
          %3113 = vmatpush1.bf16.msra.mxu0 %v2786
          %3114 = vmatprep.subr.bf16.mxu0 %v2791
          %3115 = vmatpush1.bf16.msra.mxu0 %v2790
          %3116 = vmatprep.subr.bf16.mxu0 %v2795
          %3117 = vmatpush1.bf16.msra.mxu0 %v2794
          %3118 = vmatprep.subr.bf16.mxu0 %v2799
          %3119 = vmatpush1.bf16.msra.mxu0 %v2798
          %3120 = vmatprep.subr.bf16.mxu0 %v2803
          %3121 = vmatpush1.bf16.msra.mxu0 %v2802
          %3122 = vmatprep.subr.bf16.mxu0 %v2807
          %3123 = vmatpush1.bf16.msra.mxu0 %v2806
          %3124 = vmatprep.subr.bf16.mxu0 %v2811
          %3125 = vmatpush1.bf16.msra.mxu0 %v2810
          %3126 = vmatprep.subr.bf16.mxu0 %v2815
          %3127 = vmatpush1.bf16.msra.mxu0 %v2814
          %3128 = vmatprep.subr.bf16.mxu0 %v2819
          %3129 = vmatpush1.bf16.msra.mxu0 %v2818
          %3130 = vmatprep.subr.bf16.mxu0 %v2823
          %3131 = vmatpush1.bf16.msra.mxu0 %v2822
          %3132 = vmatprep.subr.bf16.mxu0 %v2827
          %3133 = vmatpush1.bf16.msra.mxu0 %v2826
          %3134 = vmatprep.mubr.bf16.mxu0 %v2361
          %3135 = vmatmul.mubr.bf16.gmra.mrb[0].mxu0 %v2354
          %v3136 = vpop.f32.mrb[0].mxu0
          %v3137 = vadd.f32 0.0, %v3136
          %v3138 = vpop.f32.mrb[0].mxu0
          %v3139 = vadd.f32 0.0, %v3138
          %v3140 = vpop.f32.mrb[0].mxu0
          %v3141 = vpop.f32.mrb[0].mxu0
          %3142 = vdwg.mxu0
          %3143 = vmatprep.subr.bf16.mxu0 %v2831
          %3144 = vmatpush1.bf16.msra.mxu0 %v2830
          %3145 = vmatprep.subr.bf16.mxu0 %v2835
          %3146 = vmatpush1.bf16.msra.mxu0 %v2834
          %3147 = vmatprep.subr.bf16.mxu0 %v2839
          %3148 = vmatpush1.bf16.msra.mxu0 %v2838
          %3149 = vmatprep.subr.bf16.mxu0 %v2843
          %3150 = vmatpush1.bf16.msra.mxu0 %v2842
          %3151 = vmatprep.subr.bf16.mxu0 %v2847
          %3152 = vmatpush1.bf16.msra.mxu0 %v2846
          %3153 = vmatprep.subr.bf16.mxu0 %v2851
          %3154 = vmatpush1.bf16.msra.mxu0 %v2850
          %3155 = vmatprep.subr.bf16.mxu0 %v2855
          %3156 = vmatpush1.bf16.msra.mxu0 %v2854
          %3157 = vmatprep.subr.bf16.mxu0 %v2859
          %3158 = vmatpush1.bf16.msra.mxu0 %v2858
          %3159 = vmatprep.subr.bf16.mxu0 %v2863
          %3160 = vmatpush1.bf16.msra.mxu0 %v2862
          %3161 = vmatprep.subr.bf16.mxu0 %v2867
          %3162 = vmatpush1.bf16.msra.mxu0 %v2866
          %3163 = vmatprep.subr.bf16.mxu0 %v2871
          %3164 = vmatpush1.bf16.msra.mxu0 %v2870
          %3165 = vmatprep.subr.bf16.mxu0 %v2875
          %3166 = vmatpush1.bf16.msra.mxu0 %v2874
          %3167 = vmatprep.subr.bf16.mxu0 %v2879
          %3168 = vmatpush1.bf16.msra.mxu0 %v2878
          %3169 = vmatprep.subr.bf16.mxu0 %v2883
          %3170 = vmatpush1.bf16.msra.mxu0 %v2882
          %3171 = vmatprep.subr.bf16.mxu0 %v2887
          %3172 = vmatpush1.bf16.msra.mxu0 %v2886
          %3173 = vmatprep.subr.bf16.mxu0 %v2891
          %3174 = vmatpush1.bf16.msra.mxu0 %v2890
          %3175 = vmatprep.mubr.bf16.mxu0 %v2375
          %3176 = vmatmul.mubr.bf16.gmra.mrb[0].mxu0 %v2368
          %v3177 = vpop.f32.mrb[0].mxu0
          %v3178 = vadd.f32 %v3137, %v3177
          %v3179 = vpop.f32.mrb[0].mxu0
          %v3180 = vadd.f32 %v3139, %v3179
          %v3181 = vpop.f32.mrb[0].mxu0
          %v3182 = vpop.f32.mrb[0].mxu0
          %3183 = vdwg.mxu0
          %v3316 = vunpack.c.l.b16 %v2059
          %v3317 = vunpack.c.h.b16 %v2059
          %v3318 = vunpack.c.l.b16 %v2060
          %v3319 = vunpack.c.h.b16 %v2060
          %v3320 = vunpack.c.l.b16 %v2061
          %v3321 = vunpack.c.h.b16 %v2061
          %v3322 = vunpack.c.l.b16 %v2062
          %v3323 = vunpack.c.h.b16 %v2062
          %v3324 = vunpack.c.l.b16 %v2063
          %v3325 = vunpack.c.h.b16 %v2063
          %v3326 = vunpack.c.l.b16 %v2064
          %v3327 = vunpack.c.h.b16 %v2064
          %v3328 = vunpack.c.l.b16 %v2065
          %v3329 = vunpack.c.h.b16 %v2065
          %v3330 = vunpack.c.l.b16 %v2066
          %v3331 = vunpack.c.h.b16 %v2066
          %v3332 = vunpack.c.l.b16 %v2067
          %v3333 = vunpack.c.h.b16 %v2067
          %v3334 = vunpack.c.l.b16 %v2068
          %v3335 = vunpack.c.h.b16 %v2068
          %v3336 = vunpack.c.l.b16 %v2069
          %v3337 = vunpack.c.h.b16 %v2069
          %v3338 = vunpack.c.l.b16 %v2070
          %v3339 = vunpack.c.h.b16 %v2070
          %v3340 = vunpack.c.l.b16 %v2071
          %v3341 = vunpack.c.h.b16 %v2071
          %v3342 = vunpack.c.l.b16 %v2072
          %v3343 = vunpack.c.h.b16 %v2072
          %v3344 = vunpack.c.l.b16 %v2073
          %v3345 = vunpack.c.h.b16 %v2073
          %v3346 = vunpack.c.l.b16 %v2074
          %v3347 = vunpack.c.h.b16 %v2074
          %v3348 = vunpack.c.l.b16 %v2075
          %v3349 = vunpack.c.h.b16 %v2075
          %v3350 = vunpack.c.l.b16 %v2076
          %v3351 = vunpack.c.h.b16 %v2076
          %v3352 = vunpack.c.l.b16 %v2077
          %v3353 = vunpack.c.h.b16 %v2077
          %v3354 = vunpack.c.l.b16 %v2078
          %v3355 = vunpack.c.h.b16 %v2078
          %v3356 = vunpack.c.l.b16 %v2079
          %v3357 = vunpack.c.h.b16 %v2079
          %v3358 = vunpack.c.l.b16 %v2080
          %v3359 = vunpack.c.h.b16 %v2080
          %v3360 = vunpack.c.l.b16 %v2081
          %v3361 = vunpack.c.h.b16 %v2081
          %v3362 = vunpack.c.l.b16 %v2082
          %v3363 = vunpack.c.h.b16 %v2082
          %v3364 = vunpack.c.l.b16 %v2083
          %v3365 = vunpack.c.h.b16 %v2083
          %v3366 = vunpack.c.l.b16 %v2084
          %v3367 = vunpack.c.h.b16 %v2084
          %v3368 = vunpack.c.l.b16 %v2085
          %v3369 = vunpack.c.h.b16 %v2085
          %v3370 = vunpack.c.l.b16 %v2086
          %v3371 = vunpack.c.h.b16 %v2086
          %v3372 = vunpack.c.l.b16 %v2087
          %v3373 = vunpack.c.h.b16 %v2087
          %v3374 = vunpack.c.l.b16 %v2088
          %v3375 = vunpack.c.h.b16 %v2088
          %v3376 = vunpack.c.l.b16 %v2089
          %v3377 = vunpack.c.h.b16 %v2089
          %v3378 = vunpack.c.l.b16 %v2090
          %v3379 = vunpack.c.h.b16 %v2090
          %v3380 = vunpack.c.l.b16 %v2091
          %v3381 = vunpack.c.h.b16 %v2091
          %v3382 = vunpack.c.l.b16 %v2092
          %v3383 = vunpack.c.h.b16 %v2092
          %v3384 = vunpack.c.l.b16 %v2093
          %v3385 = vunpack.c.h.b16 %v2093
          %v3386 = vunpack.c.l.b16 %v2094
          %v3387 = vunpack.c.h.b16 %v2094
          %v3388 = vunpack.c.l.b16 %v2095
          %v3389 = vunpack.c.h.b16 %v2095
          %v3390 = vunpack.c.l.b16 %v2096
          %v3391 = vunpack.c.h.b16 %v2096
          %v3392 = vunpack.c.l.b16 %v2097
          %v3393 = vunpack.c.h.b16 %v2097
          %v3394 = vunpack.c.l.b16 %v2098
          %v3395 = vunpack.c.h.b16 %v2098
          %v3396 = vunpack.c.l.b16 %v2099
          %v3397 = vunpack.c.h.b16 %v2099
          %v3398 = vunpack.c.l.b16 %v2100
          %v3399 = vunpack.c.h.b16 %v2100
          %v3400 = vunpack.c.l.b16 %v2101
          %v3401 = vunpack.c.h.b16 %v2101
          %v3402 = vunpack.c.l.b16 %v2102
          %v3403 = vunpack.c.h.b16 %v2102
          %v3404 = vunpack.c.l.b16 %v2103
          %v3405 = vunpack.c.h.b16 %v2103
          %v3406 = vunpack.c.l.b16 %v2104
          %v3407 = vunpack.c.h.b16 %v2104
          %v3408 = vunpack.c.l.b16 %v2105
          %v3409 = vunpack.c.h.b16 %v2105
          %v3410 = vunpack.c.l.b16 %v2106
          %v3411 = vunpack.c.h.b16 %v2106
          %v3412 = vunpack.c.l.b16 %v2107
          %v3413 = vunpack.c.h.b16 %v2107
          %v3414 = vunpack.c.l.b16 %v2108
          %v3415 = vunpack.c.h.b16 %v2108
          %v3416 = vunpack.c.l.b16 %v2109
          %v3417 = vunpack.c.h.b16 %v2109
          %v3418 = vunpack.c.l.b16 %v2110
          %v3419 = vunpack.c.h.b16 %v2110
          %v3420 = vunpack.c.l.b16 %v2111
          %v3421 = vunpack.c.h.b16 %v2111
          %v3422 = vunpack.c.l.b16 %v2112
          %v3423 = vunpack.c.h.b16 %v2112
          %v3424 = vunpack.c.l.b16 %v2113
          %v3425 = vunpack.c.h.b16 %v2113
          %v3426 = vunpack.c.l.b16 %v2114
          %v3427 = vunpack.c.h.b16 %v2114
          %v3428 = vunpack.c.l.b16 %v2115
          %v3429 = vunpack.c.h.b16 %v2115
          %v3430 = vunpack.c.l.b16 %v2116
          %v3431 = vunpack.c.h.b16 %v2116
          %v3432 = vunpack.c.l.b16 %v2117
          %v3433 = vunpack.c.h.b16 %v2117
          %v3434 = vunpack.c.l.b16 %v2118
          %v3435 = vunpack.c.h.b16 %v2118
          %v3436 = vunpack.c.l.b16 %v2119
          %v3437 = vunpack.c.h.b16 %v2119
          %v3438 = vunpack.c.l.b16 %v2120
          %v3439 = vunpack.c.h.b16 %v2120
          %v3440 = vunpack.c.l.b16 %v2121
          %v3441 = vunpack.c.h.b16 %v2121
          %v3442 = vunpack.c.l.b16 %v2122
          %v3443 = vunpack.c.h.b16 %v2122
          %v3444 = vunpack.c.l.b16 %v2123
          %v3445 = vunpack.c.h.b16 %v2123
          %v3446 = vunpack.c.l.b16 %v2124
          %v3447 = vunpack.c.h.b16 %v2124
          %v3448 = vunpack.c.l.b16 %v2125
          %v3449 = vunpack.c.h.b16 %v2125
          %v3450 = vunpack.c.l.b16 %v2126
          %v3451 = vunpack.c.h.b16 %v2126
          %v3452 = vunpack.c.l.b16 %v2127
          %v3453 = vunpack.c.h.b16 %v2127
          %v3454 = vunpack.c.l.b16 %v2128
          %v3455 = vunpack.c.h.b16 %v2128
          %v3456 = vunpack.c.l.b16 %v2129
          %v3457 = vunpack.c.h.b16 %v2129
          %v3458 = vunpack.c.l.b16 %v2130
          %v3459 = vunpack.c.h.b16 %v2130
          %v3460 = vunpack.c.l.b16 %v2131
          %v3461 = vunpack.c.h.b16 %v2131
          %v3462 = vunpack.c.l.b16 %v2132
          %v3463 = vunpack.c.h.b16 %v2132
          %v3464 = vunpack.c.l.b16 %v2133
          %v3465 = vunpack.c.h.b16 %v2133
          %v3466 = vunpack.c.l.b16 %v2134
          %v3467 = vunpack.c.h.b16 %v2134
          %v3468 = vunpack.c.l.b16 %v2135
          %v3469 = vunpack.c.h.b16 %v2135
          %v3470 = vunpack.c.l.b16 %v2136
          %v3471 = vunpack.c.h.b16 %v2136
          %v3472 = vunpack.c.l.b16 %v2137
          %v3473 = vunpack.c.h.b16 %v2137
          %v3474 = vunpack.c.l.b16 %v2138
          %v3475 = vunpack.c.h.b16 %v2138
          %v3476 = vunpack.c.l.b16 %v2139
          %v3477 = vunpack.c.h.b16 %v2139
          %v3478 = vunpack.c.l.b16 %v2140
          %v3479 = vunpack.c.h.b16 %v2140
          %v3480 = vunpack.c.l.b16 %v2141
          %v3481 = vunpack.c.h.b16 %v2141
          %v3482 = vunpack.c.l.b16 %v2142
          %v3483 = vunpack.c.h.b16 %v2142
          %v3484 = vunpack.c.l.b16 %v2143
          %v3485 = vunpack.c.h.b16 %v2143
          %v3486 = vunpack.c.l.b16 %v2144
          %v3487 = vunpack.c.h.b16 %v2144
          %v3488 = vunpack.c.l.b16 %v2145
          %v3489 = vunpack.c.h.b16 %v2145
          %v3490 = vunpack.c.l.b16 %v2146
          %v3491 = vunpack.c.h.b16 %v2146
          %v3492 = vunpack.c.l.b16 %v2147
          %v3493 = vunpack.c.h.b16 %v2147
          %v3494 = vunpack.c.l.b16 %v2148
          %v3495 = vunpack.c.h.b16 %v2148
          %v3496 = vunpack.c.l.b16 %v2149
          %v3497 = vunpack.c.h.b16 %v2149
          %v3498 = vunpack.c.l.b16 %v2150
          %v3499 = vunpack.c.h.b16 %v2150
          %v3500 = vunpack.c.l.b16 %v2151
          %v3501 = vunpack.c.h.b16 %v2151
          %v3502 = vunpack.c.l.b16 %v2152
          %v3503 = vunpack.c.h.b16 %v2152
          %v3504 = vunpack.c.l.b16 %v2153
          %v3505 = vunpack.c.h.b16 %v2153
          %v3506 = vunpack.c.l.b16 %v2154
          %v3507 = vunpack.c.h.b16 %v2154
          %v3508 = vunpack.c.l.b16 %v2155
          %v3509 = vunpack.c.h.b16 %v2155
          %v3510 = vunpack.c.l.b16 %v2156
          %v3511 = vunpack.c.h.b16 %v2156
          %v3512 = vunpack.c.l.b16 %v2157
          %v3513 = vunpack.c.h.b16 %v2157
          %v3514 = vunpack.c.l.b16 %v2158
          %v3515 = vunpack.c.h.b16 %v2158
          %v3516 = vunpack.c.l.b16 %v2159
          %v3517 = vunpack.c.h.b16 %v2159
          %v3518 = vunpack.c.l.b16 %v2160
          %v3519 = vunpack.c.h.b16 %v2160
          %v3520 = vunpack.c.l.b16 %v2161
          %v3521 = vunpack.c.h.b16 %v2161
          %v3522 = vunpack.c.l.b16 %v2162
          %v3523 = vunpack.c.h.b16 %v2162
          %v3524 = vunpack.c.l.b16 %v2163
          %v3525 = vunpack.c.h.b16 %v2163
          %v3526 = vunpack.c.l.b16 %v2164
          %v3527 = vunpack.c.h.b16 %v2164
          %v3528 = vunpack.c.l.b16 %v2165
          %v3529 = vunpack.c.h.b16 %v2165
          %v3530 = vunpack.c.l.b16 %v2166
          %v3531 = vunpack.c.h.b16 %v2166
          %v3532 = vunpack.c.l.b16 %v2167
          %v3533 = vunpack.c.h.b16 %v2167
          %v3534 = vunpack.c.l.b16 %v2168
          %v3535 = vunpack.c.h.b16 %v2168
          %v3536 = vunpack.c.l.b16 %v2169
          %v3537 = vunpack.c.h.b16 %v2169
          %v3538 = vunpack.c.l.b16 %v2170
          %v3539 = vunpack.c.h.b16 %v2170
          %v3540 = vunpack.c.l.b16 %v2171
          %v3541 = vunpack.c.h.b16 %v2171
          %v3542 = vunpack.c.l.b16 %v2172
          %v3543 = vunpack.c.h.b16 %v2172
          %v3544 = vunpack.c.l.b16 %v2173
          %v3545 = vunpack.c.h.b16 %v2173
          %v3546 = vunpack.c.l.b16 %v2174
          %v3547 = vunpack.c.h.b16 %v2174
          %v3548 = vunpack.c.l.b16 %v2175
          %v3549 = vunpack.c.h.b16 %v2175
          %v3550 = vunpack.c.l.b16 %v2176
          %v3551 = vunpack.c.h.b16 %v2176
          %v3552 = vunpack.c.l.b16 %v2177
          %v3553 = vunpack.c.h.b16 %v2177
          %v3554 = vunpack.c.l.b16 %v2178
          %v3555 = vunpack.c.h.b16 %v2178
          %v3556 = vunpack.c.l.b16 %v2179
          %v3557 = vunpack.c.h.b16 %v2179
          %v3558 = vunpack.c.l.b16 %v2180
          %v3559 = vunpack.c.h.b16 %v2180
          %v3560 = vunpack.c.l.b16 %v2181
          %v3561 = vunpack.c.h.b16 %v2181
          %v3562 = vunpack.c.l.b16 %v2182
          %v3563 = vunpack.c.h.b16 %v2182
          %v3564 = vunpack.c.l.b16 %v2183
          %v3565 = vunpack.c.h.b16 %v2183
          %v3566 = vunpack.c.l.b16 %v2184
          %v3567 = vunpack.c.h.b16 %v2184
          %v3568 = vunpack.c.l.b16 %v2185
          %v3569 = vunpack.c.h.b16 %v2185
          %v3570 = vunpack.c.l.b16 %v2186
          %v3571 = vunpack.c.h.b16 %v2186
          %v3572 = vpack.c.b16 %v3320, %v3316
          %v3573 = vpack.c.b16 %v3321, %v3317
          %v3574 = vpack.c.b16 %v3322, %v3318
          %v3575 = vpack.c.b16 %v3323, %v3319
          %v3576 = vpack.c.b16 %v3328, %v3324
          %v3577 = vpack.c.b16 %v3329, %v3325
          %v3578 = vpack.c.b16 %v3330, %v3326
          %v3579 = vpack.c.b16 %v3331, %v3327
          %v3580 = vpack.c.b16 %v3336, %v3332
          %v3581 = vpack.c.b16 %v3337, %v3333
          %v3582 = vpack.c.b16 %v3338, %v3334
          %v3583 = vpack.c.b16 %v3339, %v3335
          %v3584 = vpack.c.b16 %v3344, %v3340
          %v3585 = vpack.c.b16 %v3345, %v3341
          %v3586 = vpack.c.b16 %v3346, %v3342
          %v3587 = vpack.c.b16 %v3347, %v3343
          %v3588 = vpack.c.b16 %v3352, %v3348
          %v3589 = vpack.c.b16 %v3353, %v3349
          %v3590 = vpack.c.b16 %v3354, %v3350
          %v3591 = vpack.c.b16 %v3355, %v3351
          %v3592 = vpack.c.b16 %v3360, %v3356
          %v3593 = vpack.c.b16 %v3361, %v3357
          %v3594 = vpack.c.b16 %v3362, %v3358
          %v3595 = vpack.c.b16 %v3363, %v3359
          %v3596 = vpack.c.b16 %v3368, %v3364
          %v3597 = vpack.c.b16 %v3369, %v3365
          %v3598 = vpack.c.b16 %v3370, %v3366
          %v3599 = vpack.c.b16 %v3371, %v3367
          %v3600 = vpack.c.b16 %v3376, %v3372
          %v3601 = vpack.c.b16 %v3377, %v3373
          %v3602 = vpack.c.b16 %v3378, %v3374
          %v3603 = vpack.c.b16 %v3379, %v3375
          %v3604 = vpack.c.b16 %v3384, %v3380
          %v3605 = vpack.c.b16 %v3385, %v3381
          %v3606 = vpack.c.b16 %v3386, %v3382
          %v3607 = vpack.c.b16 %v3387, %v3383
          %v3608 = vpack.c.b16 %v3392, %v3388
          %v3609 = vpack.c.b16 %v3393, %v3389
          %v3610 = vpack.c.b16 %v3394, %v3390
          %v3611 = vpack.c.b16 %v3395, %v3391
          %v3612 = vpack.c.b16 %v3400, %v3396
          %v3613 = vpack.c.b16 %v3401, %v3397
          %v3614 = vpack.c.b16 %v3402, %v3398
          %v3615 = vpack.c.b16 %v3403, %v3399
          %v3616 = vpack.c.b16 %v3408, %v3404
          %v3617 = vpack.c.b16 %v3409, %v3405
          %v3618 = vpack.c.b16 %v3410, %v3406
          %v3619 = vpack.c.b16 %v3411, %v3407
          %v3620 = vpack.c.b16 %v3416, %v3412
          %v3621 = vpack.c.b16 %v3417, %v3413
          %v3622 = vpack.c.b16 %v3418, %v3414
          %v3623 = vpack.c.b16 %v3419, %v3415
          %v3624 = vpack.c.b16 %v3424, %v3420
          %v3625 = vpack.c.b16 %v3425, %v3421
          %v3626 = vpack.c.b16 %v3426, %v3422
          %v3627 = vpack.c.b16 %v3427, %v3423
          %v3628 = vpack.c.b16 %v3432, %v3428
          %v3629 = vpack.c.b16 %v3433, %v3429
          %v3630 = vpack.c.b16 %v3434, %v3430
          %v3631 = vpack.c.b16 %v3435, %v3431
          %v3632 = vpack.c.b16 %v3440, %v3436
          %v3633 = vpack.c.b16 %v3441, %v3437
          %v3634 = vpack.c.b16 %v3442, %v3438
          %v3635 = vpack.c.b16 %v3443, %v3439
          %v3636 = vpack.c.b16 %v3448, %v3444
          %v3637 = vpack.c.b16 %v3449, %v3445
          %v3638 = vpack.c.b16 %v3450, %v3446
          %v3639 = vpack.c.b16 %v3451, %v3447
          %v3640 = vpack.c.b16 %v3456, %v3452
          %v3641 = vpack.c.b16 %v3457, %v3453
          %v3642 = vpack.c.b16 %v3458, %v3454
          %v3643 = vpack.c.b16 %v3459, %v3455
          %v3644 = vpack.c.b16 %v3464, %v3460
          %v3645 = vpack.c.b16 %v3465, %v3461
          %v3646 = vpack.c.b16 %v3466, %v3462
          %v3647 = vpack.c.b16 %v3467, %v3463
          %v3648 = vpack.c.b16 %v3472, %v3468
          %v3649 = vpack.c.b16 %v3473, %v3469
          %v3650 = vpack.c.b16 %v3474, %v3470
          %v3651 = vpack.c.b16 %v3475, %v3471
          %v3652 = vpack.c.b16 %v3480, %v3476
          %v3653 = vpack.c.b16 %v3481, %v3477
          %v3654 = vpack.c.b16 %v3482, %v3478
          %v3655 = vpack.c.b16 %v3483, %v3479
          %v3656 = vpack.c.b16 %v3488, %v3484
          %v3657 = vpack.c.b16 %v3489, %v3485
          %v3658 = vpack.c.b16 %v3490, %v3486
          %v3659 = vpack.c.b16 %v3491, %v3487
          %v3660 = vpack.c.b16 %v3496, %v3492
          %v3661 = vpack.c.b16 %v3497, %v3493
          %v3662 = vpack.c.b16 %v3498, %v3494
          %v3663 = vpack.c.b16 %v3499, %v3495
          %v3664 = vpack.c.b16 %v3504, %v3500
          %v3665 = vpack.c.b16 %v3505, %v3501
          %v3666 = vpack.c.b16 %v3506, %v3502
          %v3667 = vpack.c.b16 %v3507, %v3503
          %v3668 = vpack.c.b16 %v3512, %v3508
          %v3669 = vpack.c.b16 %v3513, %v3509
          %v3670 = vpack.c.b16 %v3514, %v3510
          %v3671 = vpack.c.b16 %v3515, %v3511
          %v3672 = vpack.c.b16 %v3520, %v3516
          %v3673 = vpack.c.b16 %v3521, %v3517
          %v3674 = vpack.c.b16 %v3522, %v3518
          %v3675 = vpack.c.b16 %v3523, %v3519
          %v3676 = vpack.c.b16 %v3528, %v3524
          %v3677 = vpack.c.b16 %v3529, %v3525
          %v3678 = vpack.c.b16 %v3530, %v3526
          %v3679 = vpack.c.b16 %v3531, %v3527
          %v3680 = vpack.c.b16 %v3536, %v3532
          %v3681 = vpack.c.b16 %v3537, %v3533
          %v3682 = vpack.c.b16 %v3538, %v3534
          %v3683 = vpack.c.b16 %v3539, %v3535
          %v3684 = vpack.c.b16 %v3544, %v3540
          %v3685 = vpack.c.b16 %v3545, %v3541
          %v3686 = vpack.c.b16 %v3546, %v3542
          %v3687 = vpack.c.b16 %v3547, %v3543
          %v3688 = vpack.c.b16 %v3552, %v3548
          %v3689 = vpack.c.b16 %v3553, %v3549
          %v3690 = vpack.c.b16 %v3554, %v3550
          %v3691 = vpack.c.b16 %v3555, %v3551
          %v3692 = vpack.c.b16 %v3560, %v3556
          %v3693 = vpack.c.b16 %v3561, %v3557
          %v3694 = vpack.c.b16 %v3562, %v3558
          %v3695 = vpack.c.b16 %v3563, %v3559
          %v3696 = vpack.c.b16 %v3568, %v3564
          %v3697 = vpack.c.b16 %v3569, %v3565
          %v3698 = vpack.c.b16 %v3570, %v3566
          %v3699 = vpack.c.b16 %v3571, %v3567
          %3828 = vmatprep.subr.bf16.mxu0 %v3573
          %3829 = vmatpush1.bf16.msra.mxu0 %v3572
          %3830 = vmatprep.subr.bf16.mxu0 %v3577
          %3831 = vmatpush1.bf16.msra.mxu0 %v3576
          %3832 = vmatprep.subr.bf16.mxu0 %v3581
          %3833 = vmatpush1.bf16.msra.mxu0 %v3580
          %3834 = vmatprep.subr.bf16.mxu0 %v3585
          %3835 = vmatpush1.bf16.msra.mxu0 %v3584
          %3836 = vmatprep.subr.bf16.mxu0 %v3589
          %3837 = vmatpush1.bf16.msra.mxu0 %v3588
          %3838 = vmatprep.subr.bf16.mxu0 %v3593
          %3839 = vmatpush1.bf16.msra.mxu0 %v3592
          %3840 = vmatprep.subr.bf16.mxu0 %v3597
          %3841 = vmatpush1.bf16.msra.mxu0 %v3596
          %3842 = vmatprep.subr.bf16.mxu0 %v3601
          %3843 = vmatpush1.bf16.msra.mxu0 %v3600
          %3844 = vmatprep.subr.bf16.mxu0 %v3605
          %3845 = vmatpush1.bf16.msra.mxu0 %v3604
          %3846 = vmatprep.subr.bf16.mxu0 %v3609
          %3847 = vmatpush1.bf16.msra.mxu0 %v3608
          %3848 = vmatprep.subr.bf16.mxu0 %v3613
          %3849 = vmatpush1.bf16.msra.mxu0 %v3612
          %3850 = vmatprep.subr.bf16.mxu0 %v3617
          %3851 = vmatpush1.bf16.msra.mxu0 %v3616
          %3852 = vmatprep.subr.bf16.mxu0 %v3621
          %3853 = vmatpush1.bf16.msra.mxu0 %v3620
          %3854 = vmatprep.subr.bf16.mxu0 %v3625
          %3855 = vmatpush1.bf16.msra.mxu0 %v3624
          %3856 = vmatprep.subr.bf16.mxu0 %v3629
          %3857 = vmatpush1.bf16.msra.mxu0 %v3628
          %3858 = vmatprep.subr.bf16.mxu0 %v3633
          %3859 = vmatpush1.bf16.msra.mxu0 %v3632
          %3860 = vmatprep.mubr.bf16.mxu0 %v2346
          %3861 = vmatmul.mubr.bf16.gmra.mrb[0].mxu0 %v2338
          %v3862 = vpop.f32.mrb[0].mxu0
          %v3863 = vadd.f32 %v3096, %v3862
          %v3864 = vpop.f32.mrb[0].mxu0
          %v3865 = vadd.f32 %v3098, %v3864
          %v3866 = vpop.f32.mrb[0].mxu0
          %v3867 = vpop.f32.mrb[0].mxu0
          %3868 = vdwg.mxu0
          %3869 = vmatprep.subr.bf16.mxu0 %v3637
          %3870 = vmatpush1.bf16.msra.mxu0 %v3636
          %3871 = vmatprep.subr.bf16.mxu0 %v3641
          %3872 = vmatpush1.bf16.msra.mxu0 %v3640
          %3873 = vmatprep.subr.bf16.mxu0 %v3645
          %3874 = vmatpush1.bf16.msra.mxu0 %v3644
          %3875 = vmatprep.subr.bf16.mxu0 %v3649
          %3876 = vmatpush1.bf16.msra.mxu0 %v3648
          %3877 = vmatprep.subr.bf16.mxu0 %v3653
          %3878 = vmatpush1.bf16.msra.mxu0 %v3652
          %3879 = vmatprep.subr.bf16.mxu0 %v3657
          %3880 = vmatpush1.bf16.msra.mxu0 %v3656
          %3881 = vmatprep.subr.bf16.mxu0 %v3661
          %3882 = vmatpush1.bf16.msra.mxu0 %v3660
          %3883 = vmatprep.subr.bf16.mxu0 %v3665
          %3884 = vmatpush1.bf16.msra.mxu0 %v3664
          %3885 = vmatprep.subr.bf16.mxu0 %v3669
          %3886 = vmatpush1.bf16.msra.mxu0 %v3668
          %3887 = vmatprep.subr.bf16.mxu0 %v3673
          %3888 = vmatpush1.bf16.msra.mxu0 %v3672
          %3889 = vmatprep.subr.bf16.mxu0 %v3677
          %3890 = vmatpush1.bf16.msra.mxu0 %v3676
          %3891 = vmatprep.subr.bf16.mxu0 %v3681
          %3892 = vmatpush1.bf16.msra.mxu0 %v3680
          %3893 = vmatprep.subr.bf16.mxu0 %v3685
          %3894 = vmatpush1.bf16.msra.mxu0 %v3684
          %3895 = vmatprep.subr.bf16.mxu0 %v3689
          %3896 = vmatpush1.bf16.msra.mxu0 %v3688
          %3897 = vmatprep.subr.bf16.mxu0 %v3693
          %3898 = vmatpush1.bf16.msra.mxu0 %v3692
          %3899 = vmatprep.subr.bf16.mxu0 %v3697
          %3900 = vmatpush1.bf16.msra.mxu0 %v3696
          %3901 = vmatprep.mubr.bf16.mxu0 %v2347
          %3902 = vmatmul.mubr.bf16.gmra.mrb[0].mxu0 %v2345
          %v3903 = vpop.f32.mrb[0].mxu0
          %v3904 = vadd.f32 %v3863, %v3903
          %v3905 = vpop.f32.mrb[0].mxu0
          %v3906 = vadd.f32 %v3865, %v3905
          %v3907 = vpop.f32.mrb[0].mxu0
          %v3908 = vpop.f32.mrb[0].mxu0
          %3909 = vdwg.mxu0
          %3910 = vmatprep.subr.bf16.mxu0 %v3575
          %3911 = vmatpush1.bf16.msra.mxu0 %v3574
          %3912 = vmatprep.subr.bf16.mxu0 %v3579
          %3913 = vmatpush1.bf16.msra.mxu0 %v3578
          %3914 = vmatprep.subr.bf16.mxu0 %v3583
          %3915 = vmatpush1.bf16.msra.mxu0 %v3582
          %3916 = vmatprep.subr.bf16.mxu0 %v3587
          %3917 = vmatpush1.bf16.msra.mxu0 %v3586
          %3918 = vmatprep.subr.bf16.mxu0 %v3591
          %3919 = vmatpush1.bf16.msra.mxu0 %v3590
          %3920 = vmatprep.subr.bf16.mxu0 %v3595
          %3921 = vmatpush1.bf16.msra.mxu0 %v3594
          %3922 = vmatprep.subr.bf16.mxu0 %v3599
          %3923 = vmatpush1.bf16.msra.mxu0 %v3598
          %3924 = vmatprep.subr.bf16.mxu0 %v3603
          %3925 = vmatpush1.bf16.msra.mxu0 %v3602
          %3926 = vmatprep.subr.bf16.mxu0 %v3607
          %3927 = vmatpush1.bf16.msra.mxu0 %v3606
          %3928 = vmatprep.subr.bf16.mxu0 %v3611
          %3929 = vmatpush1.bf16.msra.mxu0 %v3610
          %3930 = vmatprep.subr.bf16.mxu0 %v3615
          %3931 = vmatpush1.bf16.msra.mxu0 %v3614
          %3932 = vmatprep.subr.bf16.mxu0 %v3619
          %3933 = vmatpush1.bf16.msra.mxu0 %v3618
          %3934 = vmatprep.subr.bf16.mxu0 %v3623
          %3935 = vmatpush1.bf16.msra.mxu0 %v3622
          %3936 = vmatprep.subr.bf16.mxu0 %v3627
          %3937 = vmatpush1.bf16.msra.mxu0 %v3626
          %3938 = vmatprep.subr.bf16.mxu0 %v3631
          %3939 = vmatpush1.bf16.msra.mxu0 %v3630
          %3940 = vmatprep.subr.bf16.mxu0 %v3635
          %3941 = vmatpush1.bf16.msra.mxu0 %v3634
          %3942 = vmatprep.mubr.bf16.mxu0 %v2346
          %3943 = vmatmul.mubr.bf16.gmra.mrb[0].mxu0 %v2338
          %v3944 = vpop.f32.mrb[0].mxu0
          %v3945 = vadd.f32 %v3178, %v3944
          %v3946 = vpop.f32.mrb[0].mxu0
          %v3947 = vadd.f32 %v3180, %v3946
          %v3948 = vpop.f32.mrb[0].mxu0
          %v3949 = vpop.f32.mrb[0].mxu0
          %3950 = vdwg.mxu0
          %3951 = vmatprep.subr.bf16.mxu0 %v3639
          %3952 = vmatpush1.bf16.msra.mxu0 %v3638
          %3953 = vmatprep.subr.bf16.mxu0 %v3643
          %3954 = vmatpush1.bf16.msra.mxu0 %v3642
          %3955 = vmatprep.subr.bf16.mxu0 %v3647
          %3956 = vmatpush1.bf16.msra.mxu0 %v3646
          %3957 = vmatprep.subr.bf16.mxu0 %v3651
          %3958 = vmatpush1.bf16.msra.mxu0 %v3650
          %3959 = vmatprep.subr.bf16.mxu0 %v3655
          %3960 = vmatpush1.bf16.msra.mxu0 %v3654
          %3961 = vmatprep.subr.bf16.mxu0 %v3659
          %3962 = vmatpush1.bf16.msra.mxu0 %v3658
          %3963 = vmatprep.subr.bf16.mxu0 %v3663
          %3964 = vmatpush1.bf16.msra.mxu0 %v3662
          %3965 = vmatprep.subr.bf16.mxu0 %v3667
          %3966 = vmatpush1.bf16.msra.mxu0 %v3666
          %3967 = vmatprep.subr.bf16.mxu0 %v3671
          %3968 = vmatpush1.bf16.msra.mxu0 %v3670
          %3969 = vmatprep.subr.bf16.mxu0 %v3675
          %3970 = vmatpush1.bf16.msra.mxu0 %v3674
          %3971 = vmatprep.subr.bf16.mxu0 %v3679
          %3972 = vmatpush1.bf16.msra.mxu0 %v3678
          %3973 = vmatprep.subr.bf16.mxu0 %v3683
          %3974 = vmatpush1.bf16.msra.mxu0 %v3682
          %3975 = vmatprep.subr.bf16.mxu0 %v3687
          %3976 = vmatpush1.bf16.msra.mxu0 %v3686
          %3977 = vmatprep.subr.bf16.mxu0 %v3691
          %3978 = vmatpush1.bf16.msra.mxu0 %v3690
          %3979 = vmatprep.subr.bf16.mxu0 %v3695
          %3980 = vmatpush1.bf16.msra.mxu0 %v3694
          %3981 = vmatprep.subr.bf16.mxu0 %v3699
          %3982 = vmatpush1.bf16.msra.mxu0 %v3698
          %3983 = vmatprep.mubr.bf16.mxu0 %v2347
          %3984 = vmatmul.mubr.bf16.gmra.mrb[0].mxu0 %v2345
          %v3985 = vpop.f32.mrb[0].mxu0
          %v3986 = vadd.f32 %v3945, %v3985
          %v3987 = vpop.f32.mrb[0].mxu0
          %v3988 = vadd.f32 %v3947, %v3987
          %v3989 = vpop.f32.mrb[0].mxu0
          %v3990 = vpop.f32.mrb[0].mxu0
          %3991 = vdwg.mxu0
          %v3993 = vlaneseq
          %v3994 = vshrl.u32 %v3993, 7
          %v3995 = vsub.s32 0, %v3994
          %v3996 = vrot.slane %v2315, %v3995
          %v3997 = vlaneseq
          %v3998 = vshrl.u32 %v3997, 7
          %v3999 = vsub.s32 1, %v3998
          %v4000 = vrot.slane %v2315, %v3999
          %v4001 = vlaneseq
          %v4002 = vshrl.u32 %v4001, 7
          %v4003 = vsub.s32 2, %v4002
          %v4004 = vrot.slane %v2315, %v4003
          %v4005 = vlaneseq
          %v4006 = vshrl.u32 %v4005, 7
          %v4007 = vsub.s32 3, %v4006
          %v4008 = vrot.slane %v2315, %v4007
          %v4013 = vadd.f32 %v3904, %v3996
          %v4014 = vadd.f32 %v3906, %v4000
          %v4015 = vadd.f32 %v3986, %v4004
          %v4016 = vadd.f32 %v3988, %v4008
          %v4017 = vld [vmem:[%s9] sm:$0xf]
          %v4019 = vlaneseq
          %v4020 = vshrl.u32 %v4019, 7
          %v4021 = vsub.s32 0, %v4020
          %v4022 = vrot.slane %v4017, %v4021
          %v4023 = vlaneseq
          %v4024 = vshrl.u32 %v4023, 7
          %v4025 = vsub.s32 1, %v4024
          %v4026 = vrot.slane %v4017, %v4025
          %v4027 = vlaneseq
          %v4028 = vshrl.u32 %v4027, 7
          %v4029 = vsub.s32 2, %v4028
          %v4030 = vrot.slane %v4017, %v4029
          %v4031 = vlaneseq
          %v4032 = vshrl.u32 %v4031, 7
          %v4033 = vsub.s32 3, %v4032
          %v4034 = vrot.slane %v4017, %v4033
          %v4039 = vmul.f32 %v4013, %v4022
          %v4040 = vmul.f32 %v4014, %v4026
          %v4041 = vmul.f32 %v4015, %v4030
          %v4042 = vmul.f32 %v4016, %v4034
          %vm4043 = vcmask 1045504
          %v4044 = vsel %vm4043, %v4039, 0.0
          %v4045 = vsel %vm4043, %v4040, 0.0
          %v4046 = vadd.f32 %v4044, %v4045
          %v4047 = vsel %vm4043, %v4041, 0.0
          %v4048 = vadd.f32 %v4046, %v4047
          %v4049 = vsel %vm4043, %v4042, 0.0
          %v4050 = vadd.f32 %v4048, %v4049
          %4051 = vadd.xlane.f32.xlu0 %v4050
          %v4052 = vpop.xlane.xlu0 %4051
          %v4053 = vld [vmem:[#allocation3] sm:$0x1]
          %v4055 = vlaneseq
          %v4056 = vshrl.u32 %v4055, 7
          %v4057 = vsub.s32 0, %v4056
          %v4058 = vrot.slane %v4053, %v4057
          %v4060 = vadd.f32 %v4052, %v4058
          %v4061 = vxor.u32 %v4060, 2147483648
          %v4062 = vmul.f32 %v4061, 1.442695
          %v4063 = vpow.pop %v4062
          %v4064 = vadd.f32 %v4063, 1.0
          %v4065 = vrcp.pop %v4064
          %v4066 = vmul.f32 1.0, %v4065
          %4068 = vset.pattern.permute.xlu0 0
          %4069 = vperm.xlu0 %4068, %v4066
          %v4070 = vpop.permute.xlu0 %4069
          %v4072 = vmul.f32 %v4013, %v4070
          %v4073 = vmul.f32 %v4014, %v4070
          %v4074 = vmul.f32 %v4015, %v4070
          %v4075 = vmul.f32 %v4016, %v4070
          %4076 = vst [vmem:[%s534] sm:$0x3f] %v4072
          %4077 = vst [vmem:[%s534 + $0x8] sm:$0x3f] %v4073
          %4078 = vst [vmem:[%s534 + $0x10] sm:$0x3f] %v4074
          %4079 = vst [vmem:[%s534 + $0x18] sm:$0x3f] %v4075
        $region92: #{tpu_custom_call.1} parent=63 // pred_fallthru
          _
        %p4080 = scmp.lt.s32.totalorder %s35, 1
        %s4081 = scalar_select %p4080, %s35, 1
        %s4082 = smul.addr %s4081, 4
        %s4083 = smul.addr %s4082, 8
        %s4084 = scalar_lea.vmem %s11, %s4083
        // Predicated region
        $region93: #{tpu_custom_call.1} parent=63 // pred_check
          %p4085 = pneg %p304
        $region94: #{tpu_custom_call.1} parent=63 // pred_check_branch
          %4087 = sbr.rel (%p4085) target = $region96
        $region95: #{tpu_custom_call.1} parent=63 // pred_region
          _
        $region96: #{tpu_custom_call.1} parent=63 // pred_fallthru
          _
      $region64: #{tpu_custom_call.1} parent=5 // pred_fallthru
        _
      %p4088 = scmp.le.s32.totalorder 2, %s26
      // Predicated region
      $region97: #{tpu_custom_call.1} parent=5 // pred_check
        %p4089 = pneg %p4088
      $region98: #{tpu_custom_call.1} parent=5 // pred_check_branch
        %4091 = sbr.rel (%p4089) target = $region100
      $region99: #{tpu_custom_call.1} parent=5 // pred_region
        %s4092 = ssub.s32 %s26, 2
        // Predicated region
        $region101: #{tpu_custom_call.1} parent=99 // pred_check
          %p4093 = pneg %p310
        $region102: #{tpu_custom_call.1} parent=99 // pred_check_branch
          %4095 = sbr.rel (%p4093) target = $region104
        $region103: #{tpu_custom_call.1} parent=99 // pred_region
          %p4096 = scmp.lt.s32.totalorder %s37, 1
          %s4097 = scalar_select %p4096, %s37, 1
          %s4098 = smul.addr %s4097, 4
          %s4099 = smul.addr %s4098, 8
          %s4100 = scalar_lea.vmem %s11, %s4099
        $region104: #{tpu_custom_call.1} parent=99 // pred_fallthru
          _
      $region100: #{tpu_custom_call.1} parent=5 // pred_fallthru
        _
    $region6: #{tpu_custom_call.1} parent=1 // loop_footer
      %s30 = sadd.s32 1, %s26
    $region7: #{tpu_custom_call.1} parent=1 // loop_footer_branch
      %25 = sbr.rel target = $region3
    $region8: #{tpu_custom_call.1} parent=1 // loop_exit
      _
    %4101 = vsyncpa [#allocation5], 1
    %s4102 = scalar_lea.sflag [#allocation5], 1
    %4103 = vsyncpa %s4102, 1
    %4104 = vsyncpa [#allocation7], 1
    %s4105 = scalar_lea.sflag [#allocation7], 1
    %4106 = vsyncpa %s4105, 1
    %4107 = vsyncpa [#allocation10], 1

</llo_original>
